<compile_context>
chip_gen: v5e
topology: v5e:2x2
jax: 0.10.0
libtpu: 0.0.40
codegen_flags: <defaults>
</compile_context>

<pallas_src>
import math
import numpy as np

import jax
import jax.numpy as jnp
from jax.experimental import pallas as pl
from jax.experimental.pallas import tpu as pltpu

LANE = 128


def _vmem_spec():
    return pl.BlockSpec(memory_space=pltpu.MemorySpace.VMEM)


# ----------------------------------------------------------------------------
# Fused Pallas kernel: whole recurrence + output head in one launch
# ----------------------------------------------------------------------------
def make_fused_tgc_lstm_kernel(seq_len, num_layers, n, hidden_size, pred_pad):
    """Build the fused kernel body (static shapes are baked in)."""
    H = hidden_size
    H4 = 4 * H

    def kernel(*refs):
        f32 = jnp.float32
        x_ref, adj_ref = refs[0], refs[1]
        layer_refs = [refs[2 + 3 * l: 2 + 3 * (l + 1)] for l in range(num_layers)]
        w_out_ref = refs[2 + 3 * num_layers]
        b_out_ref = refs[3 + 3 * num_layers]
        out_ref = refs[4 + 3 * num_layers]

        adj = adj_ref[...]                                          # (N, N)

        # Load all weights once; they stay VMEM/vreg resident for the sequence.
        w_in = [layer_refs[l][0][...] for l in range(num_layers)]   # (in_dim, 8H)
        w_h = [layer_refs[l][1][...] for l in range(num_layers)]    # (H, 8H)
        # Pre-broadcast the (pre-summed) biases ONCE, outside the unrolled loop.
        b_full = [jnp.broadcast_to(layer_refs[l][2][...], (n, H4))
                  for l in range(num_layers)]

        # Hoisted: layer-0 input-path matmul over ALL timesteps in one shot.
        yx_all = jnp.dot(x_ref[...], w_in[0], preferred_element_type=f32)  # (T*N, 8H)

        hid = [jnp.zeros((n, H), f32) for _ in range(num_layers)]
        cel = [jnp.zeros((n, H), f32) for _ in range(num_layers)]

        # seq_len / num_layers are tiny and static -> full python unroll so the
        # LLO scheduler sees the whole recurrence.
        for t in range(seq_len):
            for layer in range(num_layers):
                if layer == 0:
                    y = (yx_all[t * n:(t + 1) * n, :]
                         + jnp.dot(hid[0], w_h[0], preferred_element_type=f32))
                else:
                    y = (jnp.dot(hid[layer - 1], w_in[layer],
                                 preferred_element_type=f32)
                         + jnp.dot(hid[layer], w_h[layer],
                                   preferred_element_type=f32))
                # Columns [0, 4H) = graph-conv path, [4H, 8H) = linear path.
                yg = y[:, :H4]
                yl = y[:, H4:]
                combined = (jnp.dot(adj, yg, preferred_element_type=f32)
                            + yl + b_full[layer])
                # One sigmoid over i|f|o, one tanh over g.
                sig = jax.nn.sigmoid(combined[:, :3 * H])
                g_gate = jnp.tanh(combined[:, 3 * H:])
                i_gate = sig[:, 0 * H:1 * H]
                f_gate = sig[:, 1 * H:2 * H]
                o_gate = sig[:, 2 * H:3 * H]
                cel[layer] = f_gate * cel[layer] + i_gate * g_gate
                hid[layer] = o_gate * jnp.tanh(cel[layer])
                # nn.Dropout(0.2) is identity at inference time.

        # Fused, lane-dense output head: single unmasked (N, 128) store to HBM.
        out_ref[...] = (jnp.dot(hid[-1], w_out_ref[...],
                                preferred_element_type=f32)
                        + jnp.broadcast_to(b_out_ref[...], (n, pred_pad)))

    return kernel


def fuse_layer_params(layer_params):
    """Host-side weight fusion: [Wg | Wl] concat + bias pre-sum per layer."""
    fused = []
    for p in layer_params:
        w_in_cat = jnp.concatenate([p["wg_in"], p["wl_in"]], axis=1)  # (in, 8H)
        w_h_cat = jnp.concatenate([p["wg_h"], p["wl_h"]], axis=1)     # (H, 8H)
        b_sum = p["bg_in"] + p["bg_h"] + p["bl_in"] + p["bl_h"]       # (1, 4H)
        fused.append((w_in_cat, w_h_cat, b_sum))
    return fused


def tgc_lstm_forward(x, adj_norm, layer_params, w_out, b_out,
                     input_size, hidden_size, num_layers, num_stations,
                     seq_len, pred_len):
    batch = x.shape[0]
    n = batch * num_stations
    # (B, T, S*D) -> (T, B*S, D) -> (T*B*S, D); matches
    # x[:, t, :].reshape(-1, input_size) for each t.
    x_steps = jnp.swapaxes(x, 0, 1).reshape(seq_len * n, input_size)

    # Pad output head to a full 128-lane store (lane-dense writeback).
    pred_pad = max(LANE, LANE * pl.cdiv(pred_len, LANE))
    w_out_p = jnp.zeros((hidden_size, pred_pad), jnp.float32)
    w_out_p = w_out_p.at[:, :pred_len].set(w_out)
    b_out_p = jnp.zeros((1, pred_pad), jnp.float32)
    b_out_p = b_out_p.at[:, :pred_len].set(b_out)

    args = [x_steps, adj_norm]
    for w_in_cat, w_h_cat, b_sum in fuse_layer_params(layer_params):
        args.extend([w_in_cat, w_h_cat, b_sum])
    args.extend([w_out_p, b_out_p])

    kernel = make_fused_tgc_lstm_kernel(
        seq_len, num_layers, n, hidden_size, pred_pad)
    out = pl.pallas_call(
        kernel,
        out_shape=jax.ShapeDtypeStruct((n, pred_pad), jnp.float32),
        in_specs=[_vmem_spec()] * len(args),
        out_specs=_vmem_spec(),
        compiler_params=pltpu.CompilerParams(vmem_limit_bytes=64 << 20),
    )(*args)
    return out[:, :pred_len].reshape(batch, num_stations, pred_len)


# ----------------------------------------------------------------------------
# Glue (plain JAX): adjacency normalization, parameter init
# ----------------------------------------------------------------------------
def normalize_adj(adj):
    s = adj.shape[0]
    adj = adj + jnp.eye(s, dtype=adj.dtype)
    degree = jnp.sum(adj, axis=1)
    d_inv_sqrt = jnp.power(degree, -0.5)
    d_inv_sqrt = jnp.where(jnp.isinf(d_inv_sqrt), 0.0, d_inv_sqrt)
    d_mat = jnp.diag(d_inv_sqrt)
    return d_mat @ adj @ d_mat


def _uniform(key, shape, stdv):
    return jax.random.uniform(key, shape, minval=-stdv, maxval=stdv,
                              dtype=jnp.float32)


def init_params(key, input_size, hidden_size, num_layers, pred_len):
    g4 = 4 * hidden_size
    layer_params = []
    for layer in range(num_layers):
        in_dim = input_size if layer == 0 else hidden_size
        key, *ks = jax.random.split(key, 9)
        stdv_gc = 1.0 / math.sqrt(g4)            # GraphConvolution init
        stdv_li = 1.0 / math.sqrt(in_dim)        # nn.Linear(input) init
        stdv_lh = 1.0 / math.sqrt(hidden_size)   # nn.Linear(hidden) init
        layer_params.append({
            "wg_in": _uniform(ks[0], (in_dim, g4), stdv_gc),
            "bg_in": _uniform(ks[1], (1, g4), stdv_gc),
            "wg_h":  _uniform(ks[2], (hidden_size, g4), stdv_gc),
            "bg_h":  _uniform(ks[3], (1, g4), stdv_gc),
            # nn.Linear weights stored pre-transposed as (in, out):
            "wl_in": _uniform(ks[4], (in_dim, g4), stdv_li),
            "bl_in": _uniform(ks[5], (1, g4), stdv_li),
            "wl_h":  _uniform(ks[6], (hidden_size, g4), stdv_lh),
            "bl_h":  _uniform(ks[7], (1, g4), stdv_lh),
        })
    key, kw, kb = jax.random.split(key, 3)
    stdv_out = 1.0 / math.sqrt(hidden_size)
    w_out = _uniform(kw, (hidden_size, pred_len), stdv_out)  # pre-transposed
    b_out = _uniform(kb, (1, pred_len), stdv_out)
    return layer_params, w_out, b_out


# ----------------------------------------------------------------------------
# Pure-JAX reference (mirrors the PyTorch forward) for verification
# ----------------------------------------------------------------------------
def tgc_lstm_reference(x, adj_norm, layer_params, w_out, b_out,
                       input_size, hidden_size, num_layers, num_stations,
                       seq_len, pred_len):
    batch = x.shape[0]
    n = batch * num_stations
    hidden = [jnp.zeros((n, hidden_size), jnp.float32) for _ in range(num_layers)]
    cell = [jnp.zeros((n, hidden_size), jnp.float32) for _ in range(num_layers)]
    for t in range(seq_len):
        input_t = x[:, t, :].reshape(-1, input_size)
        for layer in range(num_layers):
            p = layer_params[layer]
            inp = input_t if layer == 0 else hidden[layer - 1]
            gi = adj_norm @ (inp @ p["wg_in"]) + p["bg_in"]
            gh = adj_norm @ (hidden[layer] @ p["wg_h"]) + p["bg_h"]
            li = inp @ p["wl_in"] + p["bl_in"]
            lh = hidden[layer] @ p["wl_h"] + p["bl_h"]
            comb = gi + gh + li + lh
            hdim = hidden_size
            i_g = jax.nn.sigmoid(comb[:, 0 * hdim:1 * hdim])
            f_g = jax.nn.sigmoid(comb[:, 1 * hdim:2 * hdim])
            o_g = jax.nn.sigmoid(comb[:, 2 * hdim:3 * hdim])
            g_g = jnp.tanh(comb[:, 3 * hdim:4 * hdim])
            cell[layer] = f_g * cell[layer] + i_g * g_g
            hidden[layer] = o_g * jnp.tanh(cell[layer])
            input_t = hidden[layer]
    out = hidden[-1] @ w_out + b_out
    return out.reshape(batch, num_stations, pred_len)


# ----------------------------------------------------------------------------
if __name__ == "__main__":
    batch = 1            # PyTorch module's spmm(adj, ...) requires batch == 1
    seq_len = 8
    num_stations = 16
    input_size = 4
    hidden_size = 32
    num_layers = 2
    pred_len = 3

    key = jax.random.PRNGKey(0)
    kx, kadj, kp = jax.random.split(key, 3)

    x = jax.random.normal(
        kx, (batch, seq_len, num_stations * input_size), dtype=jnp.float32)
    adj_raw = (jax.random.uniform(kadj, (num_stations, num_stations)) > 0.7
               ).astype(jnp.float32)
    adj_raw = jnp.maximum(adj_raw, adj_raw.T)       # symmetric adjacency
    adj_norm = normalize_adj(adj_raw)

    layer_params, w_out, b_out = init_params(
        kp, input_size, hidden_size, num_layers, pred_len)

    out = tgc_lstm_forward(
        x, adj_norm, layer_params, w_out, b_out,
        input_size, hidden_size, num_layers, num_stations, seq_len, pred_len)
    out = jax.block_until_ready(out)

    ref = tgc_lstm_reference(
        x, adj_norm, layer_params, w_out, b_out,
        input_size, hidden_size, num_layers, num_stations, seq_len, pred_len)

    assert out.shape == (batch, num_stations, pred_len)
    np.testing.assert_allclose(np.asarray(out), np.asarray(ref),
                               rtol=2e-2, atol=2e-2)
    print("KERNEL_OK")
</pallas_src>

<mosaic_0001>
module attributes {stable_mosaic.version = 11 : i64} {
  func.func @kernel(%arg0: memref<128x4xf32, #tpu.memory_space<vmem>>, %arg1: memref<16x16xf32, #tpu.memory_space<vmem>>, %arg2: memref<4x256xf32, #tpu.memory_space<vmem>>, %arg3: memref<32x256xf32, #tpu.memory_space<vmem>>, %arg4: memref<1x128xf32, #tpu.memory_space<vmem>>, %arg5: memref<32x256xf32, #tpu.memory_space<vmem>>, %arg6: memref<32x256xf32, #tpu.memory_space<vmem>>, %arg7: memref<1x128xf32, #tpu.memory_space<vmem>>, %arg8: memref<32x128xf32, #tpu.memory_space<vmem>>, %arg9: memref<1x128xf32, #tpu.memory_space<vmem>>, %arg10: memref<16x128xf32, #tpu.memory_space<vmem>>) attributes {dimension_semantics = [], scalar_prefetch = 0 : i64, scratch_operands = 0 : i64, tpu.core_type = #tpu.core_type<tc>} {
    %c0 = arith.constant 0 : index
    %c0_0 = arith.constant 0 : index
    %0 = vector.load %arg1[%c0, %c0_0] : memref<16x16xf32, #tpu.memory_space<vmem>>, vector<16x16xf32>
    %c0_1 = arith.constant 0 : index
    %c0_2 = arith.constant 0 : index
    %1 = vector.load %arg2[%c0_1, %c0_2] : memref<4x256xf32, #tpu.memory_space<vmem>>, vector<4x256xf32>
    %c0_3 = arith.constant 0 : index
    %c0_4 = arith.constant 0 : index
    %2 = vector.load %arg5[%c0_3, %c0_4] : memref<32x256xf32, #tpu.memory_space<vmem>>, vector<32x256xf32>
    %c0_5 = arith.constant 0 : index
    %c0_6 = arith.constant 0 : index
    %3 = vector.load %arg3[%c0_5, %c0_6] : memref<32x256xf32, #tpu.memory_space<vmem>>, vector<32x256xf32>
    %c0_7 = arith.constant 0 : index
    %c0_8 = arith.constant 0 : index
    %4 = vector.load %arg6[%c0_7, %c0_8] : memref<32x256xf32, #tpu.memory_space<vmem>>, vector<32x256xf32>
    %c0_9 = arith.constant 0 : index
    %c0_10 = arith.constant 0 : index
    %5 = vector.load %arg4[%c0_9, %c0_10] : memref<1x128xf32, #tpu.memory_space<vmem>>, vector<1x128xf32>
    %6 = vector.shape_cast %5 : vector<1x128xf32> to vector<1x128xf32>
    %7 = vector.broadcast %6 : vector<1x128xf32> to vector<16x128xf32>
    %c0_11 = arith.constant 0 : index
    %c0_12 = arith.constant 0 : index
    %8 = vector.load %arg7[%c0_11, %c0_12] : memref<1x128xf32, #tpu.memory_space<vmem>>, vector<1x128xf32>
    %9 = vector.shape_cast %8 : vector<1x128xf32> to vector<1x128xf32>
    %10 = vector.broadcast %9 : vector<1x128xf32> to vector<16x128xf32>
    %c0_13 = arith.constant 0 : index
    %c0_14 = arith.constant 0 : index
    %11 = vector.load %arg0[%c0_13, %c0_14] : memref<128x4xf32, #tpu.memory_space<vmem>>, vector<128x4xf32>
    %cst = arith.constant dense<0.000000e+00> : vector<128x256xf32>
    %12 = tpu.matmul %11, %1, %cst {dimension_numbers = #tpu.dot_dimension_numbers<[1], [0], [0], [1], [0, 0, 1, 1], [], []>} : vector<128x4xf32>, vector<4x256xf32>, vector<128x256xf32> -> vector<128x256xf32>
    %cst_15 = arith.constant 0.000000e+00 : f32
    %13 = vector.broadcast %cst_15 : f32 to vector<16x32xf32>
    %cst_16 = arith.constant 0.000000e+00 : f32
    %14 = vector.broadcast %cst_16 : f32 to vector<16x32xf32>
    %cst_17 = arith.constant 0.000000e+00 : f32
    %15 = vector.broadcast %cst_17 : f32 to vector<16x32xf32>
    %cst_18 = arith.constant 0.000000e+00 : f32
    %16 = vector.broadcast %cst_18 : f32 to vector<16x32xf32>
    %17 = vector.extract_strided_slice %12 {offsets = [0, 0], sizes = [16, 256], strides = [1, 1]} : vector<128x256xf32> to vector<16x256xf32>
    %cst_19 = arith.constant dense<0.000000e+00> : vector<16x256xf32>
    %18 = tpu.matmul %13, %3, %cst_19 {dimension_numbers = #tpu.dot_dimension_numbers<[1], [0], [0], [1], [0, 0, 1, 1], [], []>} : vector<16x32xf32>, vector<32x256xf32>, vector<16x256xf32> -> vector<16x256xf32>
    %19 = arith.addf %17, %18 : vector<16x256xf32>
    %20 = vector.extract_strided_slice %19 {offsets = [0, 0], sizes = [16, 128], strides = [1, 1]} : vector<16x256xf32> to vector<16x128xf32>
    %21 = vector.extract_strided_slice %19 {offsets = [0, 128], sizes = [16, 128], strides = [1, 1]} : vector<16x256xf32> to vector<16x128xf32>
    %cst_20 = arith.constant dense<0.000000e+00> : vector<16x128xf32>
    %22 = tpu.matmul %0, %20, %cst_20 {dimension_numbers = #tpu.dot_dimension_numbers<[1], [0], [0], [1], [0, 0, 1, 1], [], []>} : vector<16x16xf32>, vector<16x128xf32>, vector<16x128xf32> -> vector<16x128xf32>
    %23 = arith.addf %22, %21 : vector<16x128xf32>
    %24 = arith.addf %23, %7 : vector<16x128xf32>
    %25 = vector.extract_strided_slice %24 {offsets = [0, 0], sizes = [16, 96], strides = [1, 1]} : vector<16x128xf32> to vector<16x96xf32>
    %26 = arith.negf %25 : vector<16x96xf32>
    %27 = math.exp %26 : vector<16x96xf32>
    %cst_21 = arith.constant 1.000000e+00 : f32
    %28 = vector.broadcast %cst_21 : f32 to vector<16x96xf32>
    %29 = arith.addf %28, %27 : vector<16x96xf32>
    %30 = arith.divf %28, %29 : vector<16x96xf32>
    %31 = vector.extract_strided_slice %24 {offsets = [0, 96], sizes = [16, 32], strides = [1, 1]} : vector<16x128xf32> to vector<16x32xf32>
    %32 = math.tanh %31 : vector<16x32xf32>
    %33 = vector.extract_strided_slice %30 {offsets = [0, 0], sizes = [16, 32], strides = [1, 1]} : vector<16x96xf32> to vector<16x32xf32>
    %34 = vector.extract_strided_slice %30 {offsets = [0, 32], sizes = [16, 32], strides = [1, 1]} : vector<16x96xf32> to vector<16x32xf32>
    %35 = vector.extract_strided_slice %30 {offsets = [0, 64], sizes = [16, 32], strides = [1, 1]} : vector<16x96xf32> to vector<16x32xf32>
    %36 = arith.mulf %34, %15 : vector<16x32xf32>
    %37 = arith.mulf %33, %32 : vector<16x32xf32>
    %38 = arith.addf %36, %37 : vector<16x32xf32>
    %39 = math.tanh %38 : vector<16x32xf32>
    %40 = arith.mulf %35, %39 : vector<16x32xf32>
    %cst_22 = arith.constant dense<0.000000e+00> : vector<16x256xf32>
    %41 = tpu.matmul %40, %2, %cst_22 {dimension_numbers = #tpu.dot_dimension_numbers<[1], [0], [0], [1], [0, 0, 1, 1], [], []>} : vector<16x32xf32>, vector<32x256xf32>, vector<16x256xf32> -> vector<16x256xf32>
    %cst_23 = arith.constant dense<0.000000e+00> : vector<16x256xf32>
    %42 = tpu.matmul %14, %4, %cst_23 {dimension_numbers = #tpu.dot_dimension_numbers<[1], [0], [0], [1], [0, 0, 1, 1], [], []>} : vector<16x32xf32>, vector<32x256xf32>, vector<16x256xf32> -> vector<16x256xf32>
    %43 = arith.addf %41, %42 : vector<16x256xf32>
    %44 = vector.extract_strided_slice %43 {offsets = [0, 0], sizes = [16, 128], strides = [1, 1]} : vector<16x256xf32> to vector<16x128xf32>
    %45 = vector.extract_strided_slice %43 {offsets = [0, 128], sizes = [16, 128], strides = [1, 1]} : vector<16x256xf32> to vector<16x128xf32>
    %cst_24 = arith.constant dense<0.000000e+00> : vector<16x128xf32>
    %46 = tpu.matmul %0, %44, %cst_24 {dimension_numbers = #tpu.dot_dimension_numbers<[1], [0], [0], [1], [0, 0, 1, 1], [], []>} : vector<16x16xf32>, vector<16x128xf32>, vector<16x128xf32> -> vector<16x128xf32>
    %47 = arith.addf %46, %45 : vector<16x128xf32>
    %48 = arith.addf %47, %10 : vector<16x128xf32>
    %49 = vector.extract_strided_slice %48 {offsets = [0, 0], sizes = [16, 96], strides = [1, 1]} : vector<16x128xf32> to vector<16x96xf32>
    %50 = arith.negf %49 : vector<16x96xf32>
    %51 = math.exp %50 : vector<16x96xf32>
    %cst_25 = arith.constant 1.000000e+00 : f32
    %52 = vector.broadcast %cst_25 : f32 to vector<16x96xf32>
    %53 = arith.addf %52, %51 : vector<16x96xf32>
    %54 = arith.divf %52, %53 : vector<16x96xf32>
    %55 = vector.extract_strided_slice %48 {offsets = [0, 96], sizes = [16, 32], strides = [1, 1]} : vector<16x128xf32> to vector<16x32xf32>
    %56 = math.tanh %55 : vector<16x32xf32>
    %57 = vector.extract_strided_slice %54 {offsets = [0, 0], sizes = [16, 32], strides = [1, 1]} : vector<16x96xf32> to vector<16x32xf32>
    %58 = vector.extract_strided_slice %54 {offsets = [0, 32], sizes = [16, 32], strides = [1, 1]} : vector<16x96xf32> to vector<16x32xf32>
    %59 = vector.extract_strided_slice %54 {offsets = [0, 64], sizes = [16, 32], strides = [1, 1]} : vector<16x96xf32> to vector<16x32xf32>
    %60 = arith.mulf %58, %16 : vector<16x32xf32>
    %61 = arith.mulf %57, %56 : vector<16x32xf32>
    %62 = arith.addf %60, %61 : vector<16x32xf32>
    %63 = math.tanh %62 : vector<16x32xf32>
    %64 = arith.mulf %59, %63 : vector<16x32xf32>
    %65 = vector.extract_strided_slice %12 {offsets = [16, 0], sizes = [16, 256], strides = [1, 1]} : vector<128x256xf32> to vector<16x256xf32>
    %cst_26 = arith.constant dense<0.000000e+00> : vector<16x256xf32>
    %66 = tpu.matmul %40, %3, %cst_26 {dimension_numbers = #tpu.dot_dimension_numbers<[1], [0], [0], [1], [0, 0, 1, 1], [], []>} : vector<16x32xf32>, vector<32x256xf32>, vector<16x256xf32> -> vector<16x256xf32>
    %67 = arith.addf %65, %66 : vector<16x256xf32>
    %68 = vector.extract_strided_slice %67 {offsets = [0, 0], sizes = [16, 128], strides = [1, 1]} : vector<16x256xf32> to vector<16x128xf32>
    %69 = vector.extract_strided_slice %67 {offsets = [0, 128], sizes = [16, 128], strides = [1, 1]} : vector<16x256xf32> to vector<16x128xf32>
    %cst_27 = arith.constant dense<0.000000e+00> : vector<16x128xf32>
    %70 = tpu.matmul %0, %68, %cst_27 {dimension_numbers = #tpu.dot_dimension_numbers<[1], [0], [0], [1], [0, 0, 1, 1], [], []>} : vector<16x16xf32>, vector<16x128xf32>, vector<16x128xf32> -> vector<16x128xf32>
    %71 = arith.addf %70, %69 : vector<16x128xf32>
    %72 = arith.addf %71, %7 : vector<16x128xf32>
    %73 = vector.extract_strided_slice %72 {offsets = [0, 0], sizes = [16, 96], strides = [1, 1]} : vector<16x128xf32> to vector<16x96xf32>
    %74 = arith.negf %73 : vector<16x96xf32>
    %75 = math.exp %74 : vector<16x96xf32>
    %cst_28 = arith.constant 1.000000e+00 : f32
    %76 = vector.broadcast %cst_28 : f32 to vector<16x96xf32>
    %77 = arith.addf %76, %75 : vector<16x96xf32>
    %78 = arith.divf %76, %77 : vector<16x96xf32>
    %79 = vector.extract_strided_slice %72 {offsets = [0, 96], sizes = [16, 32], strides = [1, 1]} : vector<16x128xf32> to vector<16x32xf32>
    %80 = math.tanh %79 : vector<16x32xf32>
    %81 = vector.extract_strided_slice %78 {offsets = [0, 0], sizes = [16, 32], strides = [1, 1]} : vector<16x96xf32> to vector<16x32xf32>
    %82 = vector.extract_strided_slice %78 {offsets = [0, 32], sizes = [16, 32], strides = [1, 1]} : vector<16x96xf32> to vector<16x32xf32>
    %83 = vector.extract_strided_slice %78 {offsets = [0, 64], sizes = [16, 32], strides = [1, 1]} : vector<16x96xf32> to vector<16x32xf32>
    %84 = arith.mulf %82, %38 : vector<16x32xf32>
    %85 = arith.mulf %81, %80 : vector<16x32xf32>
    %86 = arith.addf %84, %85 : vector<16x32xf32>
    %87 = math.tanh %86 : vector<16x32xf32>
    %88 = arith.mulf %83, %87 : vector<16x32xf32>
    %cst_29 = arith.constant dense<0.000000e+00> : vector<16x256xf32>
    %89 = tpu.matmul %88, %2, %cst_29 {dimension_numbers = #tpu.dot_dimension_numbers<[1], [0], [0], [1], [0, 0, 1, 1], [], []>} : vector<16x32xf32>, vector<32x256xf32>, vector<16x256xf32> -> vector<16x256xf32>
    %cst_30 = arith.constant dense<0.000000e+00> : vector<16x256xf32>
    %90 = tpu.matmul %64, %4, %cst_30 {dimension_numbers = #tpu.dot_dimension_numbers<[1], [0], [0], [1], [0, 0, 1, 1], [], []>} : vector<16x32xf32>, vector<32x256xf32>, vector<16x256xf32> -> vector<16x256xf32>
    %91 = arith.addf %89, %90 : vector<16x256xf32>
    %92 = vector.extract_strided_slice %91 {offsets = [0, 0], sizes = [16, 128], strides = [1, 1]} : vector<16x256xf32> to vector<16x128xf32>
    %93 = vector.extract_strided_slice %91 {offsets = [0, 128], sizes = [16, 128], strides = [1, 1]} : vector<16x256xf32> to vector<16x128xf32>
    %cst_31 = arith.constant dense<0.000000e+00> : vector<16x128xf32>
    %94 = tpu.matmul %0, %92, %cst_31 {dimension_numbers = #tpu.dot_dimension_numbers<[1], [0], [0], [1], [0, 0, 1, 1], [], []>} : vector<16x16xf32>, vector<16x128xf32>, vector<16x128xf32> -> vector<16x128xf32>
    %95 = arith.addf %94, %93 : vector<16x128xf32>
    %96 = arith.addf %95, %10 : vector<16x128xf32>
    %97 = vector.extract_strided_slice %96 {offsets = [0, 0], sizes = [16, 96], strides = [1, 1]} : vector<16x128xf32> to vector<16x96xf32>
    %98 = arith.negf %97 : vector<16x96xf32>
    %99 = math.exp %98 : vector<16x96xf32>
    %cst_32 = arith.constant 1.000000e+00 : f32
    %100 = vector.broadcast %cst_32 : f32 to vector<16x96xf32>
    %101 = arith.addf %100, %99 : vector<16x96xf32>
    %102 = arith.divf %100, %101 : vector<16x96xf32>
    %103 = vector.extract_strided_slice %96 {offsets = [0, 96], sizes = [16, 32], strides = [1, 1]} : vector<16x128xf32> to vector<16x32xf32>
    %104 = math.tanh %103 : vector<16x32xf32>
    %105 = vector.extract_strided_slice %102 {offsets = [0, 0], sizes = [16, 32], strides = [1, 1]} : vector<16x96xf32> to vector<16x32xf32>
    %106 = vector.extract_strided_slice %102 {offsets = [0, 32], sizes = [16, 32], strides = [1, 1]} : vector<16x96xf32> to vector<16x32xf32>
    %107 = vector.extract_strided_slice %102 {offsets = [0, 64], sizes = [16, 32], strides = [1, 1]} : vector<16x96xf32> to vector<16x32xf32>
    %108 = arith.mulf %106, %62 : vector<16x32xf32>
    %109 = arith.mulf %105, %104 : vector<16x32xf32>
    %110 = arith.addf %108, %109 : vector<16x32xf32>
    %111 = math.tanh %110 : vector<16x32xf32>
    %112 = arith.mulf %107, %111 : vector<16x32xf32>
    %113 = vector.extract_strided_slice %12 {offsets = [32, 0], sizes = [16, 256], strides = [1, 1]} : vector<128x256xf32> to vector<16x256xf32>
    %cst_33 = arith.constant dense<0.000000e+00> : vector<16x256xf32>
    %114 = tpu.matmul %88, %3, %cst_33 {dimension_numbers = #tpu.dot_dimension_numbers<[1], [0], [0], [1], [0, 0, 1, 1], [], []>} : vector<16x32xf32>, vector<32x256xf32>, vector<16x256xf32> -> vector<16x256xf32>
    %115 = arith.addf %113, %114 : vector<16x256xf32>
    %116 = vector.extract_strided_slice %115 {offsets = [0, 0], sizes = [16, 128], strides = [1, 1]} : vector<16x256xf32> to vector<16x128xf32>
    %117 = vector.extract_strided_slice %115 {offsets = [0, 128], sizes = [16, 128], strides = [1, 1]} : vector<16x256xf32> to vector<16x128xf32>
    %cst_34 = arith.constant dense<0.000000e+00> : vector<16x128xf32>
    %118 = tpu.matmul %0, %116, %cst_34 {dimension_numbers = #tpu.dot_dimension_numbers<[1], [0], [0], [1], [0, 0, 1, 1], [], []>} : vector<16x16xf32>, vector<16x128xf32>, vector<16x128xf32> -> vector<16x128xf32>
    %119 = arith.addf %118, %117 : vector<16x128xf32>
    %120 = arith.addf %119, %7 : vector<16x128xf32>
    %121 = vector.extract_strided_slice %120 {offsets = [0, 0], sizes = [16, 96], strides = [1, 1]} : vector<16x128xf32> to vector<16x96xf32>
    %122 = arith.negf %121 : vector<16x96xf32>
    %123 = math.exp %122 : vector<16x96xf32>
    %cst_35 = arith.constant 1.000000e+00 : f32
    %124 = vector.broadcast %cst_35 : f32 to vector<16x96xf32>
    %125 = arith.addf %124, %123 : vector<16x96xf32>
    %126 = arith.divf %124, %125 : vector<16x96xf32>
    %127 = vector.extract_strided_slice %120 {offsets = [0, 96], sizes = [16, 32], strides = [1, 1]} : vector<16x128xf32> to vector<16x32xf32>
    %128 = math.tanh %127 : vector<16x32xf32>
    %129 = vector.extract_strided_slice %126 {offsets = [0, 0], sizes = [16, 32], strides = [1, 1]} : vector<16x96xf32> to vector<16x32xf32>
    %130 = vector.extract_strided_slice %126 {offsets = [0, 32], sizes = [16, 32], strides = [1, 1]} : vector<16x96xf32> to vector<16x32xf32>
    %131 = vector.extract_strided_slice %126 {offsets = [0, 64], sizes = [16, 32], strides = [1, 1]} : vector<16x96xf32> to vector<16x32xf32>
    %132 = arith.mulf %130, %86 : vector<16x32xf32>
    %133 = arith.mulf %129, %128 : vector<16x32xf32>
    %134 = arith.addf %132, %133 : vector<16x32xf32>
    %135 = math.tanh %134 : vector<16x32xf32>
    %136 = arith.mulf %131, %135 : vector<16x32xf32>
    %cst_36 = arith.constant dense<0.000000e+00> : vector<16x256xf32>
    %137 = tpu.matmul %136, %2, %cst_36 {dimension_numbers = #tpu.dot_dimension_numbers<[1], [0], [0], [1], [0, 0, 1, 1], [], []>} : vector<16x32xf32>, vector<32x256xf32>, vector<16x256xf32> -> vector<16x256xf32>
    %cst_37 = arith.constant dense<0.000000e+00> : vector<16x256xf32>
    %138 = tpu.matmul %112, %4, %cst_37 {dimension_numbers = #tpu.dot_dimension_numbers<[1], [0], [0], [1], [0, 0, 1, 1], [], []>} : vector<16x32xf32>, vector<32x256xf32>, vector<16x256xf32> -> vector<16x256xf32>
    %139 = arith.addf %137, %138 : vector<16x256xf32>
    %140 = vector.extract_strided_slice %139 {offsets = [0, 0], sizes = [16, 128], strides = [1, 1]} : vector<16x256xf32> to vector<16x128xf32>
    %141 = vector.extract_strided_slice %139 {offsets = [0, 128], sizes = [16, 128], strides = [1, 1]} : vector<16x256xf32> to vector<16x128xf32>
    %cst_38 = arith.constant dense<0.000000e+00> : vector<16x128xf32>
    %142 = tpu.matmul %0, %140, %cst_38 {dimension_numbers = #tpu.dot_dimension_numbers<[1], [0], [0], [1], [0, 0, 1, 1], [], []>} : vector<16x16xf32>, vector<16x128xf32>, vector<16x128xf32> -> vector<16x128xf32>
    %143 = arith.addf %142, %141 : vector<16x128xf32>
    %144 = arith.addf %143, %10 : vector<16x128xf32>
    %145 = vector.extract_strided_slice %144 {offsets = [0, 0], sizes = [16, 96], strides = [1, 1]} : vector<16x128xf32> to vector<16x96xf32>
    %146 = arith.negf %145 : vector<16x96xf32>
    %147 = math.exp %146 : vector<16x96xf32>
    %cst_39 = arith.constant 1.000000e+00 : f32
    %148 = vector.broadcast %cst_39 : f32 to vector<16x96xf32>
    %149 = arith.addf %148, %147 : vector<16x96xf32>
    %150 = arith.divf %148, %149 : vector<16x96xf32>
    %151 = vector.extract_strided_slice %144 {offsets = [0, 96], sizes = [16, 32], strides = [1, 1]} : vector<16x128xf32> to vector<16x32xf32>
    %152 = math.tanh %151 : vector<16x32xf32>
    %153 = vector.extract_strided_slice %150 {offsets = [0, 0], sizes = [16, 32], strides = [1, 1]} : vector<16x96xf32> to vector<16x32xf32>
    %154 = vector.extract_strided_slice %150 {offsets = [0, 32], sizes = [16, 32], strides = [1, 1]} : vector<16x96xf32> to vector<16x32xf32>
    %155 = vector.extract_strided_slice %150 {offsets = [0, 64], sizes = [16, 32], strides = [1, 1]} : vector<16x96xf32> to vector<16x32xf32>
    %156 = arith.mulf %154, %110 : vector<16x32xf32>
    %157 = arith.mulf %153, %152 : vector<16x32xf32>
    %158 = arith.addf %156, %157 : vector<16x32xf32>
    %159 = math.tanh %158 : vector<16x32xf32>
    %160 = arith.mulf %155, %159 : vector<16x32xf32>
    %161 = vector.extract_strided_slice %12 {offsets = [48, 0], sizes = [16, 256], strides = [1, 1]} : vector<128x256xf32> to vector<16x256xf32>
    %cst_40 = arith.constant dense<0.000000e+00> : vector<16x256xf32>
    %162 = tpu.matmul %136, %3, %cst_40 {dimension_numbers = #tpu.dot_dimension_numbers<[1], [0], [0], [1], [0, 0, 1, 1], [], []>} : vector<16x32xf32>, vector<32x256xf32>, vector<16x256xf32> -> vector<16x256xf32>
    %163 = arith.addf %161, %162 : vector<16x256xf32>
    %164 = vector.extract_strided_slice %163 {offsets = [0, 0], sizes = [16, 128], strides = [1, 1]} : vector<16x256xf32> to vector<16x128xf32>
    %165 = vector.extract_strided_slice %163 {offsets = [0, 128], sizes = [16, 128], strides = [1, 1]} : vector<16x256xf32> to vector<16x128xf32>
    %cst_41 = arith.constant dense<0.000000e+00> : vector<16x128xf32>
    %166 = tpu.matmul %0, %164, %cst_41 {dimension_numbers = #tpu.dot_dimension_numbers<[1], [0], [0], [1], [0, 0, 1, 1], [], []>} : vector<16x16xf32>, vector<16x128xf32>, vector<16x128xf32> -> vector<16x128xf32>
    %167 = arith.addf %166, %165 : vector<16x128xf32>
    %168 = arith.addf %167, %7 : vector<16x128xf32>
    %169 = vector.extract_strided_slice %168 {offsets = [0, 0], sizes = [16, 96], strides = [1, 1]} : vector<16x128xf32> to vector<16x96xf32>
    %170 = arith.negf %169 : vector<16x96xf32>
    %171 = math.exp %170 : vector<16x96xf32>
    %cst_42 = arith.constant 1.000000e+00 : f32
    %172 = vector.broadcast %cst_42 : f32 to vector<16x96xf32>
    %173 = arith.addf %172, %171 : vector<16x96xf32>
    %174 = arith.divf %172, %173 : vector<16x96xf32>
    %175 = vector.extract_strided_slice %168 {offsets = [0, 96], sizes = [16, 32], strides = [1, 1]} : vector<16x128xf32> to vector<16x32xf32>
    %176 = math.tanh %175 : vector<16x32xf32>
    %177 = vector.extract_strided_slice %174 {offsets = [0, 0], sizes = [16, 32], strides = [1, 1]} : vector<16x96xf32> to vector<16x32xf32>
    %178 = vector.extract_strided_slice %174 {offsets = [0, 32], sizes = [16, 32], strides = [1, 1]} : vector<16x96xf32> to vector<16x32xf32>
    %179 = vector.extract_strided_slice %174 {offsets = [0, 64], sizes = [16, 32], strides = [1, 1]} : vector<16x96xf32> to vector<16x32xf32>
    %180 = arith.mulf %178, %134 : vector<16x32xf32>
    %181 = arith.mulf %177, %176 : vector<16x32xf32>
    %182 = arith.addf %180, %181 : vector<16x32xf32>
    %183 = math.tanh %182 : vector<16x32xf32>
    %184 = arith.mulf %179, %183 : vector<16x32xf32>
    %cst_43 = arith.constant dense<0.000000e+00> : vector<16x256xf32>
    %185 = tpu.matmul %184, %2, %cst_43 {dimension_numbers = #tpu.dot_dimension_numbers<[1], [0], [0], [1], [0, 0, 1, 1], [], []>} : vector<16x32xf32>, vector<32x256xf32>, vector<16x256xf32> -> vector<16x256xf32>
    %cst_44 = arith.constant dense<0.000000e+00> : vector<16x256xf32>
    %186 = tpu.matmul %160, %4, %cst_44 {dimension_numbers = #tpu.dot_dimension_numbers<[1], [0], [0], [1], [0, 0, 1, 1], [], []>} : vector<16x32xf32>, vector<32x256xf32>, vector<16x256xf32> -> vector<16x256xf32>
    %187 = arith.addf %185, %186 : vector<16x256xf32>
    %188 = vector.extract_strided_slice %187 {offsets = [0, 0], sizes = [16, 128], strides = [1, 1]} : vector<16x256xf32> to vector<16x128xf32>
    %189 = vector.extract_strided_slice %187 {offsets = [0, 128], sizes = [16, 128], strides = [1, 1]} : vector<16x256xf32> to vector<16x128xf32>
    %cst_45 = arith.constant dense<0.000000e+00> : vector<16x128xf32>
    %190 = tpu.matmul %0, %188, %cst_45 {dimension_numbers = #tpu.dot_dimension_numbers<[1], [0], [0], [1], [0, 0, 1, 1], [], []>} : vector<16x16xf32>, vector<16x128xf32>, vector<16x128xf32> -> vector<16x128xf32>
    %191 = arith.addf %190, %189 : vector<16x128xf32>
    %192 = arith.addf %191, %10 : vector<16x128xf32>
    %193 = vector.extract_strided_slice %192 {offsets = [0, 0], sizes = [16, 96], strides = [1, 1]} : vector<16x128xf32> to vector<16x96xf32>
    %194 = arith.negf %193 : vector<16x96xf32>
    %195 = math.exp %194 : vector<16x96xf32>
    %cst_46 = arith.constant 1.000000e+00 : f32
    %196 = vector.broadcast %cst_46 : f32 to vector<16x96xf32>
    %197 = arith.addf %196, %195 : vector<16x96xf32>
    %198 = arith.divf %196, %197 : vector<16x96xf32>
    %199 = vector.extract_strided_slice %192 {offsets = [0, 96], sizes = [16, 32], strides = [1, 1]} : vector<16x128xf32> to vector<16x32xf32>
    %200 = math.tanh %199 : vector<16x32xf32>
    %201 = vector.extract_strided_slice %198 {offsets = [0, 0], sizes = [16, 32], strides = [1, 1]} : vector<16x96xf32> to vector<16x32xf32>
    %202 = vector.extract_strided_slice %198 {offsets = [0, 32], sizes = [16, 32], strides = [1, 1]} : vector<16x96xf32> to vector<16x32xf32>
    %203 = vector.extract_strided_slice %198 {offsets = [0, 64], sizes = [16, 32], strides = [1, 1]} : vector<16x96xf32> to vector<16x32xf32>
    %204 = arith.mulf %202, %158 : vector<16x32xf32>
    %205 = arith.mulf %201, %200 : vector<16x32xf32>
    %206 = arith.addf %204, %205 : vector<16x32xf32>
    %207 = math.tanh %206 : vector<16x32xf32>
    %208 = arith.mulf %203, %207 : vector<16x32xf32>
    %209 = vector.extract_strided_slice %12 {offsets = [64, 0], sizes = [16, 256], strides = [1, 1]} : vector<128x256xf32> to vector<16x256xf32>
    %cst_47 = arith.constant dense<0.000000e+00> : vector<16x256xf32>
    %210 = tpu.matmul %184, %3, %cst_47 {dimension_numbers = #tpu.dot_dimension_numbers<[1], [0], [0], [1], [0, 0, 1, 1], [], []>} : vector<16x32xf32>, vector<32x256xf32>, vector<16x256xf32> -> vector<16x256xf32>
    %211 = arith.addf %209, %210 : vector<16x256xf32>
    %212 = vector.extract_strided_slice %211 {offsets = [0, 0], sizes = [16, 128], strides = [1, 1]} : vector<16x256xf32> to vector<16x128xf32>
    %213 = vector.extract_strided_slice %211 {offsets = [0, 128], sizes = [16, 128], strides = [1, 1]} : vector<16x256xf32> to vector<16x128xf32>
    %cst_48 = arith.constant dense<0.000000e+00> : vector<16x128xf32>
    %214 = tpu.matmul %0, %212, %cst_48 {dimension_numbers = #tpu.dot_dimension_numbers<[1], [0], [0], [1], [0, 0, 1, 1], [], []>} : vector<16x16xf32>, vector<16x128xf32>, vector<16x128xf32> -> vector<16x128xf32>
    %215 = arith.addf %214, %213 : vector<16x128xf32>
    %216 = arith.addf %215, %7 : vector<16x128xf32>
    %217 = vector.extract_strided_slice %216 {offsets = [0, 0], sizes = [16, 96], strides = [1, 1]} : vector<16x128xf32> to vector<16x96xf32>
    %218 = arith.negf %217 : vector<16x96xf32>
    %219 = math.exp %218 : vector<16x96xf32>
    %cst_49 = arith.constant 1.000000e+00 : f32
    %220 = vector.broadcast %cst_49 : f32 to vector<16x96xf32>
    %221 = arith.addf %220, %219 : vector<16x96xf32>
    %222 = arith.divf %220, %221 : vector<16x96xf32>
    %223 = vector.extract_strided_slice %216 {offsets = [0, 96], sizes = [16, 32], strides = [1, 1]} : vector<16x128xf32> to vector<16x32xf32>
    %224 = math.tanh %223 : vector<16x32xf32>
    %225 = vector.extract_strided_slice %222 {offsets = [0, 0], sizes = [16, 32], strides = [1, 1]} : vector<16x96xf32> to vector<16x32xf32>
    %226 = vector.extract_strided_slice %222 {offsets = [0, 32], sizes = [16, 32], strides = [1, 1]} : vector<16x96xf32> to vector<16x32xf32>
    %227 = vector.extract_strided_slice %222 {offsets = [0, 64], sizes = [16, 32], strides = [1, 1]} : vector<16x96xf32> to vector<16x32xf32>
    %228 = arith.mulf %226, %182 : vector<16x32xf32>
    %229 = arith.mulf %225, %224 : vector<16x32xf32>
    %230 = arith.addf %228, %229 : vector<16x32xf32>
    %231 = math.tanh %230 : vector<16x32xf32>
    %232 = arith.mulf %227, %231 : vector<16x32xf32>
    %cst_50 = arith.constant dense<0.000000e+00> : vector<16x256xf32>
    %233 = tpu.matmul %232, %2, %cst_50 {dimension_numbers = #tpu.dot_dimension_numbers<[1], [0], [0], [1], [0, 0, 1, 1], [], []>} : vector<16x32xf32>, vector<32x256xf32>, vector<16x256xf32> -> vector<16x256xf32>
    %cst_51 = arith.constant dense<0.000000e+00> : vector<16x256xf32>
    %234 = tpu.matmul %208, %4, %cst_51 {dimension_numbers = #tpu.dot_dimension_numbers<[1], [0], [0], [1], [0, 0, 1, 1], [], []>} : vector<16x32xf32>, vector<32x256xf32>, vector<16x256xf32> -> vector<16x256xf32>
    %235 = arith.addf %233, %234 : vector<16x256xf32>
    %236 = vector.extract_strided_slice %235 {offsets = [0, 0], sizes = [16, 128], strides = [1, 1]} : vector<16x256xf32> to vector<16x128xf32>
    %237 = vector.extract_strided_slice %235 {offsets = [0, 128], sizes = [16, 128], strides = [1, 1]} : vector<16x256xf32> to vector<16x128xf32>
    %cst_52 = arith.constant dense<0.000000e+00> : vector<16x128xf32>
    %238 = tpu.matmul %0, %236, %cst_52 {dimension_numbers = #tpu.dot_dimension_numbers<[1], [0], [0], [1], [0, 0, 1, 1], [], []>} : vector<16x16xf32>, vector<16x128xf32>, vector<16x128xf32> -> vector<16x128xf32>
    %239 = arith.addf %238, %237 : vector<16x128xf32>
    %240 = arith.addf %239, %10 : vector<16x128xf32>
    %241 = vector.extract_strided_slice %240 {offsets = [0, 0], sizes = [16, 96], strides = [1, 1]} : vector<16x128xf32> to vector<16x96xf32>
    %242 = arith.negf %241 : vector<16x96xf32>
    %243 = math.exp %242 : vector<16x96xf32>
    %cst_53 = arith.constant 1.000000e+00 : f32
    %244 = vector.broadcast %cst_53 : f32 to vector<16x96xf32>
    %245 = arith.addf %244, %243 : vector<16x96xf32>
    %246 = arith.divf %244, %245 : vector<16x96xf32>
    %247 = vector.extract_strided_slice %240 {offsets = [0, 96], sizes = [16, 32], strides = [1, 1]} : vector<16x128xf32> to vector<16x32xf32>
    %248 = math.tanh %247 : vector<16x32xf32>
    %249 = vector.extract_strided_slice %246 {offsets = [0, 0], sizes = [16, 32], strides = [1, 1]} : vector<16x96xf32> to vector<16x32xf32>
    %250 = vector.extract_strided_slice %246 {offsets = [0, 32], sizes = [16, 32], strides = [1, 1]} : vector<16x96xf32> to vector<16x32xf32>
    %251 = vector.extract_strided_slice %246 {offsets = [0, 64], sizes = [16, 32], strides = [1, 1]} : vector<16x96xf32> to vector<16x32xf32>
    %252 = arith.mulf %250, %206 : vector<16x32xf32>
    %253 = arith.mulf %249, %248 : vector<16x32xf32>
    %254 = arith.addf %252, %253 : vector<16x32xf32>
    %255 = math.tanh %254 : vector<16x32xf32>
    %256 = arith.mulf %251, %255 : vector<16x32xf32>
    %257 = vector.extract_strided_slice %12 {offsets = [80, 0], sizes = [16, 256], strides = [1, 1]} : vector<128x256xf32> to vector<16x256xf32>
    %cst_54 = arith.constant dense<0.000000e+00> : vector<16x256xf32>
    %258 = tpu.matmul %232, %3, %cst_54 {dimension_numbers = #tpu.dot_dimension_numbers<[1], [0], [0], [1], [0, 0, 1, 1], [], []>} : vector<16x32xf32>, vector<32x256xf32>, vector<16x256xf32> -> vector<16x256xf32>
    %259 = arith.addf %257, %258 : vector<16x256xf32>
    %260 = vector.extract_strided_slice %259 {offsets = [0, 0], sizes = [16, 128], strides = [1, 1]} : vector<16x256xf32> to vector<16x128xf32>
    %261 = vector.extract_strided_slice %259 {offsets = [0, 128], sizes = [16, 128], strides = [1, 1]} : vector<16x256xf32> to vector<16x128xf32>
    %cst_55 = arith.constant dense<0.000000e+00> : vector<16x128xf32>
    %262 = tpu.matmul %0, %260, %cst_55 {dimension_numbers = #tpu.dot_dimension_numbers<[1], [0], [0], [1], [0, 0, 1, 1], [], []>} : vector<16x16xf32>, vector<16x128xf32>, vector<16x128xf32> -> vector<16x128xf32>
    %263 = arith.addf %262, %261 : vector<16x128xf32>
    %264 = arith.addf %263, %7 : vector<16x128xf32>
    %265 = vector.extract_strided_slice %264 {offsets = [0, 0], sizes = [16, 96], strides = [1, 1]} : vector<16x128xf32> to vector<16x96xf32>
    %266 = arith.negf %265 : vector<16x96xf32>
    %267 = math.exp %266 : vector<16x96xf32>
    %cst_56 = arith.constant 1.000000e+00 : f32
    %268 = vector.broadcast %cst_56 : f32 to vector<16x96xf32>
    %269 = arith.addf %268, %267 : vector<16x96xf32>
    %270 = arith.divf %268, %269 : vector<16x96xf32>
    %271 = vector.extract_strided_slice %264 {offsets = [0, 96], sizes = [16, 32], strides = [1, 1]} : vector<16x128xf32> to vector<16x32xf32>
    %272 = math.tanh %271 : vector<16x32xf32>
    %273 = vector.extract_strided_slice %270 {offsets = [0, 0], sizes = [16, 32], strides = [1, 1]} : vector<16x96xf32> to vector<16x32xf32>
    %274 = vector.extract_strided_slice %270 {offsets = [0, 32], sizes = [16, 32], strides = [1, 1]} : vector<16x96xf32> to vector<16x32xf32>
    %275 = vector.extract_strided_slice %270 {offsets = [0, 64], sizes = [16, 32], strides = [1, 1]} : vector<16x96xf32> to vector<16x32xf32>
    %276 = arith.mulf %274, %230 : vector<16x32xf32>
    %277 = arith.mulf %273, %272 : vector<16x32xf32>
    %278 = arith.addf %276, %277 : vector<16x32xf32>
    %279 = math.tanh %278 : vector<16x32xf32>
    %280 = arith.mulf %275, %279 : vector<16x32xf32>
    %cst_57 = arith.constant dense<0.000000e+00> : vector<16x256xf32>
    %281 = tpu.matmul %280, %2, %cst_57 {dimension_numbers = #tpu.dot_dimension_numbers<[1], [0], [0], [1], [0, 0, 1, 1], [], []>} : vector<16x32xf32>, vector<32x256xf32>, vector<16x256xf32> -> vector<16x256xf32>
    %cst_58 = arith.constant dense<0.000000e+00> : vector<16x256xf32>
    %282 = tpu.matmul %256, %4, %cst_58 {dimension_numbers = #tpu.dot_dimension_numbers<[1], [0], [0], [1], [0, 0, 1, 1], [], []>} : vector<16x32xf32>, vector<32x256xf32>, vector<16x256xf32> -> vector<16x256xf32>
    %283 = arith.addf %281, %282 : vector<16x256xf32>
    %284 = vector.extract_strided_slice %283 {offsets = [0, 0], sizes = [16, 128], strides = [1, 1]} : vector<16x256xf32> to vector<16x128xf32>
    %285 = vector.extract_strided_slice %283 {offsets = [0, 128], sizes = [16, 128], strides = [1, 1]} : vector<16x256xf32> to vector<16x128xf32>
    %cst_59 = arith.constant dense<0.000000e+00> : vector<16x128xf32>
    %286 = tpu.matmul %0, %284, %cst_59 {dimension_numbers = #tpu.dot_dimension_numbers<[1], [0], [0], [1], [0, 0, 1, 1], [], []>} : vector<16x16xf32>, vector<16x128xf32>, vector<16x128xf32> -> vector<16x128xf32>
    %287 = arith.addf %286, %285 : vector<16x128xf32>
    %288 = arith.addf %287, %10 : vector<16x128xf32>
    %289 = vector.extract_strided_slice %288 {offsets = [0, 0], sizes = [16, 96], strides = [1, 1]} : vector<16x128xf32> to vector<16x96xf32>
    %290 = arith.negf %289 : vector<16x96xf32>
    %291 = math.exp %290 : vector<16x96xf32>
    %cst_60 = arith.constant 1.000000e+00 : f32
    %292 = vector.broadcast %cst_60 : f32 to vector<16x96xf32>
    %293 = arith.addf %292, %291 : vector<16x96xf32>
    %294 = arith.divf %292, %293 : vector<16x96xf32>
    %295 = vector.extract_strided_slice %288 {offsets = [0, 96], sizes = [16, 32], strides = [1, 1]} : vector<16x128xf32> to vector<16x32xf32>
    %296 = math.tanh %295 : vector<16x32xf32>
    %297 = vector.extract_strided_slice %294 {offsets = [0, 0], sizes = [16, 32], strides = [1, 1]} : vector<16x96xf32> to vector<16x32xf32>
    %298 = vector.extract_strided_slice %294 {offsets = [0, 32], sizes = [16, 32], strides = [1, 1]} : vector<16x96xf32> to vector<16x32xf32>
    %299 = vector.extract_strided_slice %294 {offsets = [0, 64], sizes = [16, 32], strides = [1, 1]} : vector<16x96xf32> to vector<16x32xf32>
    %300 = arith.mulf %298, %254 : vector<16x32xf32>
    %301 = arith.mulf %297, %296 : vector<16x32xf32>
    %302 = arith.addf %300, %301 : vector<16x32xf32>
    %303 = math.tanh %302 : vector<16x32xf32>
    %304 = arith.mulf %299, %303 : vector<16x32xf32>
    %305 = vector.extract_strided_slice %12 {offsets = [96, 0], sizes = [16, 256], strides = [1, 1]} : vector<128x256xf32> to vector<16x256xf32>
    %cst_61 = arith.constant dense<0.000000e+00> : vector<16x256xf32>
    %306 = tpu.matmul %280, %3, %cst_61 {dimension_numbers = #tpu.dot_dimension_numbers<[1], [0], [0], [1], [0, 0, 1, 1], [], []>} : vector<16x32xf32>, vector<32x256xf32>, vector<16x256xf32> -> vector<16x256xf32>
    %307 = arith.addf %305, %306 : vector<16x256xf32>
    %308 = vector.extract_strided_slice %307 {offsets = [0, 0], sizes = [16, 128], strides = [1, 1]} : vector<16x256xf32> to vector<16x128xf32>
    %309 = vector.extract_strided_slice %307 {offsets = [0, 128], sizes = [16, 128], strides = [1, 1]} : vector<16x256xf32> to vector<16x128xf32>
    %cst_62 = arith.constant dense<0.000000e+00> : vector<16x128xf32>
    %310 = tpu.matmul %0, %308, %cst_62 {dimension_numbers = #tpu.dot_dimension_numbers<[1], [0], [0], [1], [0, 0, 1, 1], [], []>} : vector<16x16xf32>, vector<16x128xf32>, vector<16x128xf32> -> vector<16x128xf32>
    %311 = arith.addf %310, %309 : vector<16x128xf32>
    %312 = arith.addf %311, %7 : vector<16x128xf32>
    %313 = vector.extract_strided_slice %312 {offsets = [0, 0], sizes = [16, 96], strides = [1, 1]} : vector<16x128xf32> to vector<16x96xf32>
    %314 = arith.negf %313 : vector<16x96xf32>
    %315 = math.exp %314 : vector<16x96xf32>
    %cst_63 = arith.constant 1.000000e+00 : f32
    %316 = vector.broadcast %cst_63 : f32 to vector<16x96xf32>
    %317 = arith.addf %316, %315 : vector<16x96xf32>
    %318 = arith.divf %316, %317 : vector<16x96xf32>
    %319 = vector.extract_strided_slice %312 {offsets = [0, 96], sizes = [16, 32], strides = [1, 1]} : vector<16x128xf32> to vector<16x32xf32>
    %320 = math.tanh %319 : vector<16x32xf32>
    %321 = vector.extract_strided_slice %318 {offsets = [0, 0], sizes = [16, 32], strides = [1, 1]} : vector<16x96xf32> to vector<16x32xf32>
    %322 = vector.extract_strided_slice %318 {offsets = [0, 32], sizes = [16, 32], strides = [1, 1]} : vector<16x96xf32> to vector<16x32xf32>
    %323 = vector.extract_strided_slice %318 {offsets = [0, 64], sizes = [16, 32], strides = [1, 1]} : vector<16x96xf32> to vector<16x32xf32>
    %324 = arith.mulf %322, %278 : vector<16x32xf32>
    %325 = arith.mulf %321, %320 : vector<16x32xf32>
    %326 = arith.addf %324, %325 : vector<16x32xf32>
    %327 = math.tanh %326 : vector<16x32xf32>
    %328 = arith.mulf %323, %327 : vector<16x32xf32>
    %cst_64 = arith.constant dense<0.000000e+00> : vector<16x256xf32>
    %329 = tpu.matmul %328, %2, %cst_64 {dimension_numbers = #tpu.dot_dimension_numbers<[1], [0], [0], [1], [0, 0, 1, 1], [], []>} : vector<16x32xf32>, vector<32x256xf32>, vector<16x256xf32> -> vector<16x256xf32>
    %cst_65 = arith.constant dense<0.000000e+00> : vector<16x256xf32>
    %330 = tpu.matmul %304, %4, %cst_65 {dimension_numbers = #tpu.dot_dimension_numbers<[1], [0], [0], [1], [0, 0, 1, 1], [], []>} : vector<16x32xf32>, vector<32x256xf32>, vector<16x256xf32> -> vector<16x256xf32>
    %331 = arith.addf %329, %330 : vector<16x256xf32>
    %332 = vector.extract_strided_slice %331 {offsets = [0, 0], sizes = [16, 128], strides = [1, 1]} : vector<16x256xf32> to vector<16x128xf32>
    %333 = vector.extract_strided_slice %331 {offsets = [0, 128], sizes = [16, 128], strides = [1, 1]} : vector<16x256xf32> to vector<16x128xf32>
    %cst_66 = arith.constant dense<0.000000e+00> : vector<16x128xf32>
    %334 = tpu.matmul %0, %332, %cst_66 {dimension_numbers = #tpu.dot_dimension_numbers<[1], [0], [0], [1], [0, 0, 1, 1], [], []>} : vector<16x16xf32>, vector<16x128xf32>, vector<16x128xf32> -> vector<16x128xf32>
    %335 = arith.addf %334, %333 : vector<16x128xf32>
    %336 = arith.addf %335, %10 : vector<16x128xf32>
    %337 = vector.extract_strided_slice %336 {offsets = [0, 0], sizes = [16, 96], strides = [1, 1]} : vector<16x128xf32> to vector<16x96xf32>
    %338 = arith.negf %337 : vector<16x96xf32>
    %339 = math.exp %338 : vector<16x96xf32>
    %cst_67 = arith.constant 1.000000e+00 : f32
    %340 = vector.broadcast %cst_67 : f32 to vector<16x96xf32>
    %341 = arith.addf %340, %339 : vector<16x96xf32>
    %342 = arith.divf %340, %341 : vector<16x96xf32>
    %343 = vector.extract_strided_slice %336 {offsets = [0, 96], sizes = [16, 32], strides = [1, 1]} : vector<16x128xf32> to vector<16x32xf32>
    %344 = math.tanh %343 : vector<16x32xf32>
    %345 = vector.extract_strided_slice %342 {offsets = [0, 0], sizes = [16, 32], strides = [1, 1]} : vector<16x96xf32> to vector<16x32xf32>
    %346 = vector.extract_strided_slice %342 {offsets = [0, 32], sizes = [16, 32], strides = [1, 1]} : vector<16x96xf32> to vector<16x32xf32>
    %347 = vector.extract_strided_slice %342 {offsets = [0, 64], sizes = [16, 32], strides = [1, 1]} : vector<16x96xf32> to vector<16x32xf32>
    %348 = arith.mulf %346, %302 : vector<16x32xf32>
    %349 = arith.mulf %345, %344 : vector<16x32xf32>
    %350 = arith.addf %348, %349 : vector<16x32xf32>
    %351 = math.tanh %350 : vector<16x32xf32>
    %352 = arith.mulf %347, %351 : vector<16x32xf32>
    %353 = vector.extract_strided_slice %12 {offsets = [112, 0], sizes = [16, 256], strides = [1, 1]} : vector<128x256xf32> to vector<16x256xf32>
    %cst_68 = arith.constant dense<0.000000e+00> : vector<16x256xf32>
    %354 = tpu.matmul %328, %3, %cst_68 {dimension_numbers = #tpu.dot_dimension_numbers<[1], [0], [0], [1], [0, 0, 1, 1], [], []>} : vector<16x32xf32>, vector<32x256xf32>, vector<16x256xf32> -> vector<16x256xf32>
    %355 = arith.addf %353, %354 : vector<16x256xf32>
    %356 = vector.extract_strided_slice %355 {offsets = [0, 0], sizes = [16, 128], strides = [1, 1]} : vector<16x256xf32> to vector<16x128xf32>
    %357 = vector.extract_strided_slice %355 {offsets = [0, 128], sizes = [16, 128], strides = [1, 1]} : vector<16x256xf32> to vector<16x128xf32>
    %cst_69 = arith.constant dense<0.000000e+00> : vector<16x128xf32>
    %358 = tpu.matmul %0, %356, %cst_69 {dimension_numbers = #tpu.dot_dimension_numbers<[1], [0], [0], [1], [0, 0, 1, 1], [], []>} : vector<16x16xf32>, vector<16x128xf32>, vector<16x128xf32> -> vector<16x128xf32>
    %359 = arith.addf %358, %357 : vector<16x128xf32>
    %360 = arith.addf %359, %7 : vector<16x128xf32>
    %361 = vector.extract_strided_slice %360 {offsets = [0, 0], sizes = [16, 96], strides = [1, 1]} : vector<16x128xf32> to vector<16x96xf32>
    %362 = arith.negf %361 : vector<16x96xf32>
    %363 = math.exp %362 : vector<16x96xf32>
    %cst_70 = arith.constant 1.000000e+00 : f32
    %364 = vector.broadcast %cst_70 : f32 to vector<16x96xf32>
    %365 = arith.addf %364, %363 : vector<16x96xf32>
    %366 = arith.divf %364, %365 : vector<16x96xf32>
    %367 = vector.extract_strided_slice %360 {offsets = [0, 96], sizes = [16, 32], strides = [1, 1]} : vector<16x128xf32> to vector<16x32xf32>
    %368 = math.tanh %367 : vector<16x32xf32>
    %369 = vector.extract_strided_slice %366 {offsets = [0, 0], sizes = [16, 32], strides = [1, 1]} : vector<16x96xf32> to vector<16x32xf32>
    %370 = vector.extract_strided_slice %366 {offsets = [0, 32], sizes = [16, 32], strides = [1, 1]} : vector<16x96xf32> to vector<16x32xf32>
    %371 = vector.extract_strided_slice %366 {offsets = [0, 64], sizes = [16, 32], strides = [1, 1]} : vector<16x96xf32> to vector<16x32xf32>
    %372 = arith.mulf %370, %326 : vector<16x32xf32>
    %373 = arith.mulf %369, %368 : vector<16x32xf32>
    %374 = arith.addf %372, %373 : vector<16x32xf32>
    %375 = math.tanh %374 : vector<16x32xf32>
    %376 = arith.mulf %371, %375 : vector<16x32xf32>
    %cst_71 = arith.constant dense<0.000000e+00> : vector<16x256xf32>
    %377 = tpu.matmul %376, %2, %cst_71 {dimension_numbers = #tpu.dot_dimension_numbers<[1], [0], [0], [1], [0, 0, 1, 1], [], []>} : vector<16x32xf32>, vector<32x256xf32>, vector<16x256xf32> -> vector<16x256xf32>
    %cst_72 = arith.constant dense<0.000000e+00> : vector<16x256xf32>
    %378 = tpu.matmul %352, %4, %cst_72 {dimension_numbers = #tpu.dot_dimension_numbers<[1], [0], [0], [1], [0, 0, 1, 1], [], []>} : vector<16x32xf32>, vector<32x256xf32>, vector<16x256xf32> -> vector<16x256xf32>
    %379 = arith.addf %377, %378 : vector<16x256xf32>
    %380 = vector.extract_strided_slice %379 {offsets = [0, 0], sizes = [16, 128], strides = [1, 1]} : vector<16x256xf32> to vector<16x128xf32>
    %381 = vector.extract_strided_slice %379 {offsets = [0, 128], sizes = [16, 128], strides = [1, 1]} : vector<16x256xf32> to vector<16x128xf32>
    %cst_73 = arith.constant dense<0.000000e+00> : vector<16x128xf32>
    %382 = tpu.matmul %0, %380, %cst_73 {dimension_numbers = #tpu.dot_dimension_numbers<[1], [0], [0], [1], [0, 0, 1, 1], [], []>} : vector<16x16xf32>, vector<16x128xf32>, vector<16x128xf32> -> vector<16x128xf32>
    %383 = arith.addf %382, %381 : vector<16x128xf32>
    %384 = arith.addf %383, %10 : vector<16x128xf32>
    %385 = vector.extract_strided_slice %384 {offsets = [0, 0], sizes = [16, 96], strides = [1, 1]} : vector<16x128xf32> to vector<16x96xf32>
    %386 = arith.negf %385 : vector<16x96xf32>
    %387 = math.exp %386 : vector<16x96xf32>
    %cst_74 = arith.constant 1.000000e+00 : f32
    %388 = vector.broadcast %cst_74 : f32 to vector<16x96xf32>
    %389 = arith.addf %388, %387 : vector<16x96xf32>
    %390 = arith.divf %388, %389 : vector<16x96xf32>
    %391 = vector.extract_strided_slice %384 {offsets = [0, 96], sizes = [16, 32], strides = [1, 1]} : vector<16x128xf32> to vector<16x32xf32>
    %392 = math.tanh %391 : vector<16x32xf32>
    %393 = vector.extract_strided_slice %390 {offsets = [0, 0], sizes = [16, 32], strides = [1, 1]} : vector<16x96xf32> to vector<16x32xf32>
    %394 = vector.extract_strided_slice %390 {offsets = [0, 32], sizes = [16, 32], strides = [1, 1]} : vector<16x96xf32> to vector<16x32xf32>
    %395 = vector.extract_strided_slice %390 {offsets = [0, 64], sizes = [16, 32], strides = [1, 1]} : vector<16x96xf32> to vector<16x32xf32>
    %396 = arith.mulf %394, %350 : vector<16x32xf32>
    %397 = arith.mulf %393, %392 : vector<16x32xf32>
    %398 = arith.addf %396, %397 : vector<16x32xf32>
    %399 = math.tanh %398 : vector<16x32xf32>
    %400 = arith.mulf %395, %399 : vector<16x32xf32>
    %c0_75 = arith.constant 0 : index
    %c0_76 = arith.constant 0 : index
    %401 = vector.load %arg8[%c0_75, %c0_76] : memref<32x128xf32, #tpu.memory_space<vmem>>, vector<32x128xf32>
    %cst_77 = arith.constant dense<0.000000e+00> : vector<16x128xf32>
    %402 = tpu.matmul %400, %401, %cst_77 {dimension_numbers = #tpu.dot_dimension_numbers<[1], [0], [0], [1], [0, 0, 1, 1], [], []>} : vector<16x32xf32>, vector<32x128xf32>, vector<16x128xf32> -> vector<16x128xf32>
    %c0_78 = arith.constant 0 : index
    %c0_79 = arith.constant 0 : index
    %403 = vector.load %arg9[%c0_78, %c0_79] : memref<1x128xf32, #tpu.memory_space<vmem>>, vector<1x128xf32>
    %404 = vector.shape_cast %403 : vector<1x128xf32> to vector<1x128xf32>
    %405 = vector.broadcast %404 : vector<1x128xf32> to vector<16x128xf32>
    %406 = arith.addf %402, %405 : vector<16x128xf32>
    %c0_80 = arith.constant 0 : index
    %c0_81 = arith.constant 0 : index
    %407 = vector.load %arg10[%c0_80, %c0_81] : memref<16x128xf32, #tpu.memory_space<vmem>>, vector<16x128xf32>
    tpu.vector_store %arg10[%c0_80, %c0_81], %406 {strides = array<i32>} : memref<16x128xf32, #tpu.memory_space<vmem>>, vector<16x128xf32>,
    return
  }
}

</mosaic_0001>

<llo_original>
// kernel: tpu_custom_call.1
$region0: #{tpu_custom_call.1}
  #allocation0 [shape = 'u32[]', space=smem, size = 0x4, offset = 0x4, fixed_abs, tag = 'smem constant byte address 0x4 - core index']
  #allocation1 [shape = 'u32[72,128]{1,0:T(1,128)}', space=vmem, size = 0x9000, scoped, tag = 'internal scratch']
  %s0 = inlined_call_operand.vmem [shape: f32[128,4], index: 0, kind: input, shape index: {}]
  %s1 = inlined_call_operand.hbm [shape: f32[16,16], index: 1, kind: input, shape index: {}]
  %s2 = inlined_call_operand.hbm [shape: f32[4,256], index: 2, kind: input, shape index: {}]
  %s3 = inlined_call_operand.vmem [shape: f32[32,256], index: 3, kind: input, shape index: {}]
  %s4 = inlined_call_operand.vmem [shape: f32[1,128], index: 4, kind: input, shape index: {}]
  %s5 = inlined_call_operand.vmem [shape: f32[32,256], index: 5, kind: input, shape index: {}]
  %s6 = inlined_call_operand.hbm [shape: f32[32,256], index: 6, kind: input, shape index: {}]
  %s7 = inlined_call_operand.vmem [shape: f32[1,128], index: 7, kind: input, shape index: {}]
  %s8 = inlined_call_operand.hbm [shape: f32[32,128], index: 8, kind: input, shape index: {}]
  %s9 = inlined_call_operand.vmem [shape: f32[1,128], index: 9, kind: input, shape index: {}]
  %s10 = inlined_call_operand.hbm [shape: f32[16,128], index: 10, kind: output, shape index: {}]
  %s11 = sld [smem:[#allocation0]]
  $region66: #{tpu_custom_call.1} parent=0
    _
  %s13 = ssub.s32 1, %s11
  %s14 = scalar_select 0, %s13, %s11
  $region1: #{tpu_custom_call.1} parent=0
    #allocation2 [shape = 'u8[8192]{0}', space=vmem, size = 0x2000, scoped, tag = 'input window, operand 1, single buffered']
    #allocation3 [shape = 's32[1]{0}', space=sflag, size = 0x4, scoped, tag = 'scoped memory for tpu_custom_call.1']
    #allocation4 [shape = 's32[1]{0}', space=sflag, size = 0x4, scoped, tag = 'scoped memory for tpu_custom_call.1']
    #allocation5 [shape = 'u8[4096]{0}', space=vmem, size = 0x1000, scoped, tag = 'input window, operand 2, single buffered']
    #allocation6 [shape = 's32[1]{0}', space=sflag, size = 0x4, scoped, tag = 'scoped memory for tpu_custom_call.1']
    #allocation7 [shape = 'u8[32768]{0}', space=vmem, size = 0x8000, scoped, tag = 'input window, operand 6, single buffered']
    #allocation8 [shape = 'u8[16384]{0}', space=vmem, size = 0x4000, scoped, tag = 'input window, operand 8, single buffered']
    #allocation9 [shape = 's32[1]{0}', space=sflag, size = 0x4, scoped, tag = 'scoped memory for tpu_custom_call.1']
    #allocation10 [shape = 'u8[8192]{0}', space=vmem, size = 0x2000, scoped, tag = 'output window, operand 0, single buffered']
    %15 = vsyncpa [#allocation3], 0
    %16 = vsyncpa [#allocation6], 0
    %17 = vsyncpa [#allocation9], 0
    %18 = vsyncpa [#allocation4], 0
    // Predicated region
    $region2: #{tpu_custom_call.1} parent=1 // pred_check
      _
    $region3: #{tpu_custom_call.1} parent=1 // pred_check_branch
      %20 = sbr.rel (0) target = $region5
    $region4: #{tpu_custom_call.1} parent=1 // pred_region
      _
    $region5: #{tpu_custom_call.1} parent=1 // pred_fallthru
      _
    // Predicated region
    $region6: #{tpu_custom_call.1} parent=1 // pred_check
      _
    $region7: #{tpu_custom_call.1} parent=1 // pred_check_branch
      %22 = sbr.rel (0) target = $region9
    $region8: #{tpu_custom_call.1} parent=1 // pred_region
      %24 = vsyncadd [#allocation3], 0
      %s25 = sshll.u32 %s1, 4
      %s26 = int_to_ptr.hbm [resolvable:$true] %s25
      %s27 = sshll.u32 [#allocation2], 4
      %s28 = int_to_ptr.vmem [resolvable:$true] %s27
      %33 = dma.hbm_to_vmem [thread:$0]  %s26, 256, %s28, [#allocation3], 128, 128, 8
    $region9: #{tpu_custom_call.1} parent=1 // pred_fallthru
      _
    // Predicated region
    $region10: #{tpu_custom_call.1} parent=1 // pred_check
      _
    $region11: #{tpu_custom_call.1} parent=1 // pred_check_branch
      %35 = sbr.rel (0) target = $region13
    $region12: #{tpu_custom_call.1} parent=1 // pred_region
      %37 = vsyncadd [#allocation6], 0
      %s39 = sshll.u32 %s2, 4
      %s40 = int_to_ptr.hbm [resolvable:$true] %s39
      %s41 = sshll.u32 [#allocation5], 4
      %s42 = int_to_ptr.vmem [resolvable:$true] %s41
      %44 = dma.hbm_to_vmem [thread:$0]  %s40, 128, %s42, [#allocation6]
    $region13: #{tpu_custom_call.1} parent=1 // pred_fallthru
      _
    // Predicated region
    $region14: #{tpu_custom_call.1} parent=1 // pred_check
      _
    $region15: #{tpu_custom_call.1} parent=1 // pred_check_branch
      %46 = sbr.rel (0) target = $region17
    $region16: #{tpu_custom_call.1} parent=1 // pred_region
      _
    $region17: #{tpu_custom_call.1} parent=1 // pred_fallthru
      _
    // Predicated region
    $region18: #{tpu_custom_call.1} parent=1 // pred_check
      _
    $region19: #{tpu_custom_call.1} parent=1 // pred_check_branch
      %48 = sbr.rel (0) target = $region21
    $region20: #{tpu_custom_call.1} parent=1 // pred_region
      _
    $region21: #{tpu_custom_call.1} parent=1 // pred_fallthru
      _
    // Predicated region
    $region22: #{tpu_custom_call.1} parent=1 // pred_check
      _
    $region23: #{tpu_custom_call.1} parent=1 // pred_check_branch
      %50 = sbr.rel (0) target = $region25
    $region24: #{tpu_custom_call.1} parent=1 // pred_region
      _
    $region25: #{tpu_custom_call.1} parent=1 // pred_fallthru
      _
    // Predicated region
    $region26: #{tpu_custom_call.1} parent=1 // pred_check
      _
    $region27: #{tpu_custom_call.1} parent=1 // pred_check_branch
      %52 = sbr.rel (0) target = $region29
    $region28: #{tpu_custom_call.1} parent=1 // pred_region
      %54 = vsyncadd [#allocation6], 0
      %s55 = sshll.u32 %s6, 4
      %s56 = int_to_ptr.hbm [resolvable:$true] %s55
      %s57 = sshll.u32 [#allocation7], 4
      %s58 = int_to_ptr.vmem [resolvable:$true] %s57
      %63 = dma.hbm_to_vmem [thread:$0]  %s56, 1024, %s58, [#allocation6], 256, 256, 16
    $region29: #{tpu_custom_call.1} parent=1 // pred_fallthru
      _
    // Predicated region
    $region30: #{tpu_custom_call.1} parent=1 // pred_check
      _
    $region31: #{tpu_custom_call.1} parent=1 // pred_check_branch
      %65 = sbr.rel (0) target = $region33
    $region32: #{tpu_custom_call.1} parent=1 // pred_region
      _
    $region33: #{tpu_custom_call.1} parent=1 // pred_fallthru
      _
    // Predicated region
    $region34: #{tpu_custom_call.1} parent=1 // pred_check
      _
    $region35: #{tpu_custom_call.1} parent=1 // pred_check_branch
      %67 = sbr.rel (0) target = $region37
    $region36: #{tpu_custom_call.1} parent=1 // pred_region
      %69 = vsyncadd [#allocation9], 0
      %s70 = sshll.u32 %s8, 4
      %s71 = int_to_ptr.hbm [resolvable:$true] %s70
      %s72 = sshll.u32 [#allocation8], 4
      %s73 = int_to_ptr.vmem [resolvable:$true] %s72
      %78 = dma.hbm_to_vmem [thread:$0]  %s71, 512, %s73, [#allocation9], 128, 128, 8
    $region37: #{tpu_custom_call.1} parent=1 // pred_fallthru
      _
    // Predicated region
    $region38: #{tpu_custom_call.1} parent=1 // pred_check
      _
    $region39: #{tpu_custom_call.1} parent=1 // pred_check_branch
      %80 = sbr.rel (0) target = $region41
    $region40: #{tpu_custom_call.1} parent=1 // pred_region
      _
    $region41: #{tpu_custom_call.1} parent=1 // pred_fallthru
      _
    // Predicated region
    $region42: #{tpu_custom_call.1} parent=1 // pred_check
      _
    $region43: #{tpu_custom_call.1} parent=1 // pred_check_branch
      %82 = sbr.rel (0) target = $region45
    $region44: #{tpu_custom_call.1} parent=1 // pred_region
      %84 = dma.done [#allocation3], 256
    $region45: #{tpu_custom_call.1} parent=1 // pred_fallthru
      _
    // Predicated region
    $region46: #{tpu_custom_call.1} parent=1 // pred_check
      _
    $region47: #{tpu_custom_call.1} parent=1 // pred_check_branch
      %86 = sbr.rel (0) target = $region49
    $region48: #{tpu_custom_call.1} parent=1 // pred_region
      %88 = dma.done [#allocation6], 128
    $region49: #{tpu_custom_call.1} parent=1 // pred_fallthru
      _
    // Predicated region
    $region50: #{tpu_custom_call.1} parent=1 // pred_check
      _
    $region51: #{tpu_custom_call.1} parent=1 // pred_check_branch
      %90 = sbr.rel (0) target = $region53
    $region52: #{tpu_custom_call.1} parent=1 // pred_region
      %92 = dma.done [#allocation6], 1024
    $region53: #{tpu_custom_call.1} parent=1 // pred_fallthru
      _
    // Predicated region
    $region54: #{tpu_custom_call.1} parent=1 // pred_check
      _
    $region55: #{tpu_custom_call.1} parent=1 // pred_check_branch
      %94 = sbr.rel (0) target = $region57
    $region56: #{tpu_custom_call.1} parent=1 // pred_region
      %96 = dma.done [#allocation9], 512
    $region57: #{tpu_custom_call.1} parent=1 // pred_fallthru
      _
    %v97 = vld [vmem:[#allocation2] sm:$0xff]
    %v98 = vld [vmem:[#allocation2 + $0x8] sm:$0xff]
    %v99 = vld [vmem:[#allocation5] sm:$0xff]
    %v100 = vld [vmem:[%s5] sm:$0xff]
    %v101 = vld [vmem:[%s5 + $0x8] sm:$0xff]
    %v102 = vld [vmem:[%s5 + $0x10] sm:$0xff]
    %v103 = vld [vmem:[%s5 + $0x18] sm:$0xff]
    %v104 = vld [vmem:[%s5 + $0x20] sm:$0xff]
    %v105 = vld [vmem:[%s5 + $0x28] sm:$0xff]
    %v106 = vld [vmem:[%s5 + $0x30] sm:$0xff]
    %v107 = vld [vmem:[%s5 + $0x38] sm:$0xff]
    %v108 = vld [vmem:[%s3] sm:$0xff]
    %v109 = vld [vmem:[%s3 + $0x8] sm:$0xff]
    %v110 = vld [vmem:[%s3 + $0x10] sm:$0xff]
    %v111 = vld [vmem:[%s3 + $0x18] sm:$0xff]
    %v112 = vld [vmem:[%s3 + $0x20] sm:$0xff]
    %v113 = vld [vmem:[%s3 + $0x28] sm:$0xff]
    %v114 = vld [vmem:[%s3 + $0x30] sm:$0xff]
    %v115 = vld [vmem:[%s3 + $0x38] sm:$0xff]
    %v116 = vld [vmem:[#allocation7] sm:$0xff]
    %v117 = vld [vmem:[#allocation7 + $0x8] sm:$0xff]
    %v118 = vld [vmem:[#allocation7 + $0x10] sm:$0xff]
    %v119 = vld [vmem:[#allocation7 + $0x18] sm:$0xff]
    %v120 = vld [vmem:[#allocation7 + $0x20] sm:$0xff]
    %v121 = vld [vmem:[#allocation7 + $0x28] sm:$0xff]
    %v122 = vld [vmem:[#allocation7 + $0x30] sm:$0xff]
    %v123 = vld [vmem:[#allocation7 + $0x38] sm:$0xff]
    %v124 = vld [vmem:[%s4] sm:$0x1]
    %v126 = vperm.slane %v124, 0
    %v128 = vld [vmem:[%s7] sm:$0x1]
    %v130 = vperm.slane %v128, 0
    %v132 = vld [vmem:[%s0] sm:$0xff]
    %v133 = vld [vmem:[%s0 + $0x8] sm:$0xff]
    %v134 = vld [vmem:[%s0 + $0x10] sm:$0xff]
    %v135 = vld [vmem:[%s0 + $0x18] sm:$0xff]
    %v136 = vld [vmem:[%s0 + $0x20] sm:$0xff]
    %v137 = vld [vmem:[%s0 + $0x28] sm:$0xff]
    %v138 = vld [vmem:[%s0 + $0x30] sm:$0xff]
    %v139 = vld [vmem:[%s0 + $0x38] sm:$0xff]
    %v140 = vld [vmem:[%s0 + $0x40] sm:$0xff]
    %v141 = vld [vmem:[%s0 + $0x48] sm:$0xff]
    %v142 = vld [vmem:[%s0 + $0x50] sm:$0xff]
    %v143 = vld [vmem:[%s0 + $0x58] sm:$0xff]
    %v144 = vld [vmem:[%s0 + $0x60] sm:$0xff]
    %v145 = vld [vmem:[%s0 + $0x68] sm:$0xff]
    %v146 = vld [vmem:[%s0 + $0x70] sm:$0xff]
    %v147 = vld [vmem:[%s0 + $0x78] sm:$0xff]
    %149 = vst [vmem:[#allocation1] ss:$2 sm:$0xff] %v99
    %v150 = vld.sshfl [vmem:[#allocation1] sm:$0xff pattern:$0x75316420]
    %v151 = vld.sshfl [vmem:[#allocation1 + $0x8] sm:$0xff pattern:$0x75316420]
    %vm152 = vcmask 31744
    %v154 = vsel %vm152, %v132, 0
    %v157 = vsel %vm152, %v133, 0
    %v160 = vsel %vm152, %v134, 0
    %v163 = vsel %vm152, %v135, 0
    %v166 = vsel %vm152, %v136, 0
    %v169 = vsel %vm152, %v137, 0
    %v172 = vsel %vm152, %v138, 0
    %v175 = vsel %vm152, %v139, 0
    %v178 = vsel %vm152, %v140, 0
    %v181 = vsel %vm152, %v141, 0
    %v184 = vsel %vm152, %v142, 0
    %v187 = vsel %vm152, %v143, 0
    %v190 = vsel %vm152, %v144, 0
    %v193 = vsel %vm152, %v145, 0
    %v196 = vsel %vm152, %v146, 0
    %v199 = vsel %vm152, %v147, 0
    %vm201 = vcmask 1043456
    %v202 = vsel %vm201, %v150, 0
    %v204 = vsel %vm201, %v151, 0
    %206 = vmatpush.msra.mxu0 0.0
    %207 = vmatpush.msra.mxu0 0.0
    %208 = vmatpush.msra.mxu0 0.0
    %209 = vmatpush.msra.mxu0 0.0
    %210 = vmatpush.msra.mxu0 0.0
    %211 = vmatpush.msra.mxu0 0.0
    %212 = vmatpush.msra.mxu0 0.0
    %213 = vmatpush.msra.mxu0 0.0
    %214 = vmatpush.msra.mxu0 0.0
    %215 = vmatpush.msra.mxu0 0.0
    %216 = vmatpush.msra.mxu0 0.0
    %217 = vmatpush.msra.mxu0 0.0
    %218 = vmatpush.msra.mxu0 0.0
    %219 = vmatpush.msra.mxu0 0.0
    %220 = vmatpush.msra.mxu0 0.0
    %221 = vmatpush.msra.mxu0 %v202
    %222 = vmatmul.f32.gmra.mxu0 %v154
    %v223 = vpop.f32.mrf.mxu0
    %v224 = vadd.f32 0.0, %v223
    %225 = vmatmul.f32.gmra.mxu0 %v157
    %v226 = vpop.f32.mrf.mxu0
    %v227 = vadd.f32 0.0, %v226
    %228 = vmatmul.f32.gmra.mxu0 %v160
    %v229 = vpop.f32.mrf.mxu0
    %v230 = vadd.f32 0.0, %v229
    %231 = vmatmul.f32.gmra.mxu0 %v163
    %v232 = vpop.f32.mrf.mxu0
    %v233 = vadd.f32 0.0, %v232
    %234 = vmatmul.f32.gmra.mxu0 %v166
    %v235 = vpop.f32.mrf.mxu0
    %v236 = vadd.f32 0.0, %v235
    %237 = vmatmul.f32.gmra.mxu0 %v169
    %v238 = vpop.f32.mrf.mxu0
    %v239 = vadd.f32 0.0, %v238
    %240 = vmatmul.f32.gmra.mxu0 %v172
    %v241 = vpop.f32.mrf.mxu0
    %v242 = vadd.f32 0.0, %v241
    %243 = vmatmul.f32.gmra.mxu0 %v175
    %v244 = vpop.f32.mrf.mxu0
    %v245 = vadd.f32 0.0, %v244
    %246 = vmatmul.f32.gmra.mxu0 %v178
    %v247 = vpop.f32.mrf.mxu0
    %v248 = vadd.f32 0.0, %v247
    %249 = vmatmul.f32.gmra.mxu0 %v181
    %v250 = vpop.f32.mrf.mxu0
    %v251 = vadd.f32 0.0, %v250
    %252 = vmatmul.f32.gmra.mxu0 %v184
    %v253 = vpop.f32.mrf.mxu0
    %v254 = vadd.f32 0.0, %v253
    %255 = vmatmul.f32.gmra.mxu0 %v187
    %v256 = vpop.f32.mrf.mxu0
    %v257 = vadd.f32 0.0, %v256
    %258 = vmatmul.f32.gmra.mxu0 %v190
    %v259 = vpop.f32.mrf.mxu0
    %v260 = vadd.f32 0.0, %v259
    %261 = vmatmul.f32.gmra.mxu0 %v193
    %v262 = vpop.f32.mrf.mxu0
    %v263 = vadd.f32 0.0, %v262
    %264 = vmatmul.f32.gmra.mxu0 %v196
    %v265 = vpop.f32.mrf.mxu0
    %v266 = vadd.f32 0.0, %v265
    %267 = vmatmul.f32.gmra.mxu0 %v199
    %v268 = vpop.f32.mrf.mxu0
    %v269 = vadd.f32 0.0, %v268
    %270 = vdwg.mxu0
    %271 = vmatpush.msra.mxu0 0.0
    %272 = vmatpush.msra.mxu0 0.0
    %273 = vmatpush.msra.mxu0 0.0
    %274 = vmatpush.msra.mxu0 0.0
    %275 = vmatpush.msra.mxu0 0.0
    %276 = vmatpush.msra.mxu0 0.0
    %277 = vmatpush.msra.mxu0 0.0
    %278 = vmatpush.msra.mxu0 0.0
    %279 = vmatpush.msra.mxu0 0.0
    %280 = vmatpush.msra.mxu0 0.0
    %281 = vmatpush.msra.mxu0 0.0
    %282 = vmatpush.msra.mxu0 0.0
    %283 = vmatpush.msra.mxu0 0.0
    %284 = vmatpush.msra.mxu0 0.0
    %285 = vmatpush.msra.mxu0 0.0
    %286 = vmatpush.msra.mxu0 %v204
    %287 = vmatmul.f32.gmra.mxu0 %v154
    %v288 = vpop.f32.mrf.mxu0
    %v289 = vadd.f32 0.0, %v288
    %290 = vmatmul.f32.gmra.mxu0 %v157
    %v291 = vpop.f32.mrf.mxu0
    %v292 = vadd.f32 0.0, %v291
    %293 = vmatmul.f32.gmra.mxu0 %v160
    %v294 = vpop.f32.mrf.mxu0
    %v295 = vadd.f32 0.0, %v294
    %296 = vmatmul.f32.gmra.mxu0 %v163
    %v297 = vpop.f32.mrf.mxu0
    %v298 = vadd.f32 0.0, %v297
    %299 = vmatmul.f32.gmra.mxu0 %v166
    %v300 = vpop.f32.mrf.mxu0
    %v301 = vadd.f32 0.0, %v300
    %302 = vmatmul.f32.gmra.mxu0 %v169
    %v303 = vpop.f32.mrf.mxu0
    %v304 = vadd.f32 0.0, %v303
    %305 = vmatmul.f32.gmra.mxu0 %v172
    %v306 = vpop.f32.mrf.mxu0
    %v307 = vadd.f32 0.0, %v306
    %308 = vmatmul.f32.gmra.mxu0 %v175
    %v309 = vpop.f32.mrf.mxu0
    %v310 = vadd.f32 0.0, %v309
    %311 = vmatmul.f32.gmra.mxu0 %v178
    %v312 = vpop.f32.mrf.mxu0
    %v313 = vadd.f32 0.0, %v312
    %314 = vmatmul.f32.gmra.mxu0 %v181
    %v315 = vpop.f32.mrf.mxu0
    %v316 = vadd.f32 0.0, %v315
    %317 = vmatmul.f32.gmra.mxu0 %v184
    %v318 = vpop.f32.mrf.mxu0
    %v319 = vadd.f32 0.0, %v318
    %320 = vmatmul.f32.gmra.mxu0 %v187
    %v321 = vpop.f32.mrf.mxu0
    %v322 = vadd.f32 0.0, %v321
    %323 = vmatmul.f32.gmra.mxu0 %v190
    %v324 = vpop.f32.mrf.mxu0
    %v325 = vadd.f32 0.0, %v324
    %326 = vmatmul.f32.gmra.mxu0 %v193
    %v327 = vpop.f32.mrf.mxu0
    %v328 = vadd.f32 0.0, %v327
    %329 = vmatmul.f32.gmra.mxu0 %v196
    %v330 = vpop.f32.mrf.mxu0
    %v331 = vadd.f32 0.0, %v330
    %332 = vmatmul.f32.gmra.mxu0 %v199
    %v333 = vpop.f32.mrf.mxu0
    %v334 = vadd.f32 0.0, %v333
    %335 = vdwg.mxu0
    %vm336 = vcmask 261120
    %v338 = vsel %vm336, 0.0, 0
    %340 = vmatpush.msra.mxu0 0.0
    %341 = vmatpush.msra.mxu0 0.0
    %342 = vmatpush.msra.mxu0 0.0
    %343 = vmatpush.msra.mxu0 0.0
    %344 = vmatpush.msra.mxu0 0.0
    %345 = vmatpush.msra.mxu0 0.0
    %346 = vmatpush.msra.mxu0 0.0
    %347 = vmatpush.msra.mxu0 0.0
    %348 = vmatpush.msra.mxu0 0.0
    %349 = vmatpush.msra.mxu0 0.0
    %350 = vmatpush.msra.mxu0 0.0
    %351 = vmatpush.msra.mxu0 0.0
    %352 = vmatpush.msra.mxu0 %v114
    %353 = vmatpush.msra.mxu0 %v112
    %354 = vmatpush.msra.mxu0 %v110
    %355 = vmatpush.msra.mxu0 %v108
    %356 = vmatmul.f32.gmra.mxu0 %v338
    %v357 = vpop.f32.mrf.mxu0
    %v358 = vadd.f32 0.0, %v357
    %359 = vmatmul.f32.gmra.mxu0 %v338
    %v360 = vpop.f32.mrf.mxu0
    %v361 = vadd.f32 0.0, %v360
    %362 = vdwg.mxu0
    %363 = vmatpush.msra.mxu0 0.0
    %364 = vmatpush.msra.mxu0 0.0
    %365 = vmatpush.msra.mxu0 0.0
    %366 = vmatpush.msra.mxu0 0.0
    %367 = vmatpush.msra.mxu0 0.0
    %368 = vmatpush.msra.mxu0 0.0
    %369 = vmatpush.msra.mxu0 0.0
    %370 = vmatpush.msra.mxu0 0.0
    %371 = vmatpush.msra.mxu0 0.0
    %372 = vmatpush.msra.mxu0 0.0
    %373 = vmatpush.msra.mxu0 0.0
    %374 = vmatpush.msra.mxu0 0.0
    %375 = vmatpush.msra.mxu0 %v115
    %376 = vmatpush.msra.mxu0 %v113
    %377 = vmatpush.msra.mxu0 %v111
    %378 = vmatpush.msra.mxu0 %v109
    %379 = vmatmul.f32.gmra.mxu0 %v338
    %v380 = vpop.f32.mrf.mxu0
    %v381 = vadd.f32 0.0, %v380
    %382 = vmatmul.f32.gmra.mxu0 %v338
    %v383 = vpop.f32.mrf.mxu0
    %v384 = vadd.f32 0.0, %v383
    %385 = vdwg.mxu0
    %v386 = vadd.f32 %v224, %v358
    %v387 = vadd.f32 %v289, %v381
    %v388 = vadd.f32 %v227, %v361
    %v389 = vadd.f32 %v292, %v384
    %vm390 = vcmask 130048
    %v392 = vsel %vm390, %v97, 0
    %v395 = vsel %vm390, %v98, 0
    %397 = vmatpush.msra.mxu0 0.0
    %398 = vmatpush.msra.mxu0 0.0
    %399 = vmatpush.msra.mxu0 0.0
    %400 = vmatpush.msra.mxu0 0.0
    %401 = vmatpush.msra.mxu0 0.0
    %402 = vmatpush.msra.mxu0 0.0
    %403 = vmatpush.msra.mxu0 0.0
    %404 = vmatpush.msra.mxu0 0.0
    %405 = vmatpush.msra.mxu0 0.0
    %406 = vmatpush.msra.mxu0 0.0
    %407 = vmatpush.msra.mxu0 0.0
    %408 = vmatpush.msra.mxu0 0.0
    %409 = vmatpush.msra.mxu0 0.0
    %410 = vmatpush.msra.mxu0 0.0
    %411 = vmatpush.msra.mxu0 %v388
    %412 = vmatpush.msra.mxu0 %v386
    %413 = vmatmul.f32.gmra.mxu0 %v392
    %v414 = vpop.f32.mrf.mxu0
    %v415 = vadd.f32 %v387, %v414
    %416 = vmatmul.f32.gmra.mxu0 %v395
    %v417 = vpop.f32.mrf.mxu0
    %v418 = vadd.f32 %v389, %v417
    %419 = vdwg.mxu0
    %v420 = vadd.f32 %v415, %v126
    %v421 = vadd.f32 %v418, %v126
    %v422 = vxor.u32 %v420, 2147483648
    %v423 = vxor.u32 %v421, 2147483648
    %v424 = vmul.f32 %v422, 1.442695
    %v425 = vpow.pop %v424
    %v426 = vmul.f32 %v423, 1.442695
    %v427 = vpow.pop %v426
    %v428 = vadd.f32 %v425, 1.0
    %v429 = vadd.f32 %v427, 1.0
    %v430 = vrcp.pop %v428
    %v431 = vmul.f32 %v428, %v430
    %v432 = vsub.f32 1.0, %v431
    %v433 = vmul.f32 %v430, %v432
    %v434 = vadd.f32 %v430, %v433
    %vm435 = vweird.f32 %v428
    %vm436 = vweird.f32 %v430
    %vm437 = vmor %vm435, %vm436
    %v438 = vsel %vm437, %v430, %v434
    %v439 = vand.u32 2147483647, %v428
    %vm440 = vcmp.eq.f32.partialorder %v439, 8.507059e+37
    %v441 = vand.u32 %v428, 2147483648
    %v442 = vor.u32 1.1754944e-38, %v441
    %v443 = vsel %vm440, %v442, %v438
    %v444 = vmul.f32 1.0, %v443
    %v445 = vrcp.pop %v429
    %v446 = vmul.f32 %v429, %v445
    %v447 = vsub.f32 1.0, %v446
    %v448 = vmul.f32 %v445, %v447
    %v449 = vadd.f32 %v445, %v448
    %vm450 = vweird.f32 %v429
    %vm451 = vweird.f32 %v445
    %vm452 = vmor %vm450, %vm451
    %v453 = vsel %vm452, %v445, %v449
    %v454 = vand.u32 2147483647, %v429
    %vm455 = vcmp.eq.f32.partialorder %v454, 8.507059e+37
    %v456 = vand.u32 %v429, 2147483648
    %v457 = vor.u32 1.1754944e-38, %v456
    %v458 = vsel %vm455, %v457, %v453
    %v459 = vmul.f32 1.0, %v458
    %v460 = vtanh.pop %v420
    %v461 = vtanh.pop %v421
    %v462 = vmul.f32 %v444, 0.0
    %v463 = vmul.f32 %v459, 0.0
    %466 = vrot.lane.b32.xlu0 %v460, 32
    %v467 = vpop.permute.xlu0 %466
    %468 = vrot.lane.b32.xlu0 %v461, 32
    %v469 = vpop.permute.xlu0 %468
    %v472 = vmul.f32 %v444, %v467
    %v473 = vmul.f32 %v459, %v469
    %476 = vrot.lane.b32.xlu0 %v472, 32
    %v477 = vpop.permute.xlu0 %476
    %478 = vrot.lane.b32.xlu0 %v473, 32
    %v479 = vpop.permute.xlu0 %478
    %v482 = vadd.f32 %v462, %v477
    %v483 = vadd.f32 %v463, %v479
    %v484 = vtanh.pop %v482
    %v485 = vtanh.pop %v483
    %488 = vrot.lane.b32.xlu0 %v484, 32
    %v489 = vpop.permute.xlu0 %488
    %490 = vrot.lane.b32.xlu0 %v485, 32
    %v491 = vpop.permute.xlu0 %490
    %v494 = vmul.f32 %v444, %v489
    %v495 = vmul.f32 %v459, %v491
    %496 = vmatpush.msra.mxu0 0.0
    %497 = vmatpush.msra.mxu0 0.0
    %498 = vmatpush.msra.mxu0 0.0
    %499 = vmatpush.msra.mxu0 0.0
    %500 = vmatpush.msra.mxu0 0.0
    %501 = vmatpush.msra.mxu0 0.0
    %502 = vmatpush.msra.mxu0 0.0
    %503 = vmatpush.msra.mxu0 0.0
    %504 = vmatpush.msra.mxu0 0.0
    %505 = vmatpush.msra.mxu0 0.0
    %506 = vmatpush.msra.mxu0 0.0
    %507 = vmatpush.msra.mxu0 0.0
    %508 = vmatpush.msra.mxu0 %v122
    %509 = vmatpush.msra.mxu0 %v120
    %510 = vmatpush.msra.mxu0 %v118
    %511 = vmatpush.msra.mxu0 %v116
    %512 = vmatmul.f32.gmra.mxu0 %v338
    %v513 = vpop.f32.mrf.mxu0
    %v514 = vadd.f32 0.0, %v513
    %515 = vmatmul.f32.gmra.mxu0 %v338
    %v516 = vpop.f32.mrf.mxu0
    %v517 = vadd.f32 0.0, %v516
    %518 = vdwg.mxu0
    %519 = vmatpush.msra.mxu0 0.0
    %520 = vmatpush.msra.mxu0 0.0
    %521 = vmatpush.msra.mxu0 0.0
    %522 = vmatpush.msra.mxu0 0.0
    %523 = vmatpush.msra.mxu0 0.0
    %524 = vmatpush.msra.mxu0 0.0
    %525 = vmatpush.msra.mxu0 0.0
    %526 = vmatpush.msra.mxu0 0.0
    %527 = vmatpush.msra.mxu0 0.0
    %528 = vmatpush.msra.mxu0 0.0
    %529 = vmatpush.msra.mxu0 0.0
    %530 = vmatpush.msra.mxu0 0.0
    %531 = vmatpush.msra.mxu0 %v123
    %532 = vmatpush.msra.mxu0 %v121
    %533 = vmatpush.msra.mxu0 %v119
    %534 = vmatpush.msra.mxu0 %v117
    %535 = vmatmul.f32.gmra.mxu0 %v338
    %v536 = vpop.f32.mrf.mxu0
    %v537 = vadd.f32 0.0, %v536
    %538 = vmatmul.f32.gmra.mxu0 %v338
    %v539 = vpop.f32.mrf.mxu0
    %v540 = vadd.f32 0.0, %v539
    %541 = vdwg.mxu0
    %544 = vrot.lane.b32.xlu0 %v494, 64
    %v545 = vpop.permute.xlu0 %544
    %546 = vrot.lane.b32.xlu0 %v495, 64
    %v547 = vpop.permute.xlu0 %546
    %v548 = vsel %vm336, %v545, 0
    %v550 = vsel %vm336, %v547, 0
    %552 = vmatpush.msra.mxu0 0.0
    %553 = vmatpush.msra.mxu0 0.0
    %554 = vmatpush.msra.mxu0 0.0
    %555 = vmatpush.msra.mxu0 0.0
    %556 = vmatpush.msra.mxu0 0.0
    %557 = vmatpush.msra.mxu0 0.0
    %558 = vmatpush.msra.mxu0 0.0
    %559 = vmatpush.msra.mxu0 0.0
    %560 = vmatpush.msra.mxu0 0.0
    %561 = vmatpush.msra.mxu0 0.0
    %562 = vmatpush.msra.mxu0 0.0
    %563 = vmatpush.msra.mxu0 0.0
    %564 = vmatpush.msra.mxu0 %v106
    %565 = vmatpush.msra.mxu0 %v104
    %566 = vmatpush.msra.mxu0 %v102
    %567 = vmatpush.msra.mxu0 %v100
    %568 = vmatmul.f32.gmra.mxu0 %v548
    %v569 = vpop.f32.mrf.mxu0
    %v570 = vadd.f32 %v514, %v569
    %571 = vmatmul.f32.gmra.mxu0 %v550
    %v572 = vpop.f32.mrf.mxu0
    %v573 = vadd.f32 %v517, %v572
    %574 = vdwg.mxu0
    %575 = vmatpush.msra.mxu0 0.0
    %576 = vmatpush.msra.mxu0 0.0
    %577 = vmatpush.msra.mxu0 0.0
    %578 = vmatpush.msra.mxu0 0.0
    %579 = vmatpush.msra.mxu0 0.0
    %580 = vmatpush.msra.mxu0 0.0
    %581 = vmatpush.msra.mxu0 0.0
    %582 = vmatpush.msra.mxu0 0.0
    %583 = vmatpush.msra.mxu0 0.0
    %584 = vmatpush.msra.mxu0 0.0
    %585 = vmatpush.msra.mxu0 0.0
    %586 = vmatpush.msra.mxu0 0.0
    %587 = vmatpush.msra.mxu0 %v107
    %588 = vmatpush.msra.mxu0 %v105
    %589 = vmatpush.msra.mxu0 %v103
    %590 = vmatpush.msra.mxu0 %v101
    %591 = vmatmul.f32.gmra.mxu0 %v548
    %v592 = vpop.f32.mrf.mxu0
    %v593 = vadd.f32 %v537, %v592
    %594 = vmatmul.f32.gmra.mxu0 %v550
    %v595 = vpop.f32.mrf.mxu0
    %v596 = vadd.f32 %v540, %v595
    %597 = vdwg.mxu0
    %598 = vmatpush.msra.mxu0 0.0
    %599 = vmatpush.msra.mxu0 0.0
    %600 = vmatpush.msra.mxu0 0.0
    %601 = vmatpush.msra.mxu0 0.0
    %602 = vmatpush.msra.mxu0 0.0
    %603 = vmatpush.msra.mxu0 0.0
    %604 = vmatpush.msra.mxu0 0.0
    %605 = vmatpush.msra.mxu0 0.0
    %606 = vmatpush.msra.mxu0 0.0
    %607 = vmatpush.msra.mxu0 0.0
    %608 = vmatpush.msra.mxu0 0.0
    %609 = vmatpush.msra.mxu0 0.0
    %610 = vmatpush.msra.mxu0 0.0
    %611 = vmatpush.msra.mxu0 0.0
    %612 = vmatpush.msra.mxu0 %v573
    %613 = vmatpush.msra.mxu0 %v570
    %614 = vmatmul.f32.gmra.mxu0 %v392
    %v615 = vpop.f32.mrf.mxu0
    %v616 = vadd.f32 %v593, %v615
    %617 = vmatmul.f32.gmra.mxu0 %v395
    %v618 = vpop.f32.mrf.mxu0
    %v619 = vadd.f32 %v596, %v618
    %620 = vdwg.mxu0
    %v621 = vadd.f32 %v616, %v130
    %v622 = vadd.f32 %v619, %v130
    %v623 = vxor.u32 %v621, 2147483648
    %v624 = vxor.u32 %v622, 2147483648
    %v625 = vmul.f32 %v623, 1.442695
    %v626 = vpow.pop %v625
    %v627 = vmul.f32 %v624, 1.442695
    %v628 = vpow.pop %v627
    %v629 = vadd.f32 %v626, 1.0
    %v630 = vadd.f32 %v628, 1.0
    %v631 = vrcp.pop %v629
    %v632 = vmul.f32 %v629, %v631
    %v633 = vsub.f32 1.0, %v632
    %v634 = vmul.f32 %v631, %v633
    %v635 = vadd.f32 %v631, %v634
    %vm636 = vweird.f32 %v629
    %vm637 = vweird.f32 %v631
    %vm638 = vmor %vm636, %vm637
    %v639 = vsel %vm638, %v631, %v635
    %v640 = vand.u32 2147483647, %v629
    %vm641 = vcmp.eq.f32.partialorder %v640, 8.507059e+37
    %v642 = vand.u32 %v629, 2147483648
    %v643 = vor.u32 1.1754944e-38, %v642
    %v644 = vsel %vm641, %v643, %v639
    %v645 = vmul.f32 1.0, %v644
    %v646 = vrcp.pop %v630
    %v647 = vmul.f32 %v630, %v646
    %v648 = vsub.f32 1.0, %v647
    %v649 = vmul.f32 %v646, %v648
    %v650 = vadd.f32 %v646, %v649
    %vm651 = vweird.f32 %v630
    %vm652 = vweird.f32 %v646
    %vm653 = vmor %vm651, %vm652
    %v654 = vsel %vm653, %v646, %v650
    %v655 = vand.u32 2147483647, %v630
    %vm656 = vcmp.eq.f32.partialorder %v655, 8.507059e+37
    %v657 = vand.u32 %v630, 2147483648
    %v658 = vor.u32 1.1754944e-38, %v657
    %v659 = vsel %vm656, %v658, %v654
    %v660 = vmul.f32 1.0, %v659
    %v661 = vtanh.pop %v621
    %v662 = vtanh.pop %v622
    %v663 = vmul.f32 %v645, 0.0
    %v664 = vmul.f32 %v660, 0.0
    %667 = vrot.lane.b32.xlu0 %v661, 32
    %v668 = vpop.permute.xlu0 %667
    %669 = vrot.lane.b32.xlu0 %v662, 32
    %v670 = vpop.permute.xlu0 %669
    %v673 = vmul.f32 %v645, %v668
    %v674 = vmul.f32 %v660, %v670
    %677 = vrot.lane.b32.xlu0 %v673, 32
    %v678 = vpop.permute.xlu0 %677
    %679 = vrot.lane.b32.xlu0 %v674, 32
    %v680 = vpop.permute.xlu0 %679
    %v683 = vadd.f32 %v663, %v678
    %v684 = vadd.f32 %v664, %v680
    %v685 = vtanh.pop %v683
    %v686 = vtanh.pop %v684
    %689 = vrot.lane.b32.xlu0 %v685, 32
    %v690 = vpop.permute.xlu0 %689
    %691 = vrot.lane.b32.xlu0 %v686, 32
    %v692 = vpop.permute.xlu0 %691
    %v695 = vmul.f32 %v645, %v690
    %v696 = vmul.f32 %v660, %v692
    %697 = vmatpush.msra.mxu0 0.0
    %698 = vmatpush.msra.mxu0 0.0
    %699 = vmatpush.msra.mxu0 0.0
    %700 = vmatpush.msra.mxu0 0.0
    %701 = vmatpush.msra.mxu0 0.0
    %702 = vmatpush.msra.mxu0 0.0
    %703 = vmatpush.msra.mxu0 0.0
    %704 = vmatpush.msra.mxu0 0.0
    %705 = vmatpush.msra.mxu0 0.0
    %706 = vmatpush.msra.mxu0 0.0
    %707 = vmatpush.msra.mxu0 0.0
    %708 = vmatpush.msra.mxu0 0.0
    %709 = vmatpush.msra.mxu0 %v114
    %710 = vmatpush.msra.mxu0 %v112
    %711 = vmatpush.msra.mxu0 %v110
    %712 = vmatpush.msra.mxu0 %v108
    %713 = vmatmul.f32.gmra.mxu0 %v548
    %v714 = vpop.f32.mrf.mxu0
    %v715 = vadd.f32 0.0, %v714
    %716 = vmatmul.f32.gmra.mxu0 %v550
    %v717 = vpop.f32.mrf.mxu0
    %v718 = vadd.f32 0.0, %v717
    %719 = vdwg.mxu0
    %720 = vmatpush.msra.mxu0 0.0
    %721 = vmatpush.msra.mxu0 0.0
    %722 = vmatpush.msra.mxu0 0.0
    %723 = vmatpush.msra.mxu0 0.0
    %724 = vmatpush.msra.mxu0 0.0
    %725 = vmatpush.msra.mxu0 0.0
    %726 = vmatpush.msra.mxu0 0.0
    %727 = vmatpush.msra.mxu0 0.0
    %728 = vmatpush.msra.mxu0 0.0
    %729 = vmatpush.msra.mxu0 0.0
    %730 = vmatpush.msra.mxu0 0.0
    %731 = vmatpush.msra.mxu0 0.0
    %732 = vmatpush.msra.mxu0 %v115
    %733 = vmatpush.msra.mxu0 %v113
    %734 = vmatpush.msra.mxu0 %v111
    %735 = vmatpush.msra.mxu0 %v109
    %736 = vmatmul.f32.gmra.mxu0 %v548
    %v737 = vpop.f32.mrf.mxu0
    %v738 = vadd.f32 0.0, %v737
    %739 = vmatmul.f32.gmra.mxu0 %v550
    %v740 = vpop.f32.mrf.mxu0
    %v741 = vadd.f32 0.0, %v740
    %742 = vdwg.mxu0
    %v743 = vadd.f32 %v230, %v715
    %v744 = vadd.f32 %v295, %v738
    %v745 = vadd.f32 %v233, %v718
    %v746 = vadd.f32 %v298, %v741
    %747 = vmatpush.msra.mxu0 0.0
    %748 = vmatpush.msra.mxu0 0.0
    %749 = vmatpush.msra.mxu0 0.0
    %750 = vmatpush.msra.mxu0 0.0
    %751 = vmatpush.msra.mxu0 0.0
    %752 = vmatpush.msra.mxu0 0.0
    %753 = vmatpush.msra.mxu0 0.0
    %754 = vmatpush.msra.mxu0 0.0
    %755 = vmatpush.msra.mxu0 0.0
    %756 = vmatpush.msra.mxu0 0.0
    %757 = vmatpush.msra.mxu0 0.0
    %758 = vmatpush.msra.mxu0 0.0
    %759 = vmatpush.msra.mxu0 0.0
    %760 = vmatpush.msra.mxu0 0.0
    %761 = vmatpush.msra.mxu0 %v745
    %762 = vmatpush.msra.mxu0 %v743
    %763 = vmatmul.f32.gmra.mxu0 %v392
    %v764 = vpop.f32.mrf.mxu0
    %v765 = vadd.f32 %v744, %v764
    %766 = vmatmul.f32.gmra.mxu0 %v395
    %v767 = vpop.f32.mrf.mxu0
    %v768 = vadd.f32 %v746, %v767
    %769 = vdwg.mxu0
    %v770 = vadd.f32 %v765, %v126
    %v771 = vadd.f32 %v768, %v126
    %v772 = vxor.u32 %v770, 2147483648
    %v773 = vxor.u32 %v771, 2147483648
    %v774 = vmul.f32 %v772, 1.442695
    %v775 = vpow.pop %v774
    %v776 = vmul.f32 %v773, 1.442695
    %v777 = vpow.pop %v776
    %v778 = vadd.f32 %v775, 1.0
    %v779 = vadd.f32 %v777, 1.0
    %v780 = vrcp.pop %v778
    %v781 = vmul.f32 %v778, %v780
    %v782 = vsub.f32 1.0, %v781
    %v783 = vmul.f32 %v780, %v782
    %v784 = vadd.f32 %v780, %v783
    %vm785 = vweird.f32 %v778
    %vm786 = vweird.f32 %v780
    %vm787 = vmor %vm785, %vm786
    %v788 = vsel %vm787, %v780, %v784
    %v789 = vand.u32 2147483647, %v778
    %vm790 = vcmp.eq.f32.partialorder %v789, 8.507059e+37
    %v791 = vand.u32 %v778, 2147483648
    %v792 = vor.u32 1.1754944e-38, %v791
    %v793 = vsel %vm790, %v792, %v788
    %v794 = vmul.f32 1.0, %v793
    %v795 = vrcp.pop %v779
    %v796 = vmul.f32 %v779, %v795
    %v797 = vsub.f32 1.0, %v796
    %v798 = vmul.f32 %v795, %v797
    %v799 = vadd.f32 %v795, %v798
    %vm800 = vweird.f32 %v779
    %vm801 = vweird.f32 %v795
    %vm802 = vmor %vm800, %vm801
    %v803 = vsel %vm802, %v795, %v799
    %v804 = vand.u32 2147483647, %v779
    %vm805 = vcmp.eq.f32.partialorder %v804, 8.507059e+37
    %v806 = vand.u32 %v779, 2147483648
    %v807 = vor.u32 1.1754944e-38, %v806
    %v808 = vsel %vm805, %v807, %v803
    %v809 = vmul.f32 1.0, %v808
    %v810 = vtanh.pop %v770
    %v811 = vtanh.pop %v771
    %v812 = vmul.f32 %v794, %v482
    %v813 = vmul.f32 %v809, %v483
    %816 = vrot.lane.b32.xlu0 %v810, 32
    %v817 = vpop.permute.xlu0 %816
    %818 = vrot.lane.b32.xlu0 %v811, 32
    %v819 = vpop.permute.xlu0 %818
    %v822 = vmul.f32 %v794, %v817
    %v823 = vmul.f32 %v809, %v819
    %826 = vrot.lane.b32.xlu0 %v822, 32
    %v827 = vpop.permute.xlu0 %826
    %828 = vrot.lane.b32.xlu0 %v823, 32
    %v829 = vpop.permute.xlu0 %828
    %v832 = vadd.f32 %v812, %v827
    %v833 = vadd.f32 %v813, %v829
    %v834 = vtanh.pop %v832
    %v835 = vtanh.pop %v833
    %838 = vrot.lane.b32.xlu0 %v834, 32
    %v839 = vpop.permute.xlu0 %838
    %840 = vrot.lane.b32.xlu0 %v835, 32
    %v841 = vpop.permute.xlu0 %840
    %v844 = vmul.f32 %v794, %v839
    %v845 = vmul.f32 %v809, %v841
    %848 = vrot.lane.b32.xlu0 %v695, 64
    %v849 = vpop.permute.xlu0 %848
    %850 = vrot.lane.b32.xlu0 %v696, 64
    %v851 = vpop.permute.xlu0 %850
    %v852 = vsel %vm336, %v849, 0
    %v854 = vsel %vm336, %v851, 0
    %856 = vmatpush.msra.mxu0 0.0
    %857 = vmatpush.msra.mxu0 0.0
    %858 = vmatpush.msra.mxu0 0.0
    %859 = vmatpush.msra.mxu0 0.0
    %860 = vmatpush.msra.mxu0 0.0
    %861 = vmatpush.msra.mxu0 0.0
    %862 = vmatpush.msra.mxu0 0.0
    %863 = vmatpush.msra.mxu0 0.0
    %864 = vmatpush.msra.mxu0 0.0
    %865 = vmatpush.msra.mxu0 0.0
    %866 = vmatpush.msra.mxu0 0.0
    %867 = vmatpush.msra.mxu0 0.0
    %868 = vmatpush.msra.mxu0 %v122
    %869 = vmatpush.msra.mxu0 %v120
    %870 = vmatpush.msra.mxu0 %v118
    %871 = vmatpush.msra.mxu0 %v116
    %872 = vmatmul.f32.gmra.mxu0 %v852
    %v873 = vpop.f32.mrf.mxu0
    %v874 = vadd.f32 0.0, %v873
    %875 = vmatmul.f32.gmra.mxu0 %v854
    %v876 = vpop.f32.mrf.mxu0
    %v877 = vadd.f32 0.0, %v876
    %878 = vdwg.mxu0
    %879 = vmatpush.msra.mxu0 0.0
    %880 = vmatpush.msra.mxu0 0.0
    %881 = vmatpush.msra.mxu0 0.0
    %882 = vmatpush.msra.mxu0 0.0
    %883 = vmatpush.msra.mxu0 0.0
    %884 = vmatpush.msra.mxu0 0.0
    %885 = vmatpush.msra.mxu0 0.0
    %886 = vmatpush.msra.mxu0 0.0
    %887 = vmatpush.msra.mxu0 0.0
    %888 = vmatpush.msra.mxu0 0.0
    %889 = vmatpush.msra.mxu0 0.0
    %890 = vmatpush.msra.mxu0 0.0
    %891 = vmatpush.msra.mxu0 %v123
    %892 = vmatpush.msra.mxu0 %v121
    %893 = vmatpush.msra.mxu0 %v119
    %894 = vmatpush.msra.mxu0 %v117
    %895 = vmatmul.f32.gmra.mxu0 %v852
    %v896 = vpop.f32.mrf.mxu0
    %v897 = vadd.f32 0.0, %v896
    %898 = vmatmul.f32.gmra.mxu0 %v854
    %v899 = vpop.f32.mrf.mxu0
    %v900 = vadd.f32 0.0, %v899
    %901 = vdwg.mxu0
    %904 = vrot.lane.b32.xlu0 %v844, 64
    %v905 = vpop.permute.xlu0 %904
    %906 = vrot.lane.b32.xlu0 %v845, 64
    %v907 = vpop.permute.xlu0 %906
    %v908 = vsel %vm336, %v905, 0
    %v910 = vsel %vm336, %v907, 0
    %912 = vmatpush.msra.mxu0 0.0
    %913 = vmatpush.msra.mxu0 0.0
    %914 = vmatpush.msra.mxu0 0.0
    %915 = vmatpush.msra.mxu0 0.0
    %916 = vmatpush.msra.mxu0 0.0
    %917 = vmatpush.msra.mxu0 0.0
    %918 = vmatpush.msra.mxu0 0.0
    %919 = vmatpush.msra.mxu0 0.0
    %920 = vmatpush.msra.mxu0 0.0
    %921 = vmatpush.msra.mxu0 0.0
    %922 = vmatpush.msra.mxu0 0.0
    %923 = vmatpush.msra.mxu0 0.0
    %924 = vmatpush.msra.mxu0 %v106
    %925 = vmatpush.msra.mxu0 %v104
    %926 = vmatpush.msra.mxu0 %v102
    %927 = vmatpush.msra.mxu0 %v100
    %928 = vmatmul.f32.gmra.mxu0 %v908
    %v929 = vpop.f32.mrf.mxu0
    %v930 = vadd.f32 %v874, %v929
    %931 = vmatmul.f32.gmra.mxu0 %v910
    %v932 = vpop.f32.mrf.mxu0
    %v933 = vadd.f32 %v877, %v932
    %934 = vdwg.mxu0
    %935 = vmatpush.msra.mxu0 0.0
    %936 = vmatpush.msra.mxu0 0.0
    %937 = vmatpush.msra.mxu0 0.0
    %938 = vmatpush.msra.mxu0 0.0
    %939 = vmatpush.msra.mxu0 0.0
    %940 = vmatpush.msra.mxu0 0.0
    %941 = vmatpush.msra.mxu0 0.0
    %942 = vmatpush.msra.mxu0 0.0
    %943 = vmatpush.msra.mxu0 0.0
    %944 = vmatpush.msra.mxu0 0.0
    %945 = vmatpush.msra.mxu0 0.0
    %946 = vmatpush.msra.mxu0 0.0
    %947 = vmatpush.msra.mxu0 %v107
    %948 = vmatpush.msra.mxu0 %v105
    %949 = vmatpush.msra.mxu0 %v103
    %950 = vmatpush.msra.mxu0 %v101
    %951 = vmatmul.f32.gmra.mxu0 %v908
    %v952 = vpop.f32.mrf.mxu0
    %v953 = vadd.f32 %v897, %v952
    %954 = vmatmul.f32.gmra.mxu0 %v910
    %v955 = vpop.f32.mrf.mxu0
    %v956 = vadd.f32 %v900, %v955
    %957 = vdwg.mxu0
    %958 = vmatpush.msra.mxu0 0.0
    %959 = vmatpush.msra.mxu0 0.0
    %960 = vmatpush.msra.mxu0 0.0
    %961 = vmatpush.msra.mxu0 0.0
    %962 = vmatpush.msra.mxu0 0.0
    %963 = vmatpush.msra.mxu0 0.0
    %964 = vmatpush.msra.mxu0 0.0
    %965 = vmatpush.msra.mxu0 0.0
    %966 = vmatpush.msra.mxu0 0.0
    %967 = vmatpush.msra.mxu0 0.0
    %968 = vmatpush.msra.mxu0 0.0
    %969 = vmatpush.msra.mxu0 0.0
    %970 = vmatpush.msra.mxu0 0.0
    %971 = vmatpush.msra.mxu0 0.0
    %972 = vmatpush.msra.mxu0 %v933
    %973 = vmatpush.msra.mxu0 %v930
    %974 = vmatmul.f32.gmra.mxu0 %v392
    %v975 = vpop.f32.mrf.mxu0
    %v976 = vadd.f32 %v953, %v975
    %977 = vmatmul.f32.gmra.mxu0 %v395
    %v978 = vpop.f32.mrf.mxu0
    %v979 = vadd.f32 %v956, %v978
    %980 = vdwg.mxu0
    %v981 = vadd.f32 %v976, %v130
    %v982 = vadd.f32 %v979, %v130
    %v983 = vxor.u32 %v981, 2147483648
    %v984 = vxor.u32 %v982, 2147483648
    %v985 = vmul.f32 %v983, 1.442695
    %v986 = vpow.pop %v985
    %v987 = vmul.f32 %v984, 1.442695
    %v988 = vpow.pop %v987
    %v989 = vadd.f32 %v986, 1.0
    %v990 = vadd.f32 %v988, 1.0
    %v991 = vrcp.pop %v989
    %v992 = vmul.f32 %v989, %v991
    %v993 = vsub.f32 1.0, %v992
    %v994 = vmul.f32 %v991, %v993
    %v995 = vadd.f32 %v991, %v994
    %vm996 = vweird.f32 %v989
    %vm997 = vweird.f32 %v991
    %vm998 = vmor %vm996, %vm997
    %v999 = vsel %vm998, %v991, %v995
    %v1000 = vand.u32 2147483647, %v989
    %vm1001 = vcmp.eq.f32.partialorder %v1000, 8.507059e+37
    %v1002 = vand.u32 %v989, 2147483648
    %v1003 = vor.u32 1.1754944e-38, %v1002
    %v1004 = vsel %vm1001, %v1003, %v999
    %v1005 = vmul.f32 1.0, %v1004
    %v1006 = vrcp.pop %v990
    %v1007 = vmul.f32 %v990, %v1006
    %v1008 = vsub.f32 1.0, %v1007
    %v1009 = vmul.f32 %v1006, %v1008
    %v1010 = vadd.f32 %v1006, %v1009
    %vm1011 = vweird.f32 %v990
    %vm1012 = vweird.f32 %v1006
    %vm1013 = vmor %vm1011, %vm1012
    %v1014 = vsel %vm1013, %v1006, %v1010
    %v1015 = vand.u32 2147483647, %v990
    %vm1016 = vcmp.eq.f32.partialorder %v1015, 8.507059e+37
    %v1017 = vand.u32 %v990, 2147483648
    %v1018 = vor.u32 1.1754944e-38, %v1017
    %v1019 = vsel %vm1016, %v1018, %v1014
    %v1020 = vmul.f32 1.0, %v1019
    %v1021 = vtanh.pop %v981
    %v1022 = vtanh.pop %v982
    %v1023 = vmul.f32 %v1005, %v683
    %v1024 = vmul.f32 %v1020, %v684
    %1027 = vrot.lane.b32.xlu0 %v1021, 32
    %v1028 = vpop.permute.xlu0 %1027
    %1029 = vrot.lane.b32.xlu0 %v1022, 32
    %v1030 = vpop.permute.xlu0 %1029
    %v1033 = vmul.f32 %v1005, %v1028
    %v1034 = vmul.f32 %v1020, %v1030
    %1037 = vrot.lane.b32.xlu0 %v1033, 32
    %v1038 = vpop.permute.xlu0 %1037
    %1039 = vrot.lane.b32.xlu0 %v1034, 32
    %v1040 = vpop.permute.xlu0 %1039
    %v1043 = vadd.f32 %v1023, %v1038
    %v1044 = vadd.f32 %v1024, %v1040
    %v1045 = vtanh.pop %v1043
    %v1046 = vtanh.pop %v1044
    %1049 = vrot.lane.b32.xlu0 %v1045, 32
    %v1050 = vpop.permute.xlu0 %1049
    %1051 = vrot.lane.b32.xlu0 %v1046, 32
    %v1052 = vpop.permute.xlu0 %1051
    %v1055 = vmul.f32 %v1005, %v1050
    %v1056 = vmul.f32 %v1020, %v1052
    %1057 = vmatpush.msra.mxu0 0.0
    %1058 = vmatpush.msra.mxu0 0.0
    %1059 = vmatpush.msra.mxu0 0.0
    %1060 = vmatpush.msra.mxu0 0.0
    %1061 = vmatpush.msra.mxu0 0.0
    %1062 = vmatpush.msra.mxu0 0.0
    %1063 = vmatpush.msra.mxu0 0.0
    %1064 = vmatpush.msra.mxu0 0.0
    %1065 = vmatpush.msra.mxu0 0.0
    %1066 = vmatpush.msra.mxu0 0.0
    %1067 = vmatpush.msra.mxu0 0.0
    %1068 = vmatpush.msra.mxu0 0.0
    %1069 = vmatpush.msra.mxu0 %v114
    %1070 = vmatpush.msra.mxu0 %v112
    %1071 = vmatpush.msra.mxu0 %v110
    %1072 = vmatpush.msra.mxu0 %v108
    %1073 = vmatmul.f32.gmra.mxu0 %v908
    %v1074 = vpop.f32.mrf.mxu0
    %v1075 = vadd.f32 0.0, %v1074
    %1076 = vmatmul.f32.gmra.mxu0 %v910
    %v1077 = vpop.f32.mrf.mxu0
    %v1078 = vadd.f32 0.0, %v1077
    %1079 = vdwg.mxu0
    %1080 = vmatpush.msra.mxu0 0.0
    %1081 = vmatpush.msra.mxu0 0.0
    %1082 = vmatpush.msra.mxu0 0.0
    %1083 = vmatpush.msra.mxu0 0.0
    %1084 = vmatpush.msra.mxu0 0.0
    %1085 = vmatpush.msra.mxu0 0.0
    %1086 = vmatpush.msra.mxu0 0.0
    %1087 = vmatpush.msra.mxu0 0.0
    %1088 = vmatpush.msra.mxu0 0.0
    %1089 = vmatpush.msra.mxu0 0.0
    %1090 = vmatpush.msra.mxu0 0.0
    %1091 = vmatpush.msra.mxu0 0.0
    %1092 = vmatpush.msra.mxu0 %v115
    %1093 = vmatpush.msra.mxu0 %v113
    %1094 = vmatpush.msra.mxu0 %v111
    %1095 = vmatpush.msra.mxu0 %v109
    %1096 = vmatmul.f32.gmra.mxu0 %v908
    %v1097 = vpop.f32.mrf.mxu0
    %v1098 = vadd.f32 0.0, %v1097
    %1099 = vmatmul.f32.gmra.mxu0 %v910
    %v1100 = vpop.f32.mrf.mxu0
    %v1101 = vadd.f32 0.0, %v1100
    %1102 = vdwg.mxu0
    %v1103 = vadd.f32 %v236, %v1075
    %v1104 = vadd.f32 %v301, %v1098
    %v1105 = vadd.f32 %v239, %v1078
    %v1106 = vadd.f32 %v304, %v1101
    %1107 = vmatpush.msra.mxu0 0.0
    %1108 = vmatpush.msra.mxu0 0.0
    %1109 = vmatpush.msra.mxu0 0.0
    %1110 = vmatpush.msra.mxu0 0.0
    %1111 = vmatpush.msra.mxu0 0.0
    %1112 = vmatpush.msra.mxu0 0.0
    %1113 = vmatpush.msra.mxu0 0.0
    %1114 = vmatpush.msra.mxu0 0.0
    %1115 = vmatpush.msra.mxu0 0.0
    %1116 = vmatpush.msra.mxu0 0.0
    %1117 = vmatpush.msra.mxu0 0.0
    %1118 = vmatpush.msra.mxu0 0.0
    %1119 = vmatpush.msra.mxu0 0.0
    %1120 = vmatpush.msra.mxu0 0.0
    %1121 = vmatpush.msra.mxu0 %v1105
    %1122 = vmatpush.msra.mxu0 %v1103
    %1123 = vmatmul.f32.gmra.mxu0 %v392
    %v1124 = vpop.f32.mrf.mxu0
    %v1125 = vadd.f32 %v1104, %v1124
    %1126 = vmatmul.f32.gmra.mxu0 %v395
    %v1127 = vpop.f32.mrf.mxu0
    %v1128 = vadd.f32 %v1106, %v1127
    %1129 = vdwg.mxu0
    %v1130 = vadd.f32 %v1125, %v126
    %v1131 = vadd.f32 %v1128, %v126
    %v1132 = vxor.u32 %v1130, 2147483648
    %v1133 = vxor.u32 %v1131, 2147483648
    %v1134 = vmul.f32 %v1132, 1.442695
    %v1135 = vpow.pop %v1134
    %v1136 = vmul.f32 %v1133, 1.442695
    %v1137 = vpow.pop %v1136
    %v1138 = vadd.f32 %v1135, 1.0
    %v1139 = vadd.f32 %v1137, 1.0
    %v1140 = vrcp.pop %v1138
    %v1141 = vmul.f32 %v1138, %v1140
    %v1142 = vsub.f32 1.0, %v1141
    %v1143 = vmul.f32 %v1140, %v1142
    %v1144 = vadd.f32 %v1140, %v1143
    %vm1145 = vweird.f32 %v1138
    %vm1146 = vweird.f32 %v1140
    %vm1147 = vmor %vm1145, %vm1146
    %v1148 = vsel %vm1147, %v1140, %v1144
    %v1149 = vand.u32 2147483647, %v1138
    %vm1150 = vcmp.eq.f32.partialorder %v1149, 8.507059e+37
    %v1151 = vand.u32 %v1138, 2147483648
    %v1152 = vor.u32 1.1754944e-38, %v1151
    %v1153 = vsel %vm1150, %v1152, %v1148
    %v1154 = vmul.f32 1.0, %v1153
    %v1155 = vrcp.pop %v1139
    %v1156 = vmul.f32 %v1139, %v1155
    %v1157 = vsub.f32 1.0, %v1156
    %v1158 = vmul.f32 %v1155, %v1157
    %v1159 = vadd.f32 %v1155, %v1158
    %vm1160 = vweird.f32 %v1139
    %vm1161 = vweird.f32 %v1155
    %vm1162 = vmor %vm1160, %vm1161
    %v1163 = vsel %vm1162, %v1155, %v1159
    %v1164 = vand.u32 2147483647, %v1139
    %vm1165 = vcmp.eq.f32.partialorder %v1164, 8.507059e+37
    %v1166 = vand.u32 %v1139, 2147483648
    %v1167 = vor.u32 1.1754944e-38, %v1166
    %v1168 = vsel %vm1165, %v1167, %v1163
    %v1169 = vmul.f32 1.0, %v1168
    %v1170 = vtanh.pop %v1130
    %v1171 = vtanh.pop %v1131
    %v1172 = vmul.f32 %v1154, %v832
    %v1173 = vmul.f32 %v1169, %v833
    %1176 = vrot.lane.b32.xlu0 %v1170, 32
    %v1177 = vpop.permute.xlu0 %1176
    %1178 = vrot.lane.b32.xlu0 %v1171, 32
    %v1179 = vpop.permute.xlu0 %1178
    %v1182 = vmul.f32 %v1154, %v1177
    %v1183 = vmul.f32 %v1169, %v1179
    %1186 = vrot.lane.b32.xlu0 %v1182, 32
    %v1187 = vpop.permute.xlu0 %1186
    %1188 = vrot.lane.b32.xlu0 %v1183, 32
    %v1189 = vpop.permute.xlu0 %1188
    %v1192 = vadd.f32 %v1172, %v1187
    %v1193 = vadd.f32 %v1173, %v1189
    %v1194 = vtanh.pop %v1192
    %v1195 = vtanh.pop %v1193
    %1198 = vrot.lane.b32.xlu0 %v1194, 32
    %v1199 = vpop.permute.xlu0 %1198
    %1200 = vrot.lane.b32.xlu0 %v1195, 32
    %v1201 = vpop.permute.xlu0 %1200
    %v1204 = vmul.f32 %v1154, %v1199
    %v1205 = vmul.f32 %v1169, %v1201
    %1208 = vrot.lane.b32.xlu0 %v1055, 64
    %v1209 = vpop.permute.xlu0 %1208
    %1210 = vrot.lane.b32.xlu0 %v1056, 64
    %v1211 = vpop.permute.xlu0 %1210
    %v1212 = vsel %vm336, %v1209, 0
    %v1214 = vsel %vm336, %v1211, 0
    %1216 = vmatpush.msra.mxu0 0.0
    %1217 = vmatpush.msra.mxu0 0.0
    %1218 = vmatpush.msra.mxu0 0.0
    %1219 = vmatpush.msra.mxu0 0.0
    %1220 = vmatpush.msra.mxu0 0.0
    %1221 = vmatpush.msra.mxu0 0.0
    %1222 = vmatpush.msra.mxu0 0.0
    %1223 = vmatpush.msra.mxu0 0.0
    %1224 = vmatpush.msra.mxu0 0.0
    %1225 = vmatpush.msra.mxu0 0.0
    %1226 = vmatpush.msra.mxu0 0.0
    %1227 = vmatpush.msra.mxu0 0.0
    %1228 = vmatpush.msra.mxu0 %v122
    %1229 = vmatpush.msra.mxu0 %v120
    %1230 = vmatpush.msra.mxu0 %v118
    %1231 = vmatpush.msra.mxu0 %v116
    %1232 = vmatmul.f32.gmra.mxu0 %v1212
    %v1233 = vpop.f32.mrf.mxu0
    %v1234 = vadd.f32 0.0, %v1233
    %1235 = vmatmul.f32.gmra.mxu0 %v1214
    %v1236 = vpop.f32.mrf.mxu0
    %v1237 = vadd.f32 0.0, %v1236
    %1238 = vdwg.mxu0
    %1239 = vmatpush.msra.mxu0 0.0
    %1240 = vmatpush.msra.mxu0 0.0
    %1241 = vmatpush.msra.mxu0 0.0
    %1242 = vmatpush.msra.mxu0 0.0
    %1243 = vmatpush.msra.mxu0 0.0
    %1244 = vmatpush.msra.mxu0 0.0
    %1245 = vmatpush.msra.mxu0 0.0
    %1246 = vmatpush.msra.mxu0 0.0
    %1247 = vmatpush.msra.mxu0 0.0
    %1248 = vmatpush.msra.mxu0 0.0
    %1249 = vmatpush.msra.mxu0 0.0
    %1250 = vmatpush.msra.mxu0 0.0
    %1251 = vmatpush.msra.mxu0 %v123
    %1252 = vmatpush.msra.mxu0 %v121
    %1253 = vmatpush.msra.mxu0 %v119
    %1254 = vmatpush.msra.mxu0 %v117
    %1255 = vmatmul.f32.gmra.mxu0 %v1212
    %v1256 = vpop.f32.mrf.mxu0
    %v1257 = vadd.f32 0.0, %v1256
    %1258 = vmatmul.f32.gmra.mxu0 %v1214
    %v1259 = vpop.f32.mrf.mxu0
    %v1260 = vadd.f32 0.0, %v1259
    %1261 = vdwg.mxu0
    %1264 = vrot.lane.b32.xlu0 %v1204, 64
    %v1265 = vpop.permute.xlu0 %1264
    %1266 = vrot.lane.b32.xlu0 %v1205, 64
    %v1267 = vpop.permute.xlu0 %1266
    %v1268 = vsel %vm336, %v1265, 0
    %v1270 = vsel %vm336, %v1267, 0
    %1272 = vmatpush.msra.mxu0 0.0
    %1273 = vmatpush.msra.mxu0 0.0
    %1274 = vmatpush.msra.mxu0 0.0
    %1275 = vmatpush.msra.mxu0 0.0
    %1276 = vmatpush.msra.mxu0 0.0
    %1277 = vmatpush.msra.mxu0 0.0
    %1278 = vmatpush.msra.mxu0 0.0
    %1279 = vmatpush.msra.mxu0 0.0
    %1280 = vmatpush.msra.mxu0 0.0
    %1281 = vmatpush.msra.mxu0 0.0
    %1282 = vmatpush.msra.mxu0 0.0
    %1283 = vmatpush.msra.mxu0 0.0
    %1284 = vmatpush.msra.mxu0 %v106
    %1285 = vmatpush.msra.mxu0 %v104
    %1286 = vmatpush.msra.mxu0 %v102
    %1287 = vmatpush.msra.mxu0 %v100
    %1288 = vmatmul.f32.gmra.mxu0 %v1268
    %v1289 = vpop.f32.mrf.mxu0
    %v1290 = vadd.f32 %v1234, %v1289
    %1291 = vmatmul.f32.gmra.mxu0 %v1270
    %v1292 = vpop.f32.mrf.mxu0
    %v1293 = vadd.f32 %v1237, %v1292
    %1294 = vdwg.mxu0
    %1295 = vmatpush.msra.mxu0 0.0
    %1296 = vmatpush.msra.mxu0 0.0
    %1297 = vmatpush.msra.mxu0 0.0
    %1298 = vmatpush.msra.mxu0 0.0
    %1299 = vmatpush.msra.mxu0 0.0
    %1300 = vmatpush.msra.mxu0 0.0
    %1301 = vmatpush.msra.mxu0 0.0
    %1302 = vmatpush.msra.mxu0 0.0
    %1303 = vmatpush.msra.mxu0 0.0
    %1304 = vmatpush.msra.mxu0 0.0
    %1305 = vmatpush.msra.mxu0 0.0
    %1306 = vmatpush.msra.mxu0 0.0
    %1307 = vmatpush.msra.mxu0 %v107
    %1308 = vmatpush.msra.mxu0 %v105
    %1309 = vmatpush.msra.mxu0 %v103
    %1310 = vmatpush.msra.mxu0 %v101
    %1311 = vmatmul.f32.gmra.mxu0 %v1268
    %v1312 = vpop.f32.mrf.mxu0
    %v1313 = vadd.f32 %v1257, %v1312
    %1314 = vmatmul.f32.gmra.mxu0 %v1270
    %v1315 = vpop.f32.mrf.mxu0
    %v1316 = vadd.f32 %v1260, %v1315
    %1317 = vdwg.mxu0
    %1318 = vmatpush.msra.mxu0 0.0
    %1319 = vmatpush.msra.mxu0 0.0
    %1320 = vmatpush.msra.mxu0 0.0
    %1321 = vmatpush.msra.mxu0 0.0
    %1322 = vmatpush.msra.mxu0 0.0
    %1323 = vmatpush.msra.mxu0 0.0
    %1324 = vmatpush.msra.mxu0 0.0
    %1325 = vmatpush.msra.mxu0 0.0
    %1326 = vmatpush.msra.mxu0 0.0
    %1327 = vmatpush.msra.mxu0 0.0
    %1328 = vmatpush.msra.mxu0 0.0
    %1329 = vmatpush.msra.mxu0 0.0
    %1330 = vmatpush.msra.mxu0 0.0
    %1331 = vmatpush.msra.mxu0 0.0
    %1332 = vmatpush.msra.mxu0 %v1293
    %1333 = vmatpush.msra.mxu0 %v1290
    %1334 = vmatmul.f32.gmra.mxu0 %v392
    %v1335 = vpop.f32.mrf.mxu0
    %v1336 = vadd.f32 %v1313, %v1335
    %1337 = vmatmul.f32.gmra.mxu0 %v395
    %v1338 = vpop.f32.mrf.mxu0
    %v1339 = vadd.f32 %v1316, %v1338
    %1340 = vdwg.mxu0
    %v1341 = vadd.f32 %v1336, %v130
    %v1342 = vadd.f32 %v1339, %v130
    %v1343 = vxor.u32 %v1341, 2147483648
    %v1344 = vxor.u32 %v1342, 2147483648
    %v1345 = vmul.f32 %v1343, 1.442695
    %v1346 = vpow.pop %v1345
    %v1347 = vmul.f32 %v1344, 1.442695
    %v1348 = vpow.pop %v1347
    %v1349 = vadd.f32 %v1346, 1.0
    %v1350 = vadd.f32 %v1348, 1.0
    %v1351 = vrcp.pop %v1349
    %v1352 = vmul.f32 %v1349, %v1351
    %v1353 = vsub.f32 1.0, %v1352
    %v1354 = vmul.f32 %v1351, %v1353
    %v1355 = vadd.f32 %v1351, %v1354
    %vm1356 = vweird.f32 %v1349
    %vm1357 = vweird.f32 %v1351
    %vm1358 = vmor %vm1356, %vm1357
    %v1359 = vsel %vm1358, %v1351, %v1355
    %v1360 = vand.u32 2147483647, %v1349
    %vm1361 = vcmp.eq.f32.partialorder %v1360, 8.507059e+37
    %v1362 = vand.u32 %v1349, 2147483648
    %v1363 = vor.u32 1.1754944e-38, %v1362
    %v1364 = vsel %vm1361, %v1363, %v1359
    %v1365 = vmul.f32 1.0, %v1364
    %v1366 = vrcp.pop %v1350
    %v1367 = vmul.f32 %v1350, %v1366
    %v1368 = vsub.f32 1.0, %v1367
    %v1369 = vmul.f32 %v1366, %v1368
    %v1370 = vadd.f32 %v1366, %v1369
    %vm1371 = vweird.f32 %v1350
    %vm1372 = vweird.f32 %v1366
    %vm1373 = vmor %vm1371, %vm1372
    %v1374 = vsel %vm1373, %v1366, %v1370
    %v1375 = vand.u32 2147483647, %v1350
    %vm1376 = vcmp.eq.f32.partialorder %v1375, 8.507059e+37
    %v1377 = vand.u32 %v1350, 2147483648
    %v1378 = vor.u32 1.1754944e-38, %v1377
    %v1379 = vsel %vm1376, %v1378, %v1374
    %v1380 = vmul.f32 1.0, %v1379
    %v1381 = vtanh.pop %v1341
    %v1382 = vtanh.pop %v1342
    %v1383 = vmul.f32 %v1365, %v1043
    %v1384 = vmul.f32 %v1380, %v1044
    %1387 = vrot.lane.b32.xlu0 %v1381, 32
    %v1388 = vpop.permute.xlu0 %1387
    %1389 = vrot.lane.b32.xlu0 %v1382, 32
    %v1390 = vpop.permute.xlu0 %1389
    %v1393 = vmul.f32 %v1365, %v1388
    %v1394 = vmul.f32 %v1380, %v1390
    %1397 = vrot.lane.b32.xlu0 %v1393, 32
    %v1398 = vpop.permute.xlu0 %1397
    %1399 = vrot.lane.b32.xlu0 %v1394, 32
    %v1400 = vpop.permute.xlu0 %1399
    %v1403 = vadd.f32 %v1383, %v1398
    %v1404 = vadd.f32 %v1384, %v1400
    %v1405 = vtanh.pop %v1403
    %v1406 = vtanh.pop %v1404
    %1409 = vrot.lane.b32.xlu0 %v1405, 32
    %v1410 = vpop.permute.xlu0 %1409
    %1411 = vrot.lane.b32.xlu0 %v1406, 32
    %v1412 = vpop.permute.xlu0 %1411
    %v1415 = vmul.f32 %v1365, %v1410
    %v1416 = vmul.f32 %v1380, %v1412
    %1417 = vmatpush.msra.mxu0 0.0
    %1418 = vmatpush.msra.mxu0 0.0
    %1419 = vmatpush.msra.mxu0 0.0
    %1420 = vmatpush.msra.mxu0 0.0
    %1421 = vmatpush.msra.mxu0 0.0
    %1422 = vmatpush.msra.mxu0 0.0
    %1423 = vmatpush.msra.mxu0 0.0
    %1424 = vmatpush.msra.mxu0 0.0
    %1425 = vmatpush.msra.mxu0 0.0
    %1426 = vmatpush.msra.mxu0 0.0
    %1427 = vmatpush.msra.mxu0 0.0
    %1428 = vmatpush.msra.mxu0 0.0
    %1429 = vmatpush.msra.mxu0 %v114
    %1430 = vmatpush.msra.mxu0 %v112
    %1431 = vmatpush.msra.mxu0 %v110
    %1432 = vmatpush.msra.mxu0 %v108
    %1433 = vmatmul.f32.gmra.mxu0 %v1268
    %v1434 = vpop.f32.mrf.mxu0
    %v1435 = vadd.f32 0.0, %v1434
    %1436 = vmatmul.f32.gmra.mxu0 %v1270
    %v1437 = vpop.f32.mrf.mxu0
    %v1438 = vadd.f32 0.0, %v1437
    %1439 = vdwg.mxu0
    %1440 = vmatpush.msra.mxu0 0.0
    %1441 = vmatpush.msra.mxu0 0.0
    %1442 = vmatpush.msra.mxu0 0.0
    %1443 = vmatpush.msra.mxu0 0.0
    %1444 = vmatpush.msra.mxu0 0.0
    %1445 = vmatpush.msra.mxu0 0.0
    %1446 = vmatpush.msra.mxu0 0.0
    %1447 = vmatpush.msra.mxu0 0.0
    %1448 = vmatpush.msra.mxu0 0.0
    %1449 = vmatpush.msra.mxu0 0.0
    %1450 = vmatpush.msra.mxu0 0.0
    %1451 = vmatpush.msra.mxu0 0.0
    %1452 = vmatpush.msra.mxu0 %v115
    %1453 = vmatpush.msra.mxu0 %v113
    %1454 = vmatpush.msra.mxu0 %v111
    %1455 = vmatpush.msra.mxu0 %v109
    %1456 = vmatmul.f32.gmra.mxu0 %v1268
    %v1457 = vpop.f32.mrf.mxu0
    %v1458 = vadd.f32 0.0, %v1457
    %1459 = vmatmul.f32.gmra.mxu0 %v1270
    %v1460 = vpop.f32.mrf.mxu0
    %v1461 = vadd.f32 0.0, %v1460
    %1462 = vdwg.mxu0
    %v1463 = vadd.f32 %v242, %v1435
    %v1464 = vadd.f32 %v307, %v1458
    %v1465 = vadd.f32 %v245, %v1438
    %v1466 = vadd.f32 %v310, %v1461
    %1467 = vmatpush.msra.mxu0 0.0
    %1468 = vmatpush.msra.mxu0 0.0
    %1469 = vmatpush.msra.mxu0 0.0
    %1470 = vmatpush.msra.mxu0 0.0
    %1471 = vmatpush.msra.mxu0 0.0
    %1472 = vmatpush.msra.mxu0 0.0
    %1473 = vmatpush.msra.mxu0 0.0
    %1474 = vmatpush.msra.mxu0 0.0
    %1475 = vmatpush.msra.mxu0 0.0
    %1476 = vmatpush.msra.mxu0 0.0
    %1477 = vmatpush.msra.mxu0 0.0
    %1478 = vmatpush.msra.mxu0 0.0
    %1479 = vmatpush.msra.mxu0 0.0
    %1480 = vmatpush.msra.mxu0 0.0
    %1481 = vmatpush.msra.mxu0 %v1465
    %1482 = vmatpush.msra.mxu0 %v1463
    %1483 = vmatmul.f32.gmra.mxu0 %v392
    %v1484 = vpop.f32.mrf.mxu0
    %v1485 = vadd.f32 %v1464, %v1484
    %1486 = vmatmul.f32.gmra.mxu0 %v395
    %v1487 = vpop.f32.mrf.mxu0
    %v1488 = vadd.f32 %v1466, %v1487
    %1489 = vdwg.mxu0
    %v1490 = vadd.f32 %v1485, %v126
    %v1491 = vadd.f32 %v1488, %v126
    %v1492 = vxor.u32 %v1490, 2147483648
    %v1493 = vxor.u32 %v1491, 2147483648
    %v1494 = vmul.f32 %v1492, 1.442695
    %v1495 = vpow.pop %v1494
    %v1496 = vmul.f32 %v1493, 1.442695
    %v1497 = vpow.pop %v1496
    %v1498 = vadd.f32 %v1495, 1.0
    %v1499 = vadd.f32 %v1497, 1.0
    %v1500 = vrcp.pop %v1498
    %v1501 = vmul.f32 %v1498, %v1500
    %v1502 = vsub.f32 1.0, %v1501
    %v1503 = vmul.f32 %v1500, %v1502
    %v1504 = vadd.f32 %v1500, %v1503
    %vm1505 = vweird.f32 %v1498
    %vm1506 = vweird.f32 %v1500
    %vm1507 = vmor %vm1505, %vm1506
    %v1508 = vsel %vm1507, %v1500, %v1504
    %v1509 = vand.u32 2147483647, %v1498
    %vm1510 = vcmp.eq.f32.partialorder %v1509, 8.507059e+37
    %v1511 = vand.u32 %v1498, 2147483648
    %v1512 = vor.u32 1.1754944e-38, %v1511
    %v1513 = vsel %vm1510, %v1512, %v1508
    %v1514 = vmul.f32 1.0, %v1513
    %v1515 = vrcp.pop %v1499
    %v1516 = vmul.f32 %v1499, %v1515
    %v1517 = vsub.f32 1.0, %v1516
    %v1518 = vmul.f32 %v1515, %v1517
    %v1519 = vadd.f32 %v1515, %v1518
    %vm1520 = vweird.f32 %v1499
    %vm1521 = vweird.f32 %v1515
    %vm1522 = vmor %vm1520, %vm1521
    %v1523 = vsel %vm1522, %v1515, %v1519
    %v1524 = vand.u32 2147483647, %v1499
    %vm1525 = vcmp.eq.f32.partialorder %v1524, 8.507059e+37
    %v1526 = vand.u32 %v1499, 2147483648
    %v1527 = vor.u32 1.1754944e-38, %v1526
    %v1528 = vsel %vm1525, %v1527, %v1523
    %v1529 = vmul.f32 1.0, %v1528
    %v1530 = vtanh.pop %v1490
    %v1531 = vtanh.pop %v1491
    %v1532 = vmul.f32 %v1514, %v1192
    %v1533 = vmul.f32 %v1529, %v1193
    %1536 = vrot.lane.b32.xlu0 %v1530, 32
    %v1537 = vpop.permute.xlu0 %1536
    %1538 = vrot.lane.b32.xlu0 %v1531, 32
    %v1539 = vpop.permute.xlu0 %1538
    %v1542 = vmul.f32 %v1514, %v1537
    %v1543 = vmul.f32 %v1529, %v1539
    %1546 = vrot.lane.b32.xlu0 %v1542, 32
    %v1547 = vpop.permute.xlu0 %1546
    %1548 = vrot.lane.b32.xlu0 %v1543, 32
    %v1549 = vpop.permute.xlu0 %1548
    %v1552 = vadd.f32 %v1532, %v1547
    %v1553 = vadd.f32 %v1533, %v1549
    %v1554 = vtanh.pop %v1552
    %v1555 = vtanh.pop %v1553
    %1558 = vrot.lane.b32.xlu0 %v1554, 32
    %v1559 = vpop.permute.xlu0 %1558
    %1560 = vrot.lane.b32.xlu0 %v1555, 32
    %v1561 = vpop.permute.xlu0 %1560
    %v1564 = vmul.f32 %v1514, %v1559
    %v1565 = vmul.f32 %v1529, %v1561
    %1568 = vrot.lane.b32.xlu0 %v1415, 64
    %v1569 = vpop.permute.xlu0 %1568
    %1570 = vrot.lane.b32.xlu0 %v1416, 64
    %v1571 = vpop.permute.xlu0 %1570
    %v1572 = vsel %vm336, %v1569, 0
    %v1574 = vsel %vm336, %v1571, 0
    %1576 = vmatpush.msra.mxu0 0.0
    %1577 = vmatpush.msra.mxu0 0.0
    %1578 = vmatpush.msra.mxu0 0.0
    %1579 = vmatpush.msra.mxu0 0.0
    %1580 = vmatpush.msra.mxu0 0.0
    %1581 = vmatpush.msra.mxu0 0.0
    %1582 = vmatpush.msra.mxu0 0.0
    %1583 = vmatpush.msra.mxu0 0.0
    %1584 = vmatpush.msra.mxu0 0.0
    %1585 = vmatpush.msra.mxu0 0.0
    %1586 = vmatpush.msra.mxu0 0.0
    %1587 = vmatpush.msra.mxu0 0.0
    %1588 = vmatpush.msra.mxu0 %v122
    %1589 = vmatpush.msra.mxu0 %v120
    %1590 = vmatpush.msra.mxu0 %v118
    %1591 = vmatpush.msra.mxu0 %v116
    %1592 = vmatmul.f32.gmra.mxu0 %v1572
    %v1593 = vpop.f32.mrf.mxu0
    %v1594 = vadd.f32 0.0, %v1593
    %1595 = vmatmul.f32.gmra.mxu0 %v1574
    %v1596 = vpop.f32.mrf.mxu0
    %v1597 = vadd.f32 0.0, %v1596
    %1598 = vdwg.mxu0
    %1599 = vmatpush.msra.mxu0 0.0
    %1600 = vmatpush.msra.mxu0 0.0
    %1601 = vmatpush.msra.mxu0 0.0
    %1602 = vmatpush.msra.mxu0 0.0
    %1603 = vmatpush.msra.mxu0 0.0
    %1604 = vmatpush.msra.mxu0 0.0
    %1605 = vmatpush.msra.mxu0 0.0
    %1606 = vmatpush.msra.mxu0 0.0
    %1607 = vmatpush.msra.mxu0 0.0
    %1608 = vmatpush.msra.mxu0 0.0
    %1609 = vmatpush.msra.mxu0 0.0
    %1610 = vmatpush.msra.mxu0 0.0
    %1611 = vmatpush.msra.mxu0 %v123
    %1612 = vmatpush.msra.mxu0 %v121
    %1613 = vmatpush.msra.mxu0 %v119
    %1614 = vmatpush.msra.mxu0 %v117
    %1615 = vmatmul.f32.gmra.mxu0 %v1572
    %v1616 = vpop.f32.mrf.mxu0
    %v1617 = vadd.f32 0.0, %v1616
    %1618 = vmatmul.f32.gmra.mxu0 %v1574
    %v1619 = vpop.f32.mrf.mxu0
    %v1620 = vadd.f32 0.0, %v1619
    %1621 = vdwg.mxu0
    %1624 = vrot.lane.b32.xlu0 %v1564, 64
    %v1625 = vpop.permute.xlu0 %1624
    %1626 = vrot.lane.b32.xlu0 %v1565, 64
    %v1627 = vpop.permute.xlu0 %1626
    %v1628 = vsel %vm336, %v1625, 0
    %v1630 = vsel %vm336, %v1627, 0
    %1632 = vmatpush.msra.mxu0 0.0
    %1633 = vmatpush.msra.mxu0 0.0
    %1634 = vmatpush.msra.mxu0 0.0
    %1635 = vmatpush.msra.mxu0 0.0
    %1636 = vmatpush.msra.mxu0 0.0
    %1637 = vmatpush.msra.mxu0 0.0
    %1638 = vmatpush.msra.mxu0 0.0
    %1639 = vmatpush.msra.mxu0 0.0
    %1640 = vmatpush.msra.mxu0 0.0
    %1641 = vmatpush.msra.mxu0 0.0
    %1642 = vmatpush.msra.mxu0 0.0
    %1643 = vmatpush.msra.mxu0 0.0
    %1644 = vmatpush.msra.mxu0 %v106
    %1645 = vmatpush.msra.mxu0 %v104
    %1646 = vmatpush.msra.mxu0 %v102
    %1647 = vmatpush.msra.mxu0 %v100
    %1648 = vmatmul.f32.gmra.mxu0 %v1628
    %v1649 = vpop.f32.mrf.mxu0
    %v1650 = vadd.f32 %v1594, %v1649
    %1651 = vmatmul.f32.gmra.mxu0 %v1630
    %v1652 = vpop.f32.mrf.mxu0
    %v1653 = vadd.f32 %v1597, %v1652
    %1654 = vdwg.mxu0
    %1655 = vmatpush.msra.mxu0 0.0
    %1656 = vmatpush.msra.mxu0 0.0
    %1657 = vmatpush.msra.mxu0 0.0
    %1658 = vmatpush.msra.mxu0 0.0
    %1659 = vmatpush.msra.mxu0 0.0
    %1660 = vmatpush.msra.mxu0 0.0
    %1661 = vmatpush.msra.mxu0 0.0
    %1662 = vmatpush.msra.mxu0 0.0
    %1663 = vmatpush.msra.mxu0 0.0
    %1664 = vmatpush.msra.mxu0 0.0
    %1665 = vmatpush.msra.mxu0 0.0
    %1666 = vmatpush.msra.mxu0 0.0
    %1667 = vmatpush.msra.mxu0 %v107
    %1668 = vmatpush.msra.mxu0 %v105
    %1669 = vmatpush.msra.mxu0 %v103
    %1670 = vmatpush.msra.mxu0 %v101
    %1671 = vmatmul.f32.gmra.mxu0 %v1628
    %v1672 = vpop.f32.mrf.mxu0
    %v1673 = vadd.f32 %v1617, %v1672
    %1674 = vmatmul.f32.gmra.mxu0 %v1630
    %v1675 = vpop.f32.mrf.mxu0
    %v1676 = vadd.f32 %v1620, %v1675
    %1677 = vdwg.mxu0
    %1678 = vmatpush.msra.mxu0 0.0
    %1679 = vmatpush.msra.mxu0 0.0
    %1680 = vmatpush.msra.mxu0 0.0
    %1681 = vmatpush.msra.mxu0 0.0
    %1682 = vmatpush.msra.mxu0 0.0
    %1683 = vmatpush.msra.mxu0 0.0
    %1684 = vmatpush.msra.mxu0 0.0
    %1685 = vmatpush.msra.mxu0 0.0
    %1686 = vmatpush.msra.mxu0 0.0
    %1687 = vmatpush.msra.mxu0 0.0
    %1688 = vmatpush.msra.mxu0 0.0
    %1689 = vmatpush.msra.mxu0 0.0
    %1690 = vmatpush.msra.mxu0 0.0
    %1691 = vmatpush.msra.mxu0 0.0
    %1692 = vmatpush.msra.mxu0 %v1653
    %1693 = vmatpush.msra.mxu0 %v1650
    %1694 = vmatmul.f32.gmra.mxu0 %v392
    %v1695 = vpop.f32.mrf.mxu0
    %v1696 = vadd.f32 %v1673, %v1695
    %1697 = vmatmul.f32.gmra.mxu0 %v395
    %v1698 = vpop.f32.mrf.mxu0
    %v1699 = vadd.f32 %v1676, %v1698
    %1700 = vdwg.mxu0
    %v1701 = vadd.f32 %v1696, %v130
    %v1702 = vadd.f32 %v1699, %v130
    %v1703 = vxor.u32 %v1701, 2147483648
    %v1704 = vxor.u32 %v1702, 2147483648
    %v1705 = vmul.f32 %v1703, 1.442695
    %v1706 = vpow.pop %v1705
    %v1707 = vmul.f32 %v1704, 1.442695
    %v1708 = vpow.pop %v1707
    %v1709 = vadd.f32 %v1706, 1.0
    %v1710 = vadd.f32 %v1708, 1.0
    %v1711 = vrcp.pop %v1709
    %v1712 = vmul.f32 %v1709, %v1711
    %v1713 = vsub.f32 1.0, %v1712
    %v1714 = vmul.f32 %v1711, %v1713
    %v1715 = vadd.f32 %v1711, %v1714
    %vm1716 = vweird.f32 %v1709
    %vm1717 = vweird.f32 %v1711
    %vm1718 = vmor %vm1716, %vm1717
    %v1719 = vsel %vm1718, %v1711, %v1715
    %v1720 = vand.u32 2147483647, %v1709
    %vm1721 = vcmp.eq.f32.partialorder %v1720, 8.507059e+37
    %v1722 = vand.u32 %v1709, 2147483648
    %v1723 = vor.u32 1.1754944e-38, %v1722
    %v1724 = vsel %vm1721, %v1723, %v1719
    %v1725 = vmul.f32 1.0, %v1724
    %v1726 = vrcp.pop %v1710
    %v1727 = vmul.f32 %v1710, %v1726
    %v1728 = vsub.f32 1.0, %v1727
    %v1729 = vmul.f32 %v1726, %v1728
    %v1730 = vadd.f32 %v1726, %v1729
    %vm1731 = vweird.f32 %v1710
    %vm1732 = vweird.f32 %v1726
    %vm1733 = vmor %vm1731, %vm1732
    %v1734 = vsel %vm1733, %v1726, %v1730
    %v1735 = vand.u32 2147483647, %v1710
    %vm1736 = vcmp.eq.f32.partialorder %v1735, 8.507059e+37
    %v1737 = vand.u32 %v1710, 2147483648
    %v1738 = vor.u32 1.1754944e-38, %v1737
    %v1739 = vsel %vm1736, %v1738, %v1734
    %v1740 = vmul.f32 1.0, %v1739
    %v1741 = vtanh.pop %v1701
    %v1742 = vtanh.pop %v1702
    %v1743 = vmul.f32 %v1725, %v1403
    %v1744 = vmul.f32 %v1740, %v1404
    %1747 = vrot.lane.b32.xlu0 %v1741, 32
    %v1748 = vpop.permute.xlu0 %1747
    %1749 = vrot.lane.b32.xlu0 %v1742, 32
    %v1750 = vpop.permute.xlu0 %1749
    %v1753 = vmul.f32 %v1725, %v1748
    %v1754 = vmul.f32 %v1740, %v1750
    %1757 = vrot.lane.b32.xlu0 %v1753, 32
    %v1758 = vpop.permute.xlu0 %1757
    %1759 = vrot.lane.b32.xlu0 %v1754, 32
    %v1760 = vpop.permute.xlu0 %1759
    %v1763 = vadd.f32 %v1743, %v1758
    %v1764 = vadd.f32 %v1744, %v1760
    %v1765 = vtanh.pop %v1763
    %v1766 = vtanh.pop %v1764
    %1769 = vrot.lane.b32.xlu0 %v1765, 32
    %v1770 = vpop.permute.xlu0 %1769
    %1771 = vrot.lane.b32.xlu0 %v1766, 32
    %v1772 = vpop.permute.xlu0 %1771
    %v1775 = vmul.f32 %v1725, %v1770
    %v1776 = vmul.f32 %v1740, %v1772
    %1777 = vmatpush.msra.mxu0 0.0
    %1778 = vmatpush.msra.mxu0 0.0
    %1779 = vmatpush.msra.mxu0 0.0
    %1780 = vmatpush.msra.mxu0 0.0
    %1781 = vmatpush.msra.mxu0 0.0
    %1782 = vmatpush.msra.mxu0 0.0
    %1783 = vmatpush.msra.mxu0 0.0
    %1784 = vmatpush.msra.mxu0 0.0
    %1785 = vmatpush.msra.mxu0 0.0
    %1786 = vmatpush.msra.mxu0 0.0
    %1787 = vmatpush.msra.mxu0 0.0
    %1788 = vmatpush.msra.mxu0 0.0
    %1789 = vmatpush.msra.mxu0 %v114
    %1790 = vmatpush.msra.mxu0 %v112
    %1791 = vmatpush.msra.mxu0 %v110
    %1792 = vmatpush.msra.mxu0 %v108
    %1793 = vmatmul.f32.gmra.mxu0 %v1628
    %v1794 = vpop.f32.mrf.mxu0
    %v1795 = vadd.f32 0.0, %v1794
    %1796 = vmatmul.f32.gmra.mxu0 %v1630
    %v1797 = vpop.f32.mrf.mxu0
    %v1798 = vadd.f32 0.0, %v1797
    %1799 = vdwg.mxu0
    %1800 = vmatpush.msra.mxu0 0.0
    %1801 = vmatpush.msra.mxu0 0.0
    %1802 = vmatpush.msra.mxu0 0.0
    %1803 = vmatpush.msra.mxu0 0.0
    %1804 = vmatpush.msra.mxu0 0.0
    %1805 = vmatpush.msra.mxu0 0.0
    %1806 = vmatpush.msra.mxu0 0.0
    %1807 = vmatpush.msra.mxu0 0.0
    %1808 = vmatpush.msra.mxu0 0.0
    %1809 = vmatpush.msra.mxu0 0.0
    %1810 = vmatpush.msra.mxu0 0.0
    %1811 = vmatpush.msra.mxu0 0.0
    %1812 = vmatpush.msra.mxu0 %v115
    %1813 = vmatpush.msra.mxu0 %v113
    %1814 = vmatpush.msra.mxu0 %v111
    %1815 = vmatpush.msra.mxu0 %v109
    %1816 = vmatmul.f32.gmra.mxu0 %v1628
    %v1817 = vpop.f32.mrf.mxu0
    %v1818 = vadd.f32 0.0, %v1817
    %1819 = vmatmul.f32.gmra.mxu0 %v1630
    %v1820 = vpop.f32.mrf.mxu0
    %v1821 = vadd.f32 0.0, %v1820
    %1822 = vdwg.mxu0
    %v1823 = vadd.f32 %v248, %v1795
    %v1824 = vadd.f32 %v313, %v1818
    %v1825 = vadd.f32 %v251, %v1798
    %v1826 = vadd.f32 %v316, %v1821
    %1827 = vmatpush.msra.mxu0 0.0
    %1828 = vmatpush.msra.mxu0 0.0
    %1829 = vmatpush.msra.mxu0 0.0
    %1830 = vmatpush.msra.mxu0 0.0
    %1831 = vmatpush.msra.mxu0 0.0
    %1832 = vmatpush.msra.mxu0 0.0
    %1833 = vmatpush.msra.mxu0 0.0
    %1834 = vmatpush.msra.mxu0 0.0
    %1835 = vmatpush.msra.mxu0 0.0
    %1836 = vmatpush.msra.mxu0 0.0
    %1837 = vmatpush.msra.mxu0 0.0
    %1838 = vmatpush.msra.mxu0 0.0
    %1839 = vmatpush.msra.mxu0 0.0
    %1840 = vmatpush.msra.mxu0 0.0
    %1841 = vmatpush.msra.mxu0 %v1825
    %1842 = vmatpush.msra.mxu0 %v1823
    %1843 = vmatmul.f32.gmra.mxu0 %v392
    %v1844 = vpop.f32.mrf.mxu0
    %v1845 = vadd.f32 %v1824, %v1844
    %1846 = vmatmul.f32.gmra.mxu0 %v395
    %v1847 = vpop.f32.mrf.mxu0
    %v1848 = vadd.f32 %v1826, %v1847
    %1849 = vdwg.mxu0
    %v1850 = vadd.f32 %v1845, %v126
    %v1851 = vadd.f32 %v1848, %v126
    %v1852 = vxor.u32 %v1850, 2147483648
    %v1853 = vxor.u32 %v1851, 2147483648
    %v1854 = vmul.f32 %v1852, 1.442695
    %v1855 = vpow.pop %v1854
    %v1856 = vmul.f32 %v1853, 1.442695
    %v1857 = vpow.pop %v1856
    %v1858 = vadd.f32 %v1855, 1.0
    %v1859 = vadd.f32 %v1857, 1.0
    %v1860 = vrcp.pop %v1858
    %v1861 = vmul.f32 %v1858, %v1860
    %v1862 = vsub.f32 1.0, %v1861
    %v1863 = vmul.f32 %v1860, %v1862
    %v1864 = vadd.f32 %v1860, %v1863
    %vm1865 = vweird.f32 %v1858
    %vm1866 = vweird.f32 %v1860
    %vm1867 = vmor %vm1865, %vm1866
    %v1868 = vsel %vm1867, %v1860, %v1864
    %v1869 = vand.u32 2147483647, %v1858
    %vm1870 = vcmp.eq.f32.partialorder %v1869, 8.507059e+37
    %v1871 = vand.u32 %v1858, 2147483648
    %v1872 = vor.u32 1.1754944e-38, %v1871
    %v1873 = vsel %vm1870, %v1872, %v1868
    %v1874 = vmul.f32 1.0, %v1873
    %v1875 = vrcp.pop %v1859
    %v1876 = vmul.f32 %v1859, %v1875
    %v1877 = vsub.f32 1.0, %v1876
    %v1878 = vmul.f32 %v1875, %v1877
    %v1879 = vadd.f32 %v1875, %v1878
    %vm1880 = vweird.f32 %v1859
    %vm1881 = vweird.f32 %v1875
    %vm1882 = vmor %vm1880, %vm1881
    %v1883 = vsel %vm1882, %v1875, %v1879
    %v1884 = vand.u32 2147483647, %v1859
    %vm1885 = vcmp.eq.f32.partialorder %v1884, 8.507059e+37
    %v1886 = vand.u32 %v1859, 2147483648
    %v1887 = vor.u32 1.1754944e-38, %v1886
    %v1888 = vsel %vm1885, %v1887, %v1883
    %v1889 = vmul.f32 1.0, %v1888
    %v1890 = vtanh.pop %v1850
    %v1891 = vtanh.pop %v1851
    %v1892 = vmul.f32 %v1874, %v1552
    %v1893 = vmul.f32 %v1889, %v1553
    %1896 = vrot.lane.b32.xlu0 %v1890, 32
    %v1897 = vpop.permute.xlu0 %1896
    %1898 = vrot.lane.b32.xlu0 %v1891, 32
    %v1899 = vpop.permute.xlu0 %1898
    %v1902 = vmul.f32 %v1874, %v1897
    %v1903 = vmul.f32 %v1889, %v1899
    %1906 = vrot.lane.b32.xlu0 %v1902, 32
    %v1907 = vpop.permute.xlu0 %1906
    %1908 = vrot.lane.b32.xlu0 %v1903, 32
    %v1909 = vpop.permute.xlu0 %1908
    %v1912 = vadd.f32 %v1892, %v1907
    %v1913 = vadd.f32 %v1893, %v1909
    %v1914 = vtanh.pop %v1912
    %v1915 = vtanh.pop %v1913
    %1918 = vrot.lane.b32.xlu0 %v1914, 32
    %v1919 = vpop.permute.xlu0 %1918
    %1920 = vrot.lane.b32.xlu0 %v1915, 32
    %v1921 = vpop.permute.xlu0 %1920
    %v1924 = vmul.f32 %v1874, %v1919
    %v1925 = vmul.f32 %v1889, %v1921
    %1928 = vrot.lane.b32.xlu0 %v1775, 64
    %v1929 = vpop.permute.xlu0 %1928
    %1930 = vrot.lane.b32.xlu0 %v1776, 64
    %v1931 = vpop.permute.xlu0 %1930
    %v1932 = vsel %vm336, %v1929, 0
    %v1934 = vsel %vm336, %v1931, 0
    %1936 = vmatpush.msra.mxu0 0.0
    %1937 = vmatpush.msra.mxu0 0.0
    %1938 = vmatpush.msra.mxu0 0.0
    %1939 = vmatpush.msra.mxu0 0.0
    %1940 = vmatpush.msra.mxu0 0.0
    %1941 = vmatpush.msra.mxu0 0.0
    %1942 = vmatpush.msra.mxu0 0.0
    %1943 = vmatpush.msra.mxu0 0.0
    %1944 = vmatpush.msra.mxu0 0.0
    %1945 = vmatpush.msra.mxu0 0.0
    %1946 = vmatpush.msra.mxu0 0.0
    %1947 = vmatpush.msra.mxu0 0.0
    %1948 = vmatpush.msra.mxu0 %v122
    %1949 = vmatpush.msra.mxu0 %v120
    %1950 = vmatpush.msra.mxu0 %v118
    %1951 = vmatpush.msra.mxu0 %v116
    %1952 = vmatmul.f32.gmra.mxu0 %v1932
    %v1953 = vpop.f32.mrf.mxu0
    %v1954 = vadd.f32 0.0, %v1953
    %1955 = vmatmul.f32.gmra.mxu0 %v1934
    %v1956 = vpop.f32.mrf.mxu0
    %v1957 = vadd.f32 0.0, %v1956
    %1958 = vdwg.mxu0
    %1959 = vmatpush.msra.mxu0 0.0
    %1960 = vmatpush.msra.mxu0 0.0
    %1961 = vmatpush.msra.mxu0 0.0
    %1962 = vmatpush.msra.mxu0 0.0
    %1963 = vmatpush.msra.mxu0 0.0
    %1964 = vmatpush.msra.mxu0 0.0
    %1965 = vmatpush.msra.mxu0 0.0
    %1966 = vmatpush.msra.mxu0 0.0
    %1967 = vmatpush.msra.mxu0 0.0
    %1968 = vmatpush.msra.mxu0 0.0
    %1969 = vmatpush.msra.mxu0 0.0
    %1970 = vmatpush.msra.mxu0 0.0
    %1971 = vmatpush.msra.mxu0 %v123
    %1972 = vmatpush.msra.mxu0 %v121
    %1973 = vmatpush.msra.mxu0 %v119
    %1974 = vmatpush.msra.mxu0 %v117
    %1975 = vmatmul.f32.gmra.mxu0 %v1932
    %v1976 = vpop.f32.mrf.mxu0
    %v1977 = vadd.f32 0.0, %v1976
    %1978 = vmatmul.f32.gmra.mxu0 %v1934
    %v1979 = vpop.f32.mrf.mxu0
    %v1980 = vadd.f32 0.0, %v1979
    %1981 = vdwg.mxu0
    %1984 = vrot.lane.b32.xlu0 %v1924, 64
    %v1985 = vpop.permute.xlu0 %1984
    %1986 = vrot.lane.b32.xlu0 %v1925, 64
    %v1987 = vpop.permute.xlu0 %1986
    %v1988 = vsel %vm336, %v1985, 0
    %v1990 = vsel %vm336, %v1987, 0
    %1992 = vmatpush.msra.mxu0 0.0
    %1993 = vmatpush.msra.mxu0 0.0
    %1994 = vmatpush.msra.mxu0 0.0
    %1995 = vmatpush.msra.mxu0 0.0
    %1996 = vmatpush.msra.mxu0 0.0
    %1997 = vmatpush.msra.mxu0 0.0
    %1998 = vmatpush.msra.mxu0 0.0
    %1999 = vmatpush.msra.mxu0 0.0
    %2000 = vmatpush.msra.mxu0 0.0
    %2001 = vmatpush.msra.mxu0 0.0
    %2002 = vmatpush.msra.mxu0 0.0
    %2003 = vmatpush.msra.mxu0 0.0
    %2004 = vmatpush.msra.mxu0 %v106
    %2005 = vmatpush.msra.mxu0 %v104
    %2006 = vmatpush.msra.mxu0 %v102
    %2007 = vmatpush.msra.mxu0 %v100
    %2008 = vmatmul.f32.gmra.mxu0 %v1988
    %v2009 = vpop.f32.mrf.mxu0
    %v2010 = vadd.f32 %v1954, %v2009
    %2011 = vmatmul.f32.gmra.mxu0 %v1990
    %v2012 = vpop.f32.mrf.mxu0
    %v2013 = vadd.f32 %v1957, %v2012
    %2014 = vdwg.mxu0
    %2015 = vmatpush.msra.mxu0 0.0
    %2016 = vmatpush.msra.mxu0 0.0
    %2017 = vmatpush.msra.mxu0 0.0
    %2018 = vmatpush.msra.mxu0 0.0
    %2019 = vmatpush.msra.mxu0 0.0
    %2020 = vmatpush.msra.mxu0 0.0
    %2021 = vmatpush.msra.mxu0 0.0
    %2022 = vmatpush.msra.mxu0 0.0
    %2023 = vmatpush.msra.mxu0 0.0
    %2024 = vmatpush.msra.mxu0 0.0
    %2025 = vmatpush.msra.mxu0 0.0
    %2026 = vmatpush.msra.mxu0 0.0
    %2027 = vmatpush.msra.mxu0 %v107
    %2028 = vmatpush.msra.mxu0 %v105
    %2029 = vmatpush.msra.mxu0 %v103
    %2030 = vmatpush.msra.mxu0 %v101
    %2031 = vmatmul.f32.gmra.mxu0 %v1988
    %v2032 = vpop.f32.mrf.mxu0
    %v2033 = vadd.f32 %v1977, %v2032
    %2034 = vmatmul.f32.gmra.mxu0 %v1990
    %v2035 = vpop.f32.mrf.mxu0
    %v2036 = vadd.f32 %v1980, %v2035
    %2037 = vdwg.mxu0
    %2038 = vmatpush.msra.mxu0 0.0
    %2039 = vmatpush.msra.mxu0 0.0
    %2040 = vmatpush.msra.mxu0 0.0
    %2041 = vmatpush.msra.mxu0 0.0
    %2042 = vmatpush.msra.mxu0 0.0
    %2043 = vmatpush.msra.mxu0 0.0
    %2044 = vmatpush.msra.mxu0 0.0
    %2045 = vmatpush.msra.mxu0 0.0
    %2046 = vmatpush.msra.mxu0 0.0
    %2047 = vmatpush.msra.mxu0 0.0
    %2048 = vmatpush.msra.mxu0 0.0
    %2049 = vmatpush.msra.mxu0 0.0
    %2050 = vmatpush.msra.mxu0 0.0
    %2051 = vmatpush.msra.mxu0 0.0
    %2052 = vmatpush.msra.mxu0 %v2013
    %2053 = vmatpush.msra.mxu0 %v2010
    %2054 = vmatmul.f32.gmra.mxu0 %v392
    %v2055 = vpop.f32.mrf.mxu0
    %v2056 = vadd.f32 %v2033, %v2055
    %2057 = vmatmul.f32.gmra.mxu0 %v395
    %v2058 = vpop.f32.mrf.mxu0
    %v2059 = vadd.f32 %v2036, %v2058
    %2060 = vdwg.mxu0
    %v2061 = vadd.f32 %v2056, %v130
    %v2062 = vadd.f32 %v2059, %v130
    %v2063 = vxor.u32 %v2061, 2147483648
    %v2064 = vxor.u32 %v2062, 2147483648
    %v2065 = vmul.f32 %v2063, 1.442695
    %v2066 = vpow.pop %v2065
    %v2067 = vmul.f32 %v2064, 1.442695
    %v2068 = vpow.pop %v2067
    %v2069 = vadd.f32 %v2066, 1.0
    %v2070 = vadd.f32 %v2068, 1.0
    %v2071 = vrcp.pop %v2069
    %v2072 = vmul.f32 %v2069, %v2071
    %v2073 = vsub.f32 1.0, %v2072
    %v2074 = vmul.f32 %v2071, %v2073
    %v2075 = vadd.f32 %v2071, %v2074
    %vm2076 = vweird.f32 %v2069
    %vm2077 = vweird.f32 %v2071
    %vm2078 = vmor %vm2076, %vm2077
    %v2079 = vsel %vm2078, %v2071, %v2075
    %v2080 = vand.u32 2147483647, %v2069
    %vm2081 = vcmp.eq.f32.partialorder %v2080, 8.507059e+37
    %v2082 = vand.u32 %v2069, 2147483648
    %v2083 = vor.u32 1.1754944e-38, %v2082
    %v2084 = vsel %vm2081, %v2083, %v2079
    %v2085 = vmul.f32 1.0, %v2084
    %v2086 = vrcp.pop %v2070
    %v2087 = vmul.f32 %v2070, %v2086
    %v2088 = vsub.f32 1.0, %v2087
    %v2089 = vmul.f32 %v2086, %v2088
    %v2090 = vadd.f32 %v2086, %v2089
    %vm2091 = vweird.f32 %v2070
    %vm2092 = vweird.f32 %v2086
    %vm2093 = vmor %vm2091, %vm2092
    %v2094 = vsel %vm2093, %v2086, %v2090
    %v2095 = vand.u32 2147483647, %v2070
    %vm2096 = vcmp.eq.f32.partialorder %v2095, 8.507059e+37
    %v2097 = vand.u32 %v2070, 2147483648
    %v2098 = vor.u32 1.1754944e-38, %v2097
    %v2099 = vsel %vm2096, %v2098, %v2094
    %v2100 = vmul.f32 1.0, %v2099
    %v2101 = vtanh.pop %v2061
    %v2102 = vtanh.pop %v2062
    %v2103 = vmul.f32 %v2085, %v1763
    %v2104 = vmul.f32 %v2100, %v1764
    %2107 = vrot.lane.b32.xlu0 %v2101, 32
    %v2108 = vpop.permute.xlu0 %2107
    %2109 = vrot.lane.b32.xlu0 %v2102, 32
    %v2110 = vpop.permute.xlu0 %2109
    %v2113 = vmul.f32 %v2085, %v2108
    %v2114 = vmul.f32 %v2100, %v2110
    %2117 = vrot.lane.b32.xlu0 %v2113, 32
    %v2118 = vpop.permute.xlu0 %2117
    %2119 = vrot.lane.b32.xlu0 %v2114, 32
    %v2120 = vpop.permute.xlu0 %2119
    %v2123 = vadd.f32 %v2103, %v2118
    %v2124 = vadd.f32 %v2104, %v2120
    %v2125 = vtanh.pop %v2123
    %v2126 = vtanh.pop %v2124
    %2129 = vrot.lane.b32.xlu0 %v2125, 32
    %v2130 = vpop.permute.xlu0 %2129
    %2131 = vrot.lane.b32.xlu0 %v2126, 32
    %v2132 = vpop.permute.xlu0 %2131
    %v2135 = vmul.f32 %v2085, %v2130
    %v2136 = vmul.f32 %v2100, %v2132
    %2137 = vmatpush.msra.mxu0 0.0
    %2138 = vmatpush.msra.mxu0 0.0
    %2139 = vmatpush.msra.mxu0 0.0
    %2140 = vmatpush.msra.mxu0 0.0
    %2141 = vmatpush.msra.mxu0 0.0
    %2142 = vmatpush.msra.mxu0 0.0
    %2143 = vmatpush.msra.mxu0 0.0
    %2144 = vmatpush.msra.mxu0 0.0
    %2145 = vmatpush.msra.mxu0 0.0
    %2146 = vmatpush.msra.mxu0 0.0
    %2147 = vmatpush.msra.mxu0 0.0
    %2148 = vmatpush.msra.mxu0 0.0
    %2149 = vmatpush.msra.mxu0 %v114
    %2150 = vmatpush.msra.mxu0 %v112
    %2151 = vmatpush.msra.mxu0 %v110
    %2152 = vmatpush.msra.mxu0 %v108
    %2153 = vmatmul.f32.gmra.mxu0 %v1988
    %v2154 = vpop.f32.mrf.mxu0
    %v2155 = vadd.f32 0.0, %v2154
    %2156 = vmatmul.f32.gmra.mxu0 %v1990
    %v2157 = vpop.f32.mrf.mxu0
    %v2158 = vadd.f32 0.0, %v2157
    %2159 = vdwg.mxu0
    %2160 = vmatpush.msra.mxu0 0.0
    %2161 = vmatpush.msra.mxu0 0.0
    %2162 = vmatpush.msra.mxu0 0.0
    %2163 = vmatpush.msra.mxu0 0.0
    %2164 = vmatpush.msra.mxu0 0.0
    %2165 = vmatpush.msra.mxu0 0.0
    %2166 = vmatpush.msra.mxu0 0.0
    %2167 = vmatpush.msra.mxu0 0.0
    %2168 = vmatpush.msra.mxu0 0.0
    %2169 = vmatpush.msra.mxu0 0.0
    %2170 = vmatpush.msra.mxu0 0.0
    %2171 = vmatpush.msra.mxu0 0.0
    %2172 = vmatpush.msra.mxu0 %v115
    %2173 = vmatpush.msra.mxu0 %v113
    %2174 = vmatpush.msra.mxu0 %v111
    %2175 = vmatpush.msra.mxu0 %v109
    %2176 = vmatmul.f32.gmra.mxu0 %v1988
    %v2177 = vpop.f32.mrf.mxu0
    %v2178 = vadd.f32 0.0, %v2177
    %2179 = vmatmul.f32.gmra.mxu0 %v1990
    %v2180 = vpop.f32.mrf.mxu0
    %v2181 = vadd.f32 0.0, %v2180
    %2182 = vdwg.mxu0
    %v2183 = vadd.f32 %v254, %v2155
    %v2184 = vadd.f32 %v319, %v2178
    %v2185 = vadd.f32 %v257, %v2158
    %v2186 = vadd.f32 %v322, %v2181
    %2187 = vmatpush.msra.mxu0 0.0
    %2188 = vmatpush.msra.mxu0 0.0
    %2189 = vmatpush.msra.mxu0 0.0
    %2190 = vmatpush.msra.mxu0 0.0
    %2191 = vmatpush.msra.mxu0 0.0
    %2192 = vmatpush.msra.mxu0 0.0
    %2193 = vmatpush.msra.mxu0 0.0
    %2194 = vmatpush.msra.mxu0 0.0
    %2195 = vmatpush.msra.mxu0 0.0
    %2196 = vmatpush.msra.mxu0 0.0
    %2197 = vmatpush.msra.mxu0 0.0
    %2198 = vmatpush.msra.mxu0 0.0
    %2199 = vmatpush.msra.mxu0 0.0
    %2200 = vmatpush.msra.mxu0 0.0
    %2201 = vmatpush.msra.mxu0 %v2185
    %2202 = vmatpush.msra.mxu0 %v2183
    %2203 = vmatmul.f32.gmra.mxu0 %v392
    %v2204 = vpop.f32.mrf.mxu0
    %v2205 = vadd.f32 %v2184, %v2204
    %2206 = vmatmul.f32.gmra.mxu0 %v395
    %v2207 = vpop.f32.mrf.mxu0
    %v2208 = vadd.f32 %v2186, %v2207
    %2209 = vdwg.mxu0
    %v2210 = vadd.f32 %v2205, %v126
    %v2211 = vadd.f32 %v2208, %v126
    %v2212 = vxor.u32 %v2210, 2147483648
    %v2213 = vxor.u32 %v2211, 2147483648
    %v2214 = vmul.f32 %v2212, 1.442695
    %v2215 = vpow.pop %v2214
    %v2216 = vmul.f32 %v2213, 1.442695
    %v2217 = vpow.pop %v2216
    %v2218 = vadd.f32 %v2215, 1.0
    %v2219 = vadd.f32 %v2217, 1.0
    %v2220 = vrcp.pop %v2218
    %v2221 = vmul.f32 %v2218, %v2220
    %v2222 = vsub.f32 1.0, %v2221
    %v2223 = vmul.f32 %v2220, %v2222
    %v2224 = vadd.f32 %v2220, %v2223
    %vm2225 = vweird.f32 %v2218
    %vm2226 = vweird.f32 %v2220
    %vm2227 = vmor %vm2225, %vm2226
    %v2228 = vsel %vm2227, %v2220, %v2224
    %v2229 = vand.u32 2147483647, %v2218
    %vm2230 = vcmp.eq.f32.partialorder %v2229, 8.507059e+37
    %v2231 = vand.u32 %v2218, 2147483648
    %v2232 = vor.u32 1.1754944e-38, %v2231
    %v2233 = vsel %vm2230, %v2232, %v2228
    %v2234 = vmul.f32 1.0, %v2233
    %v2235 = vrcp.pop %v2219
    %v2236 = vmul.f32 %v2219, %v2235
    %v2237 = vsub.f32 1.0, %v2236
    %v2238 = vmul.f32 %v2235, %v2237
    %v2239 = vadd.f32 %v2235, %v2238
    %vm2240 = vweird.f32 %v2219
    %vm2241 = vweird.f32 %v2235
    %vm2242 = vmor %vm2240, %vm2241
    %v2243 = vsel %vm2242, %v2235, %v2239
    %v2244 = vand.u32 2147483647, %v2219
    %vm2245 = vcmp.eq.f32.partialorder %v2244, 8.507059e+37
    %v2246 = vand.u32 %v2219, 2147483648
    %v2247 = vor.u32 1.1754944e-38, %v2246
    %v2248 = vsel %vm2245, %v2247, %v2243
    %v2249 = vmul.f32 1.0, %v2248
    %v2250 = vtanh.pop %v2210
    %v2251 = vtanh.pop %v2211
    %v2252 = vmul.f32 %v2234, %v1912
    %v2253 = vmul.f32 %v2249, %v1913
    %2256 = vrot.lane.b32.xlu0 %v2250, 32
    %v2257 = vpop.permute.xlu0 %2256
    %2258 = vrot.lane.b32.xlu0 %v2251, 32
    %v2259 = vpop.permute.xlu0 %2258
    %v2262 = vmul.f32 %v2234, %v2257
    %v2263 = vmul.f32 %v2249, %v2259
    %2266 = vrot.lane.b32.xlu0 %v2262, 32
    %v2267 = vpop.permute.xlu0 %2266
    %2268 = vrot.lane.b32.xlu0 %v2263, 32
    %v2269 = vpop.permute.xlu0 %2268
    %v2272 = vadd.f32 %v2252, %v2267
    %v2273 = vadd.f32 %v2253, %v2269
    %v2274 = vtanh.pop %v2272
    %v2275 = vtanh.pop %v2273
    %2278 = vrot.lane.b32.xlu0 %v2274, 32
    %v2279 = vpop.permute.xlu0 %2278
    %2280 = vrot.lane.b32.xlu0 %v2275, 32
    %v2281 = vpop.permute.xlu0 %2280
    %v2284 = vmul.f32 %v2234, %v2279
    %v2285 = vmul.f32 %v2249, %v2281
    %2288 = vrot.lane.b32.xlu0 %v2135, 64
    %v2289 = vpop.permute.xlu0 %2288
    %2290 = vrot.lane.b32.xlu0 %v2136, 64
    %v2291 = vpop.permute.xlu0 %2290
    %v2292 = vsel %vm336, %v2289, 0
    %v2294 = vsel %vm336, %v2291, 0
    %2296 = vmatpush.msra.mxu0 0.0
    %2297 = vmatpush.msra.mxu0 0.0
    %2298 = vmatpush.msra.mxu0 0.0
    %2299 = vmatpush.msra.mxu0 0.0
    %2300 = vmatpush.msra.mxu0 0.0
    %2301 = vmatpush.msra.mxu0 0.0
    %2302 = vmatpush.msra.mxu0 0.0
    %2303 = vmatpush.msra.mxu0 0.0
    %2304 = vmatpush.msra.mxu0 0.0
    %2305 = vmatpush.msra.mxu0 0.0
    %2306 = vmatpush.msra.mxu0 0.0
    %2307 = vmatpush.msra.mxu0 0.0
    %2308 = vmatpush.msra.mxu0 %v122
    %2309 = vmatpush.msra.mxu0 %v120
    %2310 = vmatpush.msra.mxu0 %v118
    %2311 = vmatpush.msra.mxu0 %v116
    %2312 = vmatmul.f32.gmra.mxu0 %v2292
    %v2313 = vpop.f32.mrf.mxu0
    %v2314 = vadd.f32 0.0, %v2313
    %2315 = vmatmul.f32.gmra.mxu0 %v2294
    %v2316 = vpop.f32.mrf.mxu0
    %v2317 = vadd.f32 0.0, %v2316
    %2318 = vdwg.mxu0
    %2319 = vmatpush.msra.mxu0 0.0
    %2320 = vmatpush.msra.mxu0 0.0
    %2321 = vmatpush.msra.mxu0 0.0
    %2322 = vmatpush.msra.mxu0 0.0
    %2323 = vmatpush.msra.mxu0 0.0
    %2324 = vmatpush.msra.mxu0 0.0
    %2325 = vmatpush.msra.mxu0 0.0
    %2326 = vmatpush.msra.mxu0 0.0
    %2327 = vmatpush.msra.mxu0 0.0
    %2328 = vmatpush.msra.mxu0 0.0
    %2329 = vmatpush.msra.mxu0 0.0
    %2330 = vmatpush.msra.mxu0 0.0
    %2331 = vmatpush.msra.mxu0 %v123
    %2332 = vmatpush.msra.mxu0 %v121
    %2333 = vmatpush.msra.mxu0 %v119
    %2334 = vmatpush.msra.mxu0 %v117
    %2335 = vmatmul.f32.gmra.mxu0 %v2292
    %v2336 = vpop.f32.mrf.mxu0
    %v2337 = vadd.f32 0.0, %v2336
    %2338 = vmatmul.f32.gmra.mxu0 %v2294
    %v2339 = vpop.f32.mrf.mxu0
    %v2340 = vadd.f32 0.0, %v2339
    %2341 = vdwg.mxu0
    %2344 = vrot.lane.b32.xlu0 %v2284, 64
    %v2345 = vpop.permute.xlu0 %2344
    %2346 = vrot.lane.b32.xlu0 %v2285, 64
    %v2347 = vpop.permute.xlu0 %2346
    %v2348 = vsel %vm336, %v2345, 0
    %v2350 = vsel %vm336, %v2347, 0
    %2352 = vmatpush.msra.mxu0 0.0
    %2353 = vmatpush.msra.mxu0 0.0
    %2354 = vmatpush.msra.mxu0 0.0
    %2355 = vmatpush.msra.mxu0 0.0
    %2356 = vmatpush.msra.mxu0 0.0
    %2357 = vmatpush.msra.mxu0 0.0
    %2358 = vmatpush.msra.mxu0 0.0
    %2359 = vmatpush.msra.mxu0 0.0
    %2360 = vmatpush.msra.mxu0 0.0
    %2361 = vmatpush.msra.mxu0 0.0
    %2362 = vmatpush.msra.mxu0 0.0
    %2363 = vmatpush.msra.mxu0 0.0
    %2364 = vmatpush.msra.mxu0 %v106
    %2365 = vmatpush.msra.mxu0 %v104
    %2366 = vmatpush.msra.mxu0 %v102
    %2367 = vmatpush.msra.mxu0 %v100
    %2368 = vmatmul.f32.gmra.mxu0 %v2348
    %v2369 = vpop.f32.mrf.mxu0
    %v2370 = vadd.f32 %v2314, %v2369
    %2371 = vmatmul.f32.gmra.mxu0 %v2350
    %v2372 = vpop.f32.mrf.mxu0
    %v2373 = vadd.f32 %v2317, %v2372
    %2374 = vdwg.mxu0
    %2375 = vmatpush.msra.mxu0 0.0
    %2376 = vmatpush.msra.mxu0 0.0
    %2377 = vmatpush.msra.mxu0 0.0
    %2378 = vmatpush.msra.mxu0 0.0
    %2379 = vmatpush.msra.mxu0 0.0
    %2380 = vmatpush.msra.mxu0 0.0
    %2381 = vmatpush.msra.mxu0 0.0
    %2382 = vmatpush.msra.mxu0 0.0
    %2383 = vmatpush.msra.mxu0 0.0
    %2384 = vmatpush.msra.mxu0 0.0
    %2385 = vmatpush.msra.mxu0 0.0
    %2386 = vmatpush.msra.mxu0 0.0
    %2387 = vmatpush.msra.mxu0 %v107
    %2388 = vmatpush.msra.mxu0 %v105
    %2389 = vmatpush.msra.mxu0 %v103
    %2390 = vmatpush.msra.mxu0 %v101
    %2391 = vmatmul.f32.gmra.mxu0 %v2348
    %v2392 = vpop.f32.mrf.mxu0
    %v2393 = vadd.f32 %v2337, %v2392
    %2394 = vmatmul.f32.gmra.mxu0 %v2350
    %v2395 = vpop.f32.mrf.mxu0
    %v2396 = vadd.f32 %v2340, %v2395
    %2397 = vdwg.mxu0
    %2398 = vmatpush.msra.mxu0 0.0
    %2399 = vmatpush.msra.mxu0 0.0
    %2400 = vmatpush.msra.mxu0 0.0
    %2401 = vmatpush.msra.mxu0 0.0
    %2402 = vmatpush.msra.mxu0 0.0
    %2403 = vmatpush.msra.mxu0 0.0
    %2404 = vmatpush.msra.mxu0 0.0
    %2405 = vmatpush.msra.mxu0 0.0
    %2406 = vmatpush.msra.mxu0 0.0
    %2407 = vmatpush.msra.mxu0 0.0
    %2408 = vmatpush.msra.mxu0 0.0
    %2409 = vmatpush.msra.mxu0 0.0
    %2410 = vmatpush.msra.mxu0 0.0
    %2411 = vmatpush.msra.mxu0 0.0
    %2412 = vmatpush.msra.mxu0 %v2373
    %2413 = vmatpush.msra.mxu0 %v2370
    %2414 = vmatmul.f32.gmra.mxu0 %v392
    %v2415 = vpop.f32.mrf.mxu0
    %v2416 = vadd.f32 %v2393, %v2415
    %2417 = vmatmul.f32.gmra.mxu0 %v395
    %v2418 = vpop.f32.mrf.mxu0
    %v2419 = vadd.f32 %v2396, %v2418
    %2420 = vdwg.mxu0
    %v2421 = vadd.f32 %v2416, %v130
    %v2422 = vadd.f32 %v2419, %v130
    %v2423 = vxor.u32 %v2421, 2147483648
    %v2424 = vxor.u32 %v2422, 2147483648
    %v2425 = vmul.f32 %v2423, 1.442695
    %v2426 = vpow.pop %v2425
    %v2427 = vmul.f32 %v2424, 1.442695
    %v2428 = vpow.pop %v2427
    %v2429 = vadd.f32 %v2426, 1.0
    %v2430 = vadd.f32 %v2428, 1.0
    %v2431 = vrcp.pop %v2429
    %v2432 = vmul.f32 %v2429, %v2431
    %v2433 = vsub.f32 1.0, %v2432
    %v2434 = vmul.f32 %v2431, %v2433
    %v2435 = vadd.f32 %v2431, %v2434
    %vm2436 = vweird.f32 %v2429
    %vm2437 = vweird.f32 %v2431
    %vm2438 = vmor %vm2436, %vm2437
    %v2439 = vsel %vm2438, %v2431, %v2435
    %v2440 = vand.u32 2147483647, %v2429
    %vm2441 = vcmp.eq.f32.partialorder %v2440, 8.507059e+37
    %v2442 = vand.u32 %v2429, 2147483648
    %v2443 = vor.u32 1.1754944e-38, %v2442
    %v2444 = vsel %vm2441, %v2443, %v2439
    %v2445 = vmul.f32 1.0, %v2444
    %v2446 = vrcp.pop %v2430
    %v2447 = vmul.f32 %v2430, %v2446
    %v2448 = vsub.f32 1.0, %v2447
    %v2449 = vmul.f32 %v2446, %v2448
    %v2450 = vadd.f32 %v2446, %v2449
    %vm2451 = vweird.f32 %v2430
    %vm2452 = vweird.f32 %v2446
    %vm2453 = vmor %vm2451, %vm2452
    %v2454 = vsel %vm2453, %v2446, %v2450
    %v2455 = vand.u32 2147483647, %v2430
    %vm2456 = vcmp.eq.f32.partialorder %v2455, 8.507059e+37
    %v2457 = vand.u32 %v2430, 2147483648
    %v2458 = vor.u32 1.1754944e-38, %v2457
    %v2459 = vsel %vm2456, %v2458, %v2454
    %v2460 = vmul.f32 1.0, %v2459
    %v2461 = vtanh.pop %v2421
    %v2462 = vtanh.pop %v2422
    %v2463 = vmul.f32 %v2445, %v2123
    %v2464 = vmul.f32 %v2460, %v2124
    %2467 = vrot.lane.b32.xlu0 %v2461, 32
    %v2468 = vpop.permute.xlu0 %2467
    %2469 = vrot.lane.b32.xlu0 %v2462, 32
    %v2470 = vpop.permute.xlu0 %2469
    %v2473 = vmul.f32 %v2445, %v2468
    %v2474 = vmul.f32 %v2460, %v2470
    %2477 = vrot.lane.b32.xlu0 %v2473, 32
    %v2478 = vpop.permute.xlu0 %2477
    %2479 = vrot.lane.b32.xlu0 %v2474, 32
    %v2480 = vpop.permute.xlu0 %2479
    %v2483 = vadd.f32 %v2463, %v2478
    %v2484 = vadd.f32 %v2464, %v2480
    %v2485 = vtanh.pop %v2483
    %v2486 = vtanh.pop %v2484
    %2489 = vrot.lane.b32.xlu0 %v2485, 32
    %v2490 = vpop.permute.xlu0 %2489
    %2491 = vrot.lane.b32.xlu0 %v2486, 32
    %v2492 = vpop.permute.xlu0 %2491
    %v2495 = vmul.f32 %v2445, %v2490
    %v2496 = vmul.f32 %v2460, %v2492
    %2497 = vmatpush.msra.mxu0 0.0
    %2498 = vmatpush.msra.mxu0 0.0
    %2499 = vmatpush.msra.mxu0 0.0
    %2500 = vmatpush.msra.mxu0 0.0
    %2501 = vmatpush.msra.mxu0 0.0
    %2502 = vmatpush.msra.mxu0 0.0
    %2503 = vmatpush.msra.mxu0 0.0
    %2504 = vmatpush.msra.mxu0 0.0
    %2505 = vmatpush.msra.mxu0 0.0
    %2506 = vmatpush.msra.mxu0 0.0
    %2507 = vmatpush.msra.mxu0 0.0
    %2508 = vmatpush.msra.mxu0 0.0
    %2509 = vmatpush.msra.mxu0 %v114
    %2510 = vmatpush.msra.mxu0 %v112
    %2511 = vmatpush.msra.mxu0 %v110
    %2512 = vmatpush.msra.mxu0 %v108
    %2513 = vmatmul.f32.gmra.mxu0 %v2348
    %v2514 = vpop.f32.mrf.mxu0
    %v2515 = vadd.f32 0.0, %v2514
    %2516 = vmatmul.f32.gmra.mxu0 %v2350
    %v2517 = vpop.f32.mrf.mxu0
    %v2518 = vadd.f32 0.0, %v2517
    %2519 = vdwg.mxu0
    %2520 = vmatpush.msra.mxu0 0.0
    %2521 = vmatpush.msra.mxu0 0.0
    %2522 = vmatpush.msra.mxu0 0.0
    %2523 = vmatpush.msra.mxu0 0.0
    %2524 = vmatpush.msra.mxu0 0.0
    %2525 = vmatpush.msra.mxu0 0.0
    %2526 = vmatpush.msra.mxu0 0.0
    %2527 = vmatpush.msra.mxu0 0.0
    %2528 = vmatpush.msra.mxu0 0.0
    %2529 = vmatpush.msra.mxu0 0.0
    %2530 = vmatpush.msra.mxu0 0.0
    %2531 = vmatpush.msra.mxu0 0.0
    %2532 = vmatpush.msra.mxu0 %v115
    %2533 = vmatpush.msra.mxu0 %v113
    %2534 = vmatpush.msra.mxu0 %v111
    %2535 = vmatpush.msra.mxu0 %v109
    %2536 = vmatmul.f32.gmra.mxu0 %v2348
    %v2537 = vpop.f32.mrf.mxu0
    %v2538 = vadd.f32 0.0, %v2537
    %2539 = vmatmul.f32.gmra.mxu0 %v2350
    %v2540 = vpop.f32.mrf.mxu0
    %v2541 = vadd.f32 0.0, %v2540
    %2542 = vdwg.mxu0
    %v2543 = vadd.f32 %v260, %v2515
    %v2544 = vadd.f32 %v325, %v2538
    %v2545 = vadd.f32 %v263, %v2518
    %v2546 = vadd.f32 %v328, %v2541
    %2547 = vmatpush.msra.mxu0 0.0
    %2548 = vmatpush.msra.mxu0 0.0
    %2549 = vmatpush.msra.mxu0 0.0
    %2550 = vmatpush.msra.mxu0 0.0
    %2551 = vmatpush.msra.mxu0 0.0
    %2552 = vmatpush.msra.mxu0 0.0
    %2553 = vmatpush.msra.mxu0 0.0
    %2554 = vmatpush.msra.mxu0 0.0
    %2555 = vmatpush.msra.mxu0 0.0
    %2556 = vmatpush.msra.mxu0 0.0
    %2557 = vmatpush.msra.mxu0 0.0
    %2558 = vmatpush.msra.mxu0 0.0
    %2559 = vmatpush.msra.mxu0 0.0
    %2560 = vmatpush.msra.mxu0 0.0
    %2561 = vmatpush.msra.mxu0 %v2545
    %2562 = vmatpush.msra.mxu0 %v2543
    %2563 = vmatmul.f32.gmra.mxu0 %v392
    %v2564 = vpop.f32.mrf.mxu0
    %v2565 = vadd.f32 %v2544, %v2564
    %2566 = vmatmul.f32.gmra.mxu0 %v395
    %v2567 = vpop.f32.mrf.mxu0
    %v2568 = vadd.f32 %v2546, %v2567
    %2569 = vdwg.mxu0
    %v2570 = vadd.f32 %v2565, %v126
    %v2571 = vadd.f32 %v2568, %v126
    %v2572 = vxor.u32 %v2570, 2147483648
    %v2573 = vxor.u32 %v2571, 2147483648
    %v2574 = vmul.f32 %v2572, 1.442695
    %v2575 = vpow.pop %v2574
    %v2576 = vmul.f32 %v2573, 1.442695
    %v2577 = vpow.pop %v2576
    %v2578 = vadd.f32 %v2575, 1.0
    %v2579 = vadd.f32 %v2577, 1.0
    %v2580 = vrcp.pop %v2578
    %v2581 = vmul.f32 %v2578, %v2580
    %v2582 = vsub.f32 1.0, %v2581
    %v2583 = vmul.f32 %v2580, %v2582
    %v2584 = vadd.f32 %v2580, %v2583
    %vm2585 = vweird.f32 %v2578
    %vm2586 = vweird.f32 %v2580
    %vm2587 = vmor %vm2585, %vm2586
    %v2588 = vsel %vm2587, %v2580, %v2584
    %v2589 = vand.u32 2147483647, %v2578
    %vm2590 = vcmp.eq.f32.partialorder %v2589, 8.507059e+37
    %v2591 = vand.u32 %v2578, 2147483648
    %v2592 = vor.u32 1.1754944e-38, %v2591
    %v2593 = vsel %vm2590, %v2592, %v2588
    %v2594 = vmul.f32 1.0, %v2593
    %v2595 = vrcp.pop %v2579
    %v2596 = vmul.f32 %v2579, %v2595
    %v2597 = vsub.f32 1.0, %v2596
    %v2598 = vmul.f32 %v2595, %v2597
    %v2599 = vadd.f32 %v2595, %v2598
    %vm2600 = vweird.f32 %v2579
    %vm2601 = vweird.f32 %v2595
    %vm2602 = vmor %vm2600, %vm2601
    %v2603 = vsel %vm2602, %v2595, %v2599
    %v2604 = vand.u32 2147483647, %v2579
    %vm2605 = vcmp.eq.f32.partialorder %v2604, 8.507059e+37
    %v2606 = vand.u32 %v2579, 2147483648
    %v2607 = vor.u32 1.1754944e-38, %v2606
    %v2608 = vsel %vm2605, %v2607, %v2603
    %v2609 = vmul.f32 1.0, %v2608
    %v2610 = vtanh.pop %v2570
    %v2611 = vtanh.pop %v2571
    %v2612 = vmul.f32 %v2594, %v2272
    %v2613 = vmul.f32 %v2609, %v2273
    %2616 = vrot.lane.b32.xlu0 %v2610, 32
    %v2617 = vpop.permute.xlu0 %2616
    %2618 = vrot.lane.b32.xlu0 %v2611, 32
    %v2619 = vpop.permute.xlu0 %2618
    %v2622 = vmul.f32 %v2594, %v2617
    %v2623 = vmul.f32 %v2609, %v2619
    %2626 = vrot.lane.b32.xlu0 %v2622, 32
    %v2627 = vpop.permute.xlu0 %2626
    %2628 = vrot.lane.b32.xlu0 %v2623, 32
    %v2629 = vpop.permute.xlu0 %2628
    %v2632 = vadd.f32 %v2612, %v2627
    %v2633 = vadd.f32 %v2613, %v2629
    %v2634 = vtanh.pop %v2632
    %v2635 = vtanh.pop %v2633
    %2638 = vrot.lane.b32.xlu0 %v2634, 32
    %v2639 = vpop.permute.xlu0 %2638
    %2640 = vrot.lane.b32.xlu0 %v2635, 32
    %v2641 = vpop.permute.xlu0 %2640
    %v2644 = vmul.f32 %v2594, %v2639
    %v2645 = vmul.f32 %v2609, %v2641
    %2648 = vrot.lane.b32.xlu0 %v2495, 64
    %v2649 = vpop.permute.xlu0 %2648
    %2650 = vrot.lane.b32.xlu0 %v2496, 64
    %v2651 = vpop.permute.xlu0 %2650
    %v2652 = vsel %vm336, %v2649, 0
    %v2654 = vsel %vm336, %v2651, 0
    %2656 = vmatpush.msra.mxu0 0.0
    %2657 = vmatpush.msra.mxu0 0.0
    %2658 = vmatpush.msra.mxu0 0.0
    %2659 = vmatpush.msra.mxu0 0.0
    %2660 = vmatpush.msra.mxu0 0.0
    %2661 = vmatpush.msra.mxu0 0.0
    %2662 = vmatpush.msra.mxu0 0.0
    %2663 = vmatpush.msra.mxu0 0.0
    %2664 = vmatpush.msra.mxu0 0.0
    %2665 = vmatpush.msra.mxu0 0.0
    %2666 = vmatpush.msra.mxu0 0.0
    %2667 = vmatpush.msra.mxu0 0.0
    %2668 = vmatpush.msra.mxu0 %v122
    %2669 = vmatpush.msra.mxu0 %v120
    %2670 = vmatpush.msra.mxu0 %v118
    %2671 = vmatpush.msra.mxu0 %v116
    %2672 = vmatmul.f32.gmra.mxu0 %v2652
    %v2673 = vpop.f32.mrf.mxu0
    %v2674 = vadd.f32 0.0, %v2673
    %2675 = vmatmul.f32.gmra.mxu0 %v2654
    %v2676 = vpop.f32.mrf.mxu0
    %v2677 = vadd.f32 0.0, %v2676
    %2678 = vdwg.mxu0
    %2679 = vmatpush.msra.mxu0 0.0
    %2680 = vmatpush.msra.mxu0 0.0
    %2681 = vmatpush.msra.mxu0 0.0
    %2682 = vmatpush.msra.mxu0 0.0
    %2683 = vmatpush.msra.mxu0 0.0
    %2684 = vmatpush.msra.mxu0 0.0
    %2685 = vmatpush.msra.mxu0 0.0
    %2686 = vmatpush.msra.mxu0 0.0
    %2687 = vmatpush.msra.mxu0 0.0
    %2688 = vmatpush.msra.mxu0 0.0
    %2689 = vmatpush.msra.mxu0 0.0
    %2690 = vmatpush.msra.mxu0 0.0
    %2691 = vmatpush.msra.mxu0 %v123
    %2692 = vmatpush.msra.mxu0 %v121
    %2693 = vmatpush.msra.mxu0 %v119
    %2694 = vmatpush.msra.mxu0 %v117
    %2695 = vmatmul.f32.gmra.mxu0 %v2652
    %v2696 = vpop.f32.mrf.mxu0
    %v2697 = vadd.f32 0.0, %v2696
    %2698 = vmatmul.f32.gmra.mxu0 %v2654
    %v2699 = vpop.f32.mrf.mxu0
    %v2700 = vadd.f32 0.0, %v2699
    %2701 = vdwg.mxu0
    %2704 = vrot.lane.b32.xlu0 %v2644, 64
    %v2705 = vpop.permute.xlu0 %2704
    %2706 = vrot.lane.b32.xlu0 %v2645, 64
    %v2707 = vpop.permute.xlu0 %2706
    %v2708 = vsel %vm336, %v2705, 0
    %v2710 = vsel %vm336, %v2707, 0
    %2712 = vmatpush.msra.mxu0 0.0
    %2713 = vmatpush.msra.mxu0 0.0
    %2714 = vmatpush.msra.mxu0 0.0
    %2715 = vmatpush.msra.mxu0 0.0
    %2716 = vmatpush.msra.mxu0 0.0
    %2717 = vmatpush.msra.mxu0 0.0
    %2718 = vmatpush.msra.mxu0 0.0
    %2719 = vmatpush.msra.mxu0 0.0
    %2720 = vmatpush.msra.mxu0 0.0
    %2721 = vmatpush.msra.mxu0 0.0
    %2722 = vmatpush.msra.mxu0 0.0
    %2723 = vmatpush.msra.mxu0 0.0
    %2724 = vmatpush.msra.mxu0 %v106
    %2725 = vmatpush.msra.mxu0 %v104
    %2726 = vmatpush.msra.mxu0 %v102
    %2727 = vmatpush.msra.mxu0 %v100
    %2728 = vmatmul.f32.gmra.mxu0 %v2708
    %v2729 = vpop.f32.mrf.mxu0
    %v2730 = vadd.f32 %v2674, %v2729
    %2731 = vmatmul.f32.gmra.mxu0 %v2710
    %v2732 = vpop.f32.mrf.mxu0
    %v2733 = vadd.f32 %v2677, %v2732
    %2734 = vdwg.mxu0
    %2735 = vmatpush.msra.mxu0 0.0
    %2736 = vmatpush.msra.mxu0 0.0
    %2737 = vmatpush.msra.mxu0 0.0
    %2738 = vmatpush.msra.mxu0 0.0
    %2739 = vmatpush.msra.mxu0 0.0
    %2740 = vmatpush.msra.mxu0 0.0
    %2741 = vmatpush.msra.mxu0 0.0
    %2742 = vmatpush.msra.mxu0 0.0
    %2743 = vmatpush.msra.mxu0 0.0
    %2744 = vmatpush.msra.mxu0 0.0
    %2745 = vmatpush.msra.mxu0 0.0
    %2746 = vmatpush.msra.mxu0 0.0
    %2747 = vmatpush.msra.mxu0 %v107
    %2748 = vmatpush.msra.mxu0 %v105
    %2749 = vmatpush.msra.mxu0 %v103
    %2750 = vmatpush.msra.mxu0 %v101
    %2751 = vmatmul.f32.gmra.mxu0 %v2708
    %v2752 = vpop.f32.mrf.mxu0
    %v2753 = vadd.f32 %v2697, %v2752
    %2754 = vmatmul.f32.gmra.mxu0 %v2710
    %v2755 = vpop.f32.mrf.mxu0
    %v2756 = vadd.f32 %v2700, %v2755
    %2757 = vdwg.mxu0
    %2758 = vmatpush.msra.mxu0 0.0
    %2759 = vmatpush.msra.mxu0 0.0
    %2760 = vmatpush.msra.mxu0 0.0
    %2761 = vmatpush.msra.mxu0 0.0
    %2762 = vmatpush.msra.mxu0 0.0
    %2763 = vmatpush.msra.mxu0 0.0
    %2764 = vmatpush.msra.mxu0 0.0
    %2765 = vmatpush.msra.mxu0 0.0
    %2766 = vmatpush.msra.mxu0 0.0
    %2767 = vmatpush.msra.mxu0 0.0
    %2768 = vmatpush.msra.mxu0 0.0
    %2769 = vmatpush.msra.mxu0 0.0
    %2770 = vmatpush.msra.mxu0 0.0
    %2771 = vmatpush.msra.mxu0 0.0
    %2772 = vmatpush.msra.mxu0 %v2733
    %2773 = vmatpush.msra.mxu0 %v2730
    %2774 = vmatmul.f32.gmra.mxu0 %v392
    %v2775 = vpop.f32.mrf.mxu0
    %v2776 = vadd.f32 %v2753, %v2775
    %2777 = vmatmul.f32.gmra.mxu0 %v395
    %v2778 = vpop.f32.mrf.mxu0
    %v2779 = vadd.f32 %v2756, %v2778
    %2780 = vdwg.mxu0
    %v2781 = vadd.f32 %v2776, %v130
    %v2782 = vadd.f32 %v2779, %v130
    %v2783 = vxor.u32 %v2781, 2147483648
    %v2784 = vxor.u32 %v2782, 2147483648
    %v2785 = vmul.f32 %v2783, 1.442695
    %v2786 = vpow.pop %v2785
    %v2787 = vmul.f32 %v2784, 1.442695
    %v2788 = vpow.pop %v2787
    %v2789 = vadd.f32 %v2786, 1.0
    %v2790 = vadd.f32 %v2788, 1.0
    %v2791 = vrcp.pop %v2789
    %v2792 = vmul.f32 %v2789, %v2791
    %v2793 = vsub.f32 1.0, %v2792
    %v2794 = vmul.f32 %v2791, %v2793
    %v2795 = vadd.f32 %v2791, %v2794
    %vm2796 = vweird.f32 %v2789
    %vm2797 = vweird.f32 %v2791
    %vm2798 = vmor %vm2796, %vm2797
    %v2799 = vsel %vm2798, %v2791, %v2795
    %v2800 = vand.u32 2147483647, %v2789
    %vm2801 = vcmp.eq.f32.partialorder %v2800, 8.507059e+37
    %v2802 = vand.u32 %v2789, 2147483648
    %v2803 = vor.u32 1.1754944e-38, %v2802
    %v2804 = vsel %vm2801, %v2803, %v2799
    %v2805 = vmul.f32 1.0, %v2804
    %v2806 = vrcp.pop %v2790
    %v2807 = vmul.f32 %v2790, %v2806
    %v2808 = vsub.f32 1.0, %v2807
    %v2809 = vmul.f32 %v2806, %v2808
    %v2810 = vadd.f32 %v2806, %v2809
    %vm2811 = vweird.f32 %v2790
    %vm2812 = vweird.f32 %v2806
    %vm2813 = vmor %vm2811, %vm2812
    %v2814 = vsel %vm2813, %v2806, %v2810
    %v2815 = vand.u32 2147483647, %v2790
    %vm2816 = vcmp.eq.f32.partialorder %v2815, 8.507059e+37
    %v2817 = vand.u32 %v2790, 2147483648
    %v2818 = vor.u32 1.1754944e-38, %v2817
    %v2819 = vsel %vm2816, %v2818, %v2814
    %v2820 = vmul.f32 1.0, %v2819
    %v2821 = vtanh.pop %v2781
    %v2822 = vtanh.pop %v2782
    %v2823 = vmul.f32 %v2805, %v2483
    %v2824 = vmul.f32 %v2820, %v2484
    %2827 = vrot.lane.b32.xlu0 %v2821, 32
    %v2828 = vpop.permute.xlu0 %2827
    %2829 = vrot.lane.b32.xlu0 %v2822, 32
    %v2830 = vpop.permute.xlu0 %2829
    %v2833 = vmul.f32 %v2805, %v2828
    %v2834 = vmul.f32 %v2820, %v2830
    %2837 = vrot.lane.b32.xlu0 %v2833, 32
    %v2838 = vpop.permute.xlu0 %2837
    %2839 = vrot.lane.b32.xlu0 %v2834, 32
    %v2840 = vpop.permute.xlu0 %2839
    %v2843 = vadd.f32 %v2823, %v2838
    %v2844 = vadd.f32 %v2824, %v2840
    %v2845 = vtanh.pop %v2843
    %v2846 = vtanh.pop %v2844
    %2849 = vrot.lane.b32.xlu0 %v2845, 32
    %v2850 = vpop.permute.xlu0 %2849
    %2851 = vrot.lane.b32.xlu0 %v2846, 32
    %v2852 = vpop.permute.xlu0 %2851
    %v2855 = vmul.f32 %v2805, %v2850
    %v2856 = vmul.f32 %v2820, %v2852
    %2857 = vmatpush.msra.mxu0 0.0
    %2858 = vmatpush.msra.mxu0 0.0
    %2859 = vmatpush.msra.mxu0 0.0
    %2860 = vmatpush.msra.mxu0 0.0
    %2861 = vmatpush.msra.mxu0 0.0
    %2862 = vmatpush.msra.mxu0 0.0
    %2863 = vmatpush.msra.mxu0 0.0
    %2864 = vmatpush.msra.mxu0 0.0
    %2865 = vmatpush.msra.mxu0 0.0
    %2866 = vmatpush.msra.mxu0 0.0
    %2867 = vmatpush.msra.mxu0 0.0
    %2868 = vmatpush.msra.mxu0 0.0
    %2869 = vmatpush.msra.mxu0 %v114
    %2870 = vmatpush.msra.mxu0 %v112
    %2871 = vmatpush.msra.mxu0 %v110
    %2872 = vmatpush.msra.mxu0 %v108
    %2873 = vmatmul.f32.gmra.mxu0 %v2708
    %v2874 = vpop.f32.mrf.mxu0
    %v2875 = vadd.f32 0.0, %v2874
    %2876 = vmatmul.f32.gmra.mxu0 %v2710
    %v2877 = vpop.f32.mrf.mxu0
    %v2878 = vadd.f32 0.0, %v2877
    %2879 = vdwg.mxu0
    %2880 = vmatpush.msra.mxu0 0.0
    %2881 = vmatpush.msra.mxu0 0.0
    %2882 = vmatpush.msra.mxu0 0.0
    %2883 = vmatpush.msra.mxu0 0.0
    %2884 = vmatpush.msra.mxu0 0.0
    %2885 = vmatpush.msra.mxu0 0.0
    %2886 = vmatpush.msra.mxu0 0.0
    %2887 = vmatpush.msra.mxu0 0.0
    %2888 = vmatpush.msra.mxu0 0.0
    %2889 = vmatpush.msra.mxu0 0.0
    %2890 = vmatpush.msra.mxu0 0.0
    %2891 = vmatpush.msra.mxu0 0.0
    %2892 = vmatpush.msra.mxu0 %v115
    %2893 = vmatpush.msra.mxu0 %v113
    %2894 = vmatpush.msra.mxu0 %v111
    %2895 = vmatpush.msra.mxu0 %v109
    %2896 = vmatmul.f32.gmra.mxu0 %v2708
    %v2897 = vpop.f32.mrf.mxu0
    %v2898 = vadd.f32 0.0, %v2897
    %2899 = vmatmul.f32.gmra.mxu0 %v2710
    %v2900 = vpop.f32.mrf.mxu0
    %v2901 = vadd.f32 0.0, %v2900
    %2902 = vdwg.mxu0
    %v2903 = vadd.f32 %v266, %v2875
    %v2904 = vadd.f32 %v331, %v2898
    %v2905 = vadd.f32 %v269, %v2878
    %v2906 = vadd.f32 %v334, %v2901
    %2907 = vmatpush.msra.mxu0 0.0
    %2908 = vmatpush.msra.mxu0 0.0
    %2909 = vmatpush.msra.mxu0 0.0
    %2910 = vmatpush.msra.mxu0 0.0
    %2911 = vmatpush.msra.mxu0 0.0
    %2912 = vmatpush.msra.mxu0 0.0
    %2913 = vmatpush.msra.mxu0 0.0
    %2914 = vmatpush.msra.mxu0 0.0
    %2915 = vmatpush.msra.mxu0 0.0
    %2916 = vmatpush.msra.mxu0 0.0
    %2917 = vmatpush.msra.mxu0 0.0
    %2918 = vmatpush.msra.mxu0 0.0
    %2919 = vmatpush.msra.mxu0 0.0
    %2920 = vmatpush.msra.mxu0 0.0
    %2921 = vmatpush.msra.mxu0 %v2905
    %2922 = vmatpush.msra.mxu0 %v2903
    %2923 = vmatmul.f32.gmra.mxu0 %v392
    %v2924 = vpop.f32.mrf.mxu0
    %v2925 = vadd.f32 %v2904, %v2924
    %2926 = vmatmul.f32.gmra.mxu0 %v395
    %v2927 = vpop.f32.mrf.mxu0
    %v2928 = vadd.f32 %v2906, %v2927
    %2929 = vdwg.mxu0
    %v2930 = vadd.f32 %v2925, %v126
    %v2931 = vadd.f32 %v2928, %v126
    %v2932 = vxor.u32 %v2930, 2147483648
    %v2933 = vxor.u32 %v2931, 2147483648
    %v2934 = vmul.f32 %v2932, 1.442695
    %v2935 = vpow.pop %v2934
    %v2936 = vmul.f32 %v2933, 1.442695
    %v2937 = vpow.pop %v2936
    %v2938 = vadd.f32 %v2935, 1.0
    %v2939 = vadd.f32 %v2937, 1.0
    %v2940 = vrcp.pop %v2938
    %v2941 = vmul.f32 %v2938, %v2940
    %v2942 = vsub.f32 1.0, %v2941
    %v2943 = vmul.f32 %v2940, %v2942
    %v2944 = vadd.f32 %v2940, %v2943
    %vm2945 = vweird.f32 %v2938
    %vm2946 = vweird.f32 %v2940
    %vm2947 = vmor %vm2945, %vm2946
    %v2948 = vsel %vm2947, %v2940, %v2944
    %v2949 = vand.u32 2147483647, %v2938
    %vm2950 = vcmp.eq.f32.partialorder %v2949, 8.507059e+37
    %v2951 = vand.u32 %v2938, 2147483648
    %v2952 = vor.u32 1.1754944e-38, %v2951
    %v2953 = vsel %vm2950, %v2952, %v2948
    %v2954 = vmul.f32 1.0, %v2953
    %v2955 = vrcp.pop %v2939
    %v2956 = vmul.f32 %v2939, %v2955
    %v2957 = vsub.f32 1.0, %v2956
    %v2958 = vmul.f32 %v2955, %v2957
    %v2959 = vadd.f32 %v2955, %v2958
    %vm2960 = vweird.f32 %v2939
    %vm2961 = vweird.f32 %v2955
    %vm2962 = vmor %vm2960, %vm2961
    %v2963 = vsel %vm2962, %v2955, %v2959
    %v2964 = vand.u32 2147483647, %v2939
    %vm2965 = vcmp.eq.f32.partialorder %v2964, 8.507059e+37
    %v2966 = vand.u32 %v2939, 2147483648
    %v2967 = vor.u32 1.1754944e-38, %v2966
    %v2968 = vsel %vm2965, %v2967, %v2963
    %v2969 = vmul.f32 1.0, %v2968
    %v2970 = vtanh.pop %v2930
    %v2971 = vtanh.pop %v2931
    %v2972 = vmul.f32 %v2954, %v2632
    %v2973 = vmul.f32 %v2969, %v2633
    %2976 = vrot.lane.b32.xlu0 %v2970, 32
    %v2977 = vpop.permute.xlu0 %2976
    %2978 = vrot.lane.b32.xlu0 %v2971, 32
    %v2979 = vpop.permute.xlu0 %2978
    %v2982 = vmul.f32 %v2954, %v2977
    %v2983 = vmul.f32 %v2969, %v2979
    %2986 = vrot.lane.b32.xlu0 %v2982, 32
    %v2987 = vpop.permute.xlu0 %2986
    %2988 = vrot.lane.b32.xlu0 %v2983, 32
    %v2989 = vpop.permute.xlu0 %2988
    %v2992 = vadd.f32 %v2972, %v2987
    %v2993 = vadd.f32 %v2973, %v2989
    %v2994 = vtanh.pop %v2992
    %v2995 = vtanh.pop %v2993
    %2998 = vrot.lane.b32.xlu0 %v2994, 32
    %v2999 = vpop.permute.xlu0 %2998
    %3000 = vrot.lane.b32.xlu0 %v2995, 32
    %v3001 = vpop.permute.xlu0 %3000
    %v3004 = vmul.f32 %v2954, %v2999
    %v3005 = vmul.f32 %v2969, %v3001
    %3008 = vrot.lane.b32.xlu0 %v2855, 64
    %v3009 = vpop.permute.xlu0 %3008
    %3010 = vrot.lane.b32.xlu0 %v2856, 64
    %v3011 = vpop.permute.xlu0 %3010
    %v3012 = vsel %vm336, %v3009, 0
    %v3014 = vsel %vm336, %v3011, 0
    %3016 = vmatpush.msra.mxu0 0.0
    %3017 = vmatpush.msra.mxu0 0.0
    %3018 = vmatpush.msra.mxu0 0.0
    %3019 = vmatpush.msra.mxu0 0.0
    %3020 = vmatpush.msra.mxu0 0.0
    %3021 = vmatpush.msra.mxu0 0.0
    %3022 = vmatpush.msra.mxu0 0.0
    %3023 = vmatpush.msra.mxu0 0.0
    %3024 = vmatpush.msra.mxu0 0.0
    %3025 = vmatpush.msra.mxu0 0.0
    %3026 = vmatpush.msra.mxu0 0.0
    %3027 = vmatpush.msra.mxu0 0.0
    %3028 = vmatpush.msra.mxu0 %v122
    %3029 = vmatpush.msra.mxu0 %v120
    %3030 = vmatpush.msra.mxu0 %v118
    %3031 = vmatpush.msra.mxu0 %v116
    %3032 = vmatmul.f32.gmra.mxu0 %v3012
    %v3033 = vpop.f32.mrf.mxu0
    %v3034 = vadd.f32 0.0, %v3033
    %3035 = vmatmul.f32.gmra.mxu0 %v3014
    %v3036 = vpop.f32.mrf.mxu0
    %v3037 = vadd.f32 0.0, %v3036
    %3038 = vdwg.mxu0
    %3039 = vmatpush.msra.mxu0 0.0
    %3040 = vmatpush.msra.mxu0 0.0
    %3041 = vmatpush.msra.mxu0 0.0
    %3042 = vmatpush.msra.mxu0 0.0
    %3043 = vmatpush.msra.mxu0 0.0
    %3044 = vmatpush.msra.mxu0 0.0
    %3045 = vmatpush.msra.mxu0 0.0
    %3046 = vmatpush.msra.mxu0 0.0
    %3047 = vmatpush.msra.mxu0 0.0
    %3048 = vmatpush.msra.mxu0 0.0
    %3049 = vmatpush.msra.mxu0 0.0
    %3050 = vmatpush.msra.mxu0 0.0
    %3051 = vmatpush.msra.mxu0 %v123
    %3052 = vmatpush.msra.mxu0 %v121
    %3053 = vmatpush.msra.mxu0 %v119
    %3054 = vmatpush.msra.mxu0 %v117
    %3055 = vmatmul.f32.gmra.mxu0 %v3012
    %v3056 = vpop.f32.mrf.mxu0
    %v3057 = vadd.f32 0.0, %v3056
    %3058 = vmatmul.f32.gmra.mxu0 %v3014
    %v3059 = vpop.f32.mrf.mxu0
    %v3060 = vadd.f32 0.0, %v3059
    %3061 = vdwg.mxu0
    %3064 = vrot.lane.b32.xlu0 %v3004, 64
    %v3065 = vpop.permute.xlu0 %3064
    %3066 = vrot.lane.b32.xlu0 %v3005, 64
    %v3067 = vpop.permute.xlu0 %3066
    %v3068 = vsel %vm336, %v3065, 0
    %v3070 = vsel %vm336, %v3067, 0
    %3072 = vmatpush.msra.mxu0 0.0
    %3073 = vmatpush.msra.mxu0 0.0
    %3074 = vmatpush.msra.mxu0 0.0
    %3075 = vmatpush.msra.mxu0 0.0
    %3076 = vmatpush.msra.mxu0 0.0
    %3077 = vmatpush.msra.mxu0 0.0
    %3078 = vmatpush.msra.mxu0 0.0
    %3079 = vmatpush.msra.mxu0 0.0
    %3080 = vmatpush.msra.mxu0 0.0
    %3081 = vmatpush.msra.mxu0 0.0
    %3082 = vmatpush.msra.mxu0 0.0
    %3083 = vmatpush.msra.mxu0 0.0
    %3084 = vmatpush.msra.mxu0 %v106
    %3085 = vmatpush.msra.mxu0 %v104
    %3086 = vmatpush.msra.mxu0 %v102
    %3087 = vmatpush.msra.mxu0 %v100
    %3088 = vmatmul.f32.gmra.mxu0 %v3068
    %v3089 = vpop.f32.mrf.mxu0
    %v3090 = vadd.f32 %v3034, %v3089
    %3091 = vmatmul.f32.gmra.mxu0 %v3070
    %v3092 = vpop.f32.mrf.mxu0
    %v3093 = vadd.f32 %v3037, %v3092
    %3094 = vdwg.mxu0
    %3095 = vmatpush.msra.mxu0 0.0
    %3096 = vmatpush.msra.mxu0 0.0
    %3097 = vmatpush.msra.mxu0 0.0
    %3098 = vmatpush.msra.mxu0 0.0
    %3099 = vmatpush.msra.mxu0 0.0
    %3100 = vmatpush.msra.mxu0 0.0
    %3101 = vmatpush.msra.mxu0 0.0
    %3102 = vmatpush.msra.mxu0 0.0
    %3103 = vmatpush.msra.mxu0 0.0
    %3104 = vmatpush.msra.mxu0 0.0
    %3105 = vmatpush.msra.mxu0 0.0
    %3106 = vmatpush.msra.mxu0 0.0
    %3107 = vmatpush.msra.mxu0 %v107
    %3108 = vmatpush.msra.mxu0 %v105
    %3109 = vmatpush.msra.mxu0 %v103
    %3110 = vmatpush.msra.mxu0 %v101
    %3111 = vmatmul.f32.gmra.mxu0 %v3068
    %v3112 = vpop.f32.mrf.mxu0
    %v3113 = vadd.f32 %v3057, %v3112
    %3114 = vmatmul.f32.gmra.mxu0 %v3070
    %v3115 = vpop.f32.mrf.mxu0
    %v3116 = vadd.f32 %v3060, %v3115
    %3117 = vdwg.mxu0
    %3118 = vmatpush.msra.mxu0 0.0
    %3119 = vmatpush.msra.mxu0 0.0
    %3120 = vmatpush.msra.mxu0 0.0
    %3121 = vmatpush.msra.mxu0 0.0
    %3122 = vmatpush.msra.mxu0 0.0
    %3123 = vmatpush.msra.mxu0 0.0
    %3124 = vmatpush.msra.mxu0 0.0
    %3125 = vmatpush.msra.mxu0 0.0
    %3126 = vmatpush.msra.mxu0 0.0
    %3127 = vmatpush.msra.mxu0 0.0
    %3128 = vmatpush.msra.mxu0 0.0
    %3129 = vmatpush.msra.mxu0 0.0
    %3130 = vmatpush.msra.mxu0 0.0
    %3131 = vmatpush.msra.mxu0 0.0
    %3132 = vmatpush.msra.mxu0 %v3093
    %3133 = vmatpush.msra.mxu0 %v3090
    %3134 = vmatmul.f32.gmra.mxu0 %v392
    %v3135 = vpop.f32.mrf.mxu0
    %v3136 = vadd.f32 %v3113, %v3135
    %3137 = vmatmul.f32.gmra.mxu0 %v395
    %v3138 = vpop.f32.mrf.mxu0
    %v3139 = vadd.f32 %v3116, %v3138
    %3140 = vdwg.mxu0
    %v3141 = vadd.f32 %v3136, %v130
    %v3142 = vadd.f32 %v3139, %v130
    %v3143 = vxor.u32 %v3141, 2147483648
    %v3144 = vxor.u32 %v3142, 2147483648
    %v3145 = vmul.f32 %v3143, 1.442695
    %v3146 = vpow.pop %v3145
    %v3147 = vmul.f32 %v3144, 1.442695
    %v3148 = vpow.pop %v3147
    %v3149 = vadd.f32 %v3146, 1.0
    %v3150 = vadd.f32 %v3148, 1.0
    %v3151 = vrcp.pop %v3149
    %v3152 = vmul.f32 %v3149, %v3151
    %v3153 = vsub.f32 1.0, %v3152
    %v3154 = vmul.f32 %v3151, %v3153
    %v3155 = vadd.f32 %v3151, %v3154
    %vm3156 = vweird.f32 %v3149
    %vm3157 = vweird.f32 %v3151
    %vm3158 = vmor %vm3156, %vm3157
    %v3159 = vsel %vm3158, %v3151, %v3155
    %v3160 = vand.u32 2147483647, %v3149
    %vm3161 = vcmp.eq.f32.partialorder %v3160, 8.507059e+37
    %v3162 = vand.u32 %v3149, 2147483648
    %v3163 = vor.u32 1.1754944e-38, %v3162
    %v3164 = vsel %vm3161, %v3163, %v3159
    %v3165 = vmul.f32 1.0, %v3164
    %v3166 = vrcp.pop %v3150
    %v3167 = vmul.f32 %v3150, %v3166
    %v3168 = vsub.f32 1.0, %v3167
    %v3169 = vmul.f32 %v3166, %v3168
    %v3170 = vadd.f32 %v3166, %v3169
    %vm3171 = vweird.f32 %v3150
    %vm3172 = vweird.f32 %v3166
    %vm3173 = vmor %vm3171, %vm3172
    %v3174 = vsel %vm3173, %v3166, %v3170
    %v3175 = vand.u32 2147483647, %v3150
    %vm3176 = vcmp.eq.f32.partialorder %v3175, 8.507059e+37
    %v3177 = vand.u32 %v3150, 2147483648
    %v3178 = vor.u32 1.1754944e-38, %v3177
    %v3179 = vsel %vm3176, %v3178, %v3174
    %v3180 = vmul.f32 1.0, %v3179
    %v3181 = vtanh.pop %v3141
    %v3182 = vtanh.pop %v3142
    %v3183 = vmul.f32 %v3165, %v2843
    %v3184 = vmul.f32 %v3180, %v2844
    %3187 = vrot.lane.b32.xlu0 %v3181, 32
    %v3188 = vpop.permute.xlu0 %3187
    %3189 = vrot.lane.b32.xlu0 %v3182, 32
    %v3190 = vpop.permute.xlu0 %3189
    %v3193 = vmul.f32 %v3165, %v3188
    %v3194 = vmul.f32 %v3180, %v3190
    %3197 = vrot.lane.b32.xlu0 %v3193, 32
    %v3198 = vpop.permute.xlu0 %3197
    %3199 = vrot.lane.b32.xlu0 %v3194, 32
    %v3200 = vpop.permute.xlu0 %3199
    %v3203 = vadd.f32 %v3183, %v3198
    %v3204 = vadd.f32 %v3184, %v3200
    %v3205 = vtanh.pop %v3203
    %v3206 = vtanh.pop %v3204
    %3209 = vrot.lane.b32.xlu0 %v3205, 32
    %v3210 = vpop.permute.xlu0 %3209
    %3211 = vrot.lane.b32.xlu0 %v3206, 32
    %v3212 = vpop.permute.xlu0 %3211
    %v3215 = vmul.f32 %v3165, %v3210
    %v3216 = vmul.f32 %v3180, %v3212
    %v3217 = vld [vmem:[#allocation8] sm:$0xff]
    %v3218 = vld [vmem:[#allocation8 + $0x8] sm:$0xff]
    %v3219 = vld [vmem:[#allocation8 + $0x10] sm:$0xff]
    %v3220 = vld [vmem:[#allocation8 + $0x18] sm:$0xff]
    %v3221 = vld [vmem:[%s9] sm:$0x1]
    %v3223 = vperm.slane %v3221, 0
    %3227 = vrot.lane.b32.xlu0 %v3215, 64
    %v3228 = vpop.permute.xlu0 %3227
    %3229 = vrot.lane.b32.xlu0 %v3216, 64
    %v3230 = vpop.permute.xlu0 %3229
    %v3231 = vsel %vm336, %v3228, 0
    %v3233 = vsel %vm336, %v3230, 0
    %3235 = vmatpush.msra.mxu0 0.0
    %3236 = vmatpush.msra.mxu0 0.0
    %3237 = vmatpush.msra.mxu0 0.0
    %3238 = vmatpush.msra.mxu0 0.0
    %3239 = vmatpush.msra.mxu0 0.0
    %3240 = vmatpush.msra.mxu0 0.0
    %3241 = vmatpush.msra.mxu0 0.0
    %3242 = vmatpush.msra.mxu0 0.0
    %3243 = vmatpush.msra.mxu0 0.0
    %3244 = vmatpush.msra.mxu0 0.0
    %3245 = vmatpush.msra.mxu0 0.0
    %3246 = vmatpush.msra.mxu0 0.0
    %3247 = vmatpush.msra.mxu0 %v3220
    %3248 = vmatpush.msra.mxu0 %v3219
    %3249 = vmatpush.msra.mxu0 %v3218
    %3250 = vmatpush.msra.mxu0 %v3217
    %3251 = vmatmul.f32.gmra.mxu0 %v3231
    %v3252 = vpop.f32.mrf.mxu0
    %v3253 = vadd.f32 %v3223, %v3252
    %3254 = vmatmul.f32.gmra.mxu0 %v3233
    %v3255 = vpop.f32.mrf.mxu0
    %v3256 = vadd.f32 %v3223, %v3255
    %3257 = vdwg.mxu0
    %3258 = vst [vmem:[#allocation10] sm:$0xff] %v3253
    %3259 = vst [vmem:[#allocation10 + $0x8] sm:$0xff] %v3256
    // Predicated region
    $region58: #{tpu_custom_call.1} parent=1 // pred_check
      _
    $region59: #{tpu_custom_call.1} parent=1 // pred_check_branch
      %3261 = sbr.rel (0) target = $region61
    $region60: #{tpu_custom_call.1} parent=1 // pred_region
      %3263 = vsyncadd [#allocation4], 0
      %s3264 = sshll.u32 [#allocation10], 4
      %s3265 = int_to_ptr.vmem [resolvable:$true] %s3264
      %s3266 = sshll.u32 %s10, 4
      %s3267 = int_to_ptr.hbm [resolvable:$true] %s3266
      %3272 = dma.vmem_to_hbm [thread:$0]  %s3265, 256, %s3267, [#allocation4], 128, 128, 8
    $region61: #{tpu_custom_call.1} parent=1 // pred_fallthru
      _
    // Predicated region
    $region62: #{tpu_custom_call.1} parent=1 // pred_check
      _
    $region63: #{tpu_custom_call.1} parent=1 // pred_check_branch
      %3274 = sbr.rel (0) target = $region65
    $region64: #{tpu_custom_call.1} parent=1 // pred_region
      %3276 = dma.done [#allocation4], 256
    $region65: #{tpu_custom_call.1} parent=1 // pred_fallthru
      _
    %3277 = vsyncpa [#allocation3], 1
    %3278 = vsyncpa [#allocation6], 1
    %3279 = vsyncpa [#allocation9], 1
    %3280 = vsyncpa [#allocation4], 1

</llo_original>
